<compile_context>
chip_gen: v6e
topology: v6e:2x2x1
jax: 0.10.0
libtpu: 0.0.40
codegen_flags: <defaults>
</compile_context>

<pallas_src>
import math

import jax
import jax.numpy as jnp
import numpy as np
from jax.experimental import pallas as pl
from jax.experimental.pallas import tpu as pltpu


def _round_up(a, b):
    return (a + b - 1) // b * b


def _make_kernel(b_tile, seq, emb, num_heads, head_dim, fc_row0, bias_row):
    bh = b_tile * num_heads
    rows = b_tile * seq

    def kernel(x_ref, w_ref, o_ref):
        # x_ref: (b_tile*H, seq, head_dim)  head-batched activations.
        # w_ref: (slab_rows, slab_cols) packed params:
        #   rows [0, D)                cols [0, 3D) = [Wq^T/sqrt(D) | Wk^T | Wv^T]
        #   rows [fc_row0, fc_row0+E)  cols [0, E)  = Wfc^T
        #   row  bias_row              cols [0, E)  = fc bias
        # o_ref: (b_tile, seq, emb)
        x = x_ref[...].reshape(bh * seq, head_dim)            # leading-dim merge only

        # One MXU pass for Q, K, V of every (batch, head) row (scale folded into Wq).
        w_qkv = w_ref[:head_dim, :3 * head_dim]               # (D, 3D)
        qkv = jnp.dot(x, w_qkv, preferred_element_type=jnp.float32)   # (bh*seq, 3D)

        def heads(t):                                          # (bh*seq, D) -> (bh, S, D)
            return t.reshape(bh, seq, head_dim)                # leading-dim split only

        q = heads(qkv[:, :head_dim])
        k = heads(qkv[:, head_dim:2 * head_dim])
        v = heads(qkv[:, 2 * head_dim:3 * head_dim])

        # Batched attention core: one QK^T, one stacked softmax, one P@V.
        e = jnp.einsum('bqd,bkd->bqk', q, k,
                       preferred_element_type=jnp.float32)     # (bh, S, S)
        m = jnp.max(e, axis=-1, keepdims=True)
        p = jnp.exp(e - m)
        l = jnp.sum(p, axis=-1, keepdims=True)
        o = jnp.einsum('bqk,bkd->bqd', p, v,
                       preferred_element_type=jnp.float32)     # (bh, S, D)
        # Normalise once per row on the (S, D) output, not the (S, S) probs.
        # (approx=True + one Newton step at production row counts.)
        o = o * pl.reciprocal(l, approx=False)

        # fc_out folded into a per-head accumulation over sublane-aligned row
        # slices of Wfc^T -- no scratch, no masked lane-offset stores, no
        # concatenate/transpose.  (Use lax.fori_loop(unroll=True)/a grid axis
        # if num_heads grows at production sizes.)
        o4 = o.reshape(b_tile, num_heads, seq, head_dim)       # leading-dim split only
        acc = None
        for h in range(num_heads):
            o_h = o4[:, h].reshape(rows, head_dim)             # (rows, D)
            w_h = w_ref[fc_row0 + h * head_dim:fc_row0 + (h + 1) * head_dim, :emb]
            t = jnp.dot(o_h, w_h, preferred_element_type=jnp.float32)
            acc = t if acc is None else acc + t
        out = acc + w_ref[bias_row:bias_row + 1, :emb]         # (rows, emb) + (1, emb)
        o_ref[...] = out.reshape(b_tile, seq, emb).astype(o_ref.dtype)

    return kernel


def make_transformer_self_attention(wq, wk, wv, wfc, bfc, num_heads, b_tile=None):
    """Weights use PyTorch nn.Linear convention: weight (out, in), y = x @ W^T + b.
    wq/wk/wv: (D, D) with D = emb // num_heads; wfc: (emb, emb); bfc: (emb,).
    Returns a jitted callable x (batch, seq, emb) -> (batch, seq, emb)."""
    f32 = jnp.float32
    emb = wfc.shape[0]
    head_dim = emb // num_heads
    assert head_dim * num_heads == emb
    scale = 1.0 / math.sqrt(head_dim)

    # --- one-time weight packing (hoisted out of the per-call path) ----------
    slab_cols = max(emb, 3 * head_dim)
    fc_row0 = _round_up(head_dim, 8)
    bias_row = fc_row0 + emb
    slab_rows = _round_up(bias_row + 1, 8)      # pad sublane dim to a multiple of 8

    qkv_t = jnp.concatenate([jnp.asarray(wq, f32).T * scale,   # scale folded into Wq
                             jnp.asarray(wk, f32).T,
                             jnp.asarray(wv, f32).T], axis=1)  # (D, 3D)
    slab = jnp.zeros((slab_rows, slab_cols), f32)
    slab = slab.at[:head_dim, :3 * head_dim].set(qkv_t)
    slab = slab.at[fc_row0:fc_row0 + emb, :emb].set(jnp.asarray(wfc, f32).T)
    slab = slab.at[bias_row, :emb].set(jnp.asarray(bfc, f32))

    def apply(x):
        batch, seq, emb_ = x.shape
        assert emb_ == emb
        # Single grid step by default: per-step overhead (~0.35 us) dominates at
        # these shapes on 1-TC parts (v5e/v6e).  At production shapes pass
        # b_tile < batch so >= 2 "parallel" steps feed both v7x TensorCores.
        bt = batch if b_tile is None else b_tile
        assert batch % bt == 0
        n_tiles = batch // bt

        # Head-batched layout via wrapper-side layout plumbing (tiny here).  At
        # production sizes (head_dim a multiple of 128) slice heads with a
        # BlockSpec/grid axis instead and skip this transpose.
        xh = jnp.transpose(x.reshape(batch, seq, num_heads, head_dim),
                           (0, 2, 1, 3)).reshape(batch * num_heads, seq, head_dim)

        kernel = _make_kernel(bt, seq, emb, num_heads, head_dim, fc_row0, bias_row)
        return pl.pallas_call(
            kernel,
            out_shape=jax.ShapeDtypeStruct((batch, seq, emb), x.dtype),
            grid_spec=pltpu.PrefetchScalarGridSpec(
                num_scalar_prefetch=0,
                grid=(n_tiles,),
                in_specs=[
                    pl.BlockSpec((bt * num_heads, seq, head_dim),
                                 lambda i: (i, 0, 0)),
                    pl.BlockSpec((slab_rows, slab_cols), lambda i: (0, 0)),
                ],
                out_specs=pl.BlockSpec((bt, seq, emb), lambda i: (i, 0, 0)),
            ),
            compiler_params=pltpu.CompilerParams(
                dimension_semantics=("parallel",)),
        )(xh, slab)

    return jax.jit(apply)


def _reference(x, wq, wk, wv, wfc, bfc, num_heads):
    """Pure-JAX replica of the PyTorch forward for verification."""
    batch, seq, emb = x.shape
    d = emb // num_heads
    xb = x.reshape(batch, seq, num_heads, d)
    values = jnp.einsum('nqhd,od->nqho', xb, wv)
    keys = jnp.einsum('nqhd,od->nqho', xb, wk)
    queries = jnp.einsum('nqhd,od->nqho', xb, wq)
    energy = jnp.einsum('nqhd,nkhd->nhqk', queries, keys) / math.sqrt(d)
    attention = jax.nn.softmax(energy, axis=3)
    out = jnp.einsum('nhql,nlhd->nqhd', attention, values)
    out = out.reshape(batch, seq, emb)
    return out @ wfc.T + bfc


if __name__ == "__main__":
    batch, seq, emb, num_heads = 4, 8, 32, 4
    head_dim = emb // num_heads

    key = jax.random.PRNGKey(0)
    kx, kq, kk, kv, kw, kb = jax.random.split(key, 6)

    # deterministic params (PyTorch Linear default: U(-1/sqrt(fan_in), 1/sqrt(fan_in)))
    bd = 1.0 / math.sqrt(head_dim)
    be = 1.0 / math.sqrt(emb)
    wq = jax.random.uniform(kq, (head_dim, head_dim), jnp.float32, -bd, bd)
    wk = jax.random.uniform(kk, (head_dim, head_dim), jnp.float32, -bd, bd)
    wv = jax.random.uniform(kv, (head_dim, head_dim), jnp.float32, -bd, bd)
    wfc = jax.random.uniform(kw, (emb, emb), jnp.float32, -be, be)
    bfc = jax.random.uniform(kb, (emb,), jnp.float32, -be, be)

    x = jax.random.normal(kx, (batch, seq, emb), jnp.float32)

    attn_fn = make_transformer_self_attention(wq, wk, wv, wfc, bfc, num_heads)
    out = jax.block_until_ready(attn_fn(x))

    ref = _reference(x, wq, wk, wv, wfc, bfc, num_heads)
    np.testing.assert_allclose(np.asarray(out), np.asarray(ref), rtol=1e-5, atol=1e-5)

    print("KERNEL_OK")
</pallas_src>

<mosaic_0001>
module attributes {stable_mosaic.version = 11 : i64} {
  func.func @kernel(%arg0: i32, %arg1: memref<16x8x8xf32, #tpu.memory_space<vmem>>, %arg2: memref<48x32xf32, #tpu.memory_space<vmem>>, %arg3: memref<4x8x32xf32, #tpu.memory_space<vmem>>) attributes {dimension_semantics = [#tpu.dimension_semantics<parallel>], iteration_bounds = array<i64: 1>, scalar_prefetch = 0 : i64, scratch_operands = 0 : i64, tpu.core_type = #tpu.core_type<tc>, window_params = [{transform_indices = @transform_0, window_bounds = array<i64: 16, 8, 8>}, {pipeline_mode = #tpu.pipeline_mode<synchronous>, transform_indices = @transform_1, window_bounds = array<i64: 48, 32>}, {transform_indices = @transform_2, window_bounds = array<i64: 4, 8, 32>}]} {
    %c0 = arith.constant 0 : index
    %c0_0 = arith.constant 0 : index
    %c0_1 = arith.constant 0 : index
    %0 = vector.load %arg1[%c0, %c0_0, %c0_1] : memref<16x8x8xf32, #tpu.memory_space<vmem>>, vector<16x8x8xf32>
    %1 = vector.shape_cast %0 : vector<16x8x8xf32> to vector<128x8xf32>
    %c0_2 = arith.constant 0 : index
    %c0_3 = arith.constant 0 : index
    %2 = vector.load %arg2[%c0_2, %c0_3] : memref<48x32xf32, #tpu.memory_space<vmem>>, vector<8x24xf32>
    %cst = arith.constant dense<0.000000e+00> : vector<128x24xf32>
    %3 = tpu.matmul %1, %2, %cst {dimension_numbers = #tpu.dot_dimension_numbers<[1], [0], [0], [1], [0, 0, 1, 1], [], []>} : vector<128x8xf32>, vector<8x24xf32>, vector<128x24xf32> -> vector<128x24xf32>
    %4 = vector.extract_strided_slice %3 {offsets = [0, 0], sizes = [128, 8], strides = [1, 1]} : vector<128x24xf32> to vector<128x8xf32>
    %5 = vector.shape_cast %4 : vector<128x8xf32> to vector<16x8x8xf32>
    %6 = vector.extract_strided_slice %3 {offsets = [0, 8], sizes = [128, 8], strides = [1, 1]} : vector<128x24xf32> to vector<128x8xf32>
    %7 = vector.shape_cast %6 : vector<128x8xf32> to vector<16x8x8xf32>
    %8 = vector.extract_strided_slice %3 {offsets = [0, 16], sizes = [128, 8], strides = [1, 1]} : vector<128x24xf32> to vector<128x8xf32>
    %9 = vector.shape_cast %8 : vector<128x8xf32> to vector<16x8x8xf32>
    "tpu.trace_start"() <{level = 10 : i32, message = "bqd,bkd->bqk"}> : () -> ()
    %cst_4 = arith.constant dense<0.000000e+00> : vector<16x8x8xf32>
    %10 = tpu.matmul %5, %7, %cst_4 {dimension_numbers = #tpu.dot_dimension_numbers<[2], [2], [1], [1], [0, 0, 0, 1, 1, 1], [0], [0]>} : vector<16x8x8xf32>, vector<16x8x8xf32>, vector<16x8x8xf32> -> vector<16x8x8xf32>
    "tpu.trace_stop"() : () -> ()
    %cst_5 = arith.constant dense<0xFF800000> : vector<16x8xf32>
    %11 = vector.multi_reduction <maximumf>, %10, %cst_5 [2] : vector<16x8x8xf32> to vector<16x8xf32>
    %12 = vector.shape_cast %11 : vector<16x8xf32> to vector<16x8x1xf32>
    %13 = vector.broadcast %12 : vector<16x8x1xf32> to vector<16x8x8xf32>
    %14 = arith.subf %10, %13 : vector<16x8x8xf32>
    %15 = math.exp %14 : vector<16x8x8xf32>
    %cst_6 = arith.constant dense<0.000000e+00> : vector<16x8xf32>
    %16 = vector.multi_reduction <add>, %15, %cst_6 [2] : vector<16x8x8xf32> to vector<16x8xf32>
    %17 = vector.shape_cast %16 : vector<16x8xf32> to vector<16x8x1xf32>
    "tpu.trace_start"() <{level = 10 : i32, message = "bqk,bkd->bqd"}> : () -> ()
    %cst_7 = arith.constant dense<0.000000e+00> : vector<16x8x8xf32>
    %18 = tpu.matmul %15, %9, %cst_7 {dimension_numbers = #tpu.dot_dimension_numbers<[2], [1], [1], [2], [0, 0, 0, 1, 1, 2], [0], [0]>} : vector<16x8x8xf32>, vector<16x8x8xf32>, vector<16x8x8xf32> -> vector<16x8x8xf32>
    "tpu.trace_stop"() : () -> ()
    %19 = tpu.reciprocal %17 : vector<16x8x1xf32> -> vector<16x8x1xf32>
    %20 = vector.broadcast %19 : vector<16x8x1xf32> to vector<16x8x8xf32>
    %21 = arith.mulf %18, %20 : vector<16x8x8xf32>
    %22 = vector.shape_cast %21 : vector<16x8x8xf32> to vector<4x4x8x8xf32>
    %23 = vector.extract_strided_slice %22 {offsets = [0, 0, 0, 0], sizes = [4, 1, 8, 8], strides = [1, 1, 1, 1]} : vector<4x4x8x8xf32> to vector<4x1x8x8xf32>
    %24 = vector.shape_cast %23 : vector<4x1x8x8xf32> to vector<4x8x8xf32>
    %25 = vector.shape_cast %24 : vector<4x8x8xf32> to vector<32x8xf32>
    %c8 = arith.constant 8 : index
    %c0_8 = arith.constant 0 : index
    %26 = vector.load %arg2[%c8, %c0_8] : memref<48x32xf32, #tpu.memory_space<vmem>>, vector<8x32xf32>
    %cst_9 = arith.constant dense<0.000000e+00> : vector<32x32xf32>
    %27 = tpu.matmul %25, %26, %cst_9 {dimension_numbers = #tpu.dot_dimension_numbers<[1], [0], [0], [1], [0, 0, 1, 1], [], []>} : vector<32x8xf32>, vector<8x32xf32>, vector<32x32xf32> -> vector<32x32xf32>
    %28 = vector.extract_strided_slice %22 {offsets = [0, 1, 0, 0], sizes = [4, 1, 8, 8], strides = [1, 1, 1, 1]} : vector<4x4x8x8xf32> to vector<4x1x8x8xf32>
    %29 = vector.shape_cast %28 : vector<4x1x8x8xf32> to vector<4x8x8xf32>
    %30 = vector.shape_cast %29 : vector<4x8x8xf32> to vector<32x8xf32>
    %c16 = arith.constant 16 : index
    %c0_10 = arith.constant 0 : index
    %31 = vector.load %arg2[%c16, %c0_10] : memref<48x32xf32, #tpu.memory_space<vmem>>, vector<8x32xf32>
    %cst_11 = arith.constant dense<0.000000e+00> : vector<32x32xf32>
    %32 = tpu.matmul %30, %31, %cst_11 {dimension_numbers = #tpu.dot_dimension_numbers<[1], [0], [0], [1], [0, 0, 1, 1], [], []>} : vector<32x8xf32>, vector<8x32xf32>, vector<32x32xf32> -> vector<32x32xf32>
    %33 = arith.addf %27, %32 : vector<32x32xf32>
    %34 = vector.extract_strided_slice %22 {offsets = [0, 2, 0, 0], sizes = [4, 1, 8, 8], strides = [1, 1, 1, 1]} : vector<4x4x8x8xf32> to vector<4x1x8x8xf32>
    %35 = vector.shape_cast %34 : vector<4x1x8x8xf32> to vector<4x8x8xf32>
    %36 = vector.shape_cast %35 : vector<4x8x8xf32> to vector<32x8xf32>
    %c24 = arith.constant 24 : index
    %c0_12 = arith.constant 0 : index
    %37 = vector.load %arg2[%c24, %c0_12] : memref<48x32xf32, #tpu.memory_space<vmem>>, vector<8x32xf32>
    %cst_13 = arith.constant dense<0.000000e+00> : vector<32x32xf32>
    %38 = tpu.matmul %36, %37, %cst_13 {dimension_numbers = #tpu.dot_dimension_numbers<[1], [0], [0], [1], [0, 0, 1, 1], [], []>} : vector<32x8xf32>, vector<8x32xf32>, vector<32x32xf32> -> vector<32x32xf32>
    %39 = arith.addf %33, %38 : vector<32x32xf32>
    %40 = vector.extract_strided_slice %22 {offsets = [0, 3, 0, 0], sizes = [4, 1, 8, 8], strides = [1, 1, 1, 1]} : vector<4x4x8x8xf32> to vector<4x1x8x8xf32>
    %41 = vector.shape_cast %40 : vector<4x1x8x8xf32> to vector<4x8x8xf32>
    %42 = vector.shape_cast %41 : vector<4x8x8xf32> to vector<32x8xf32>
    %c32 = arith.constant 32 : index
    %c0_14 = arith.constant 0 : index
    %43 = vector.load %arg2[%c32, %c0_14] : memref<48x32xf32, #tpu.memory_space<vmem>>, vector<8x32xf32>
    %cst_15 = arith.constant dense<0.000000e+00> : vector<32x32xf32>
    %44 = tpu.matmul %42, %43, %cst_15 {dimension_numbers = #tpu.dot_dimension_numbers<[1], [0], [0], [1], [0, 0, 1, 1], [], []>} : vector<32x8xf32>, vector<8x32xf32>, vector<32x32xf32> -> vector<32x32xf32>
    %45 = arith.addf %39, %44 : vector<32x32xf32>
    %c40 = arith.constant 40 : index
    %c0_16 = arith.constant 0 : index
    %46 = vector.load %arg2[%c40, %c0_16] : memref<48x32xf32, #tpu.memory_space<vmem>>, vector<1x32xf32>
    %47 = vector.broadcast %46 : vector<1x32xf32> to vector<32x32xf32>
    %48 = arith.addf %45, %47 : vector<32x32xf32>
    %49 = vector.shape_cast %48 : vector<32x32xf32> to vector<4x8x32xf32>
    %c0_17 = arith.constant 0 : index
    %c0_18 = arith.constant 0 : index
    %c0_19 = arith.constant 0 : index
    %50 = vector.load %arg3[%c0_17, %c0_18, %c0_19] : memref<4x8x32xf32, #tpu.memory_space<vmem>>, vector<4x8x32xf32>
    tpu.vector_store %arg3[%c0_17, %c0_18, %c0_19], %49 {strides = array<i32>} : memref<4x8x32xf32, #tpu.memory_space<vmem>>, vector<4x8x32xf32>,
    return
  }
  func.func @transform_0(%arg0: i32) -> (i32, i32, i32) {
    %c0_i32 = arith.constant 0 : i32
    %c0_i32_0 = arith.constant 0 : i32
    %c0_i32_1 = arith.constant 0 : i32
    return %arg0, %c0_i32, %c0_i32_0 : i32, i32, i32
  }
  func.func @transform_1(%arg0: i32) -> (i32, i32) {
    %c0_i32 = arith.constant 0 : i32
    %c0_i32_0 = arith.constant 0 : i32
    %c0_i32_1 = arith.constant 0 : i32
    return %c0_i32, %c0_i32_0 : i32, i32
  }
  func.func @transform_2(%arg0: i32) -> (i32, i32, i32) {
    %c0_i32 = arith.constant 0 : i32
    %c0_i32_0 = arith.constant 0 : i32
    %c0_i32_1 = arith.constant 0 : i32
    return %arg0, %c0_i32, %c0_i32_0 : i32, i32, i32
  }
}

</mosaic_0001>

<llo_original>
// kernel: apply.1
$region0: #{apply.1}
  #allocation0 [shape = 'u32[]', space=smem, size = 0x4, offset = 0x4, fixed_abs, tag = 'smem constant byte address 0x4 - core index']
  #allocation1 [shape = 'u32[144,128]{1,0:T(1,128)}', space=vmem, size = 0x12000, scoped, tag = 'internal scratch']
  %s0 = inlined_call_operand.vmem [shape: f32[16,8,8], index: 0, kind: input, shape index: {}]
  %s1 = inlined_call_operand.vmem [shape: f32[48,32], index: 1, kind: input, shape index: {}]
  %s2 = inlined_call_operand.hbm [shape: f32[4,8,32], index: 2, kind: output, shape index: {}]
  %s3 = sld [smem:[#allocation0]]
  $region18: #{apply.1} parent=0
    _
  %s5 = ssub.s32 1, %s3
  %s6 = scalar_select 0, %s5, %s3
  $region1: #{apply.1} parent=0
    #allocation2 [shape = 'u8[16384]{0}', space=vmem, size = 0x4000, scoped, tag = 'output window, operand 0, single buffered']
    #allocation3 [shape = 's32[1]{0}', space=sflag, size = 0x4, scoped, tag = 'scoped memory for apply.1']
    %7 = vsyncpa [#allocation3], 0
    // Predicated region
    $region2: #{apply.1} parent=1 // pred_check
      _
    $region3: #{apply.1} parent=1 // pred_check_branch
      %9 = sbr.rel (0) target = $region5
    $region4: #{apply.1} parent=1 // pred_region
      _
    $region5: #{apply.1} parent=1 // pred_fallthru
      _
    // Predicated region
    $region6: #{apply.1} parent=1 // pred_check
      _
    $region7: #{apply.1} parent=1 // pred_check_branch
      %11 = sbr.rel (0) target = $region9
    $region8: #{apply.1} parent=1 // pred_region
      _
    $region9: #{apply.1} parent=1 // pred_fallthru
      _
    %v12 = vld [vmem:[%s0] sm:$0xff]
    %v13 = vld [vmem:[%s0 + $0x8] sm:$0xff]
    %v14 = vld [vmem:[%s0 + $0x10] sm:$0xff]
    %v15 = vld [vmem:[%s0 + $0x18] sm:$0xff]
    %v16 = vld [vmem:[%s0 + $0x20] sm:$0xff]
    %v17 = vld [vmem:[%s0 + $0x28] sm:$0xff]
    %v18 = vld [vmem:[%s0 + $0x30] sm:$0xff]
    %v19 = vld [vmem:[%s0 + $0x38] sm:$0xff]
    %v20 = vld [vmem:[%s0 + $0x40] sm:$0xff]
    %v21 = vld [vmem:[%s0 + $0x48] sm:$0xff]
    %v22 = vld [vmem:[%s0 + $0x50] sm:$0xff]
    %v23 = vld [vmem:[%s0 + $0x58] sm:$0xff]
    %v24 = vld [vmem:[%s0 + $0x60] sm:$0xff]
    %v25 = vld [vmem:[%s0 + $0x68] sm:$0xff]
    %v26 = vld [vmem:[%s0 + $0x70] sm:$0xff]
    %v27 = vld [vmem:[%s0 + $0x78] sm:$0xff]
    %v28 = vld [vmem:[%s1] sm:$0xff]
    %vm29 = vcmask 64512
    %v31 = vsel %vm29, %v12, 0
    %v34 = vsel %vm29, %v13, 0
    %v37 = vsel %vm29, %v14, 0
    %v40 = vsel %vm29, %v15, 0
    %v43 = vsel %vm29, %v16, 0
    %v46 = vsel %vm29, %v17, 0
    %v49 = vsel %vm29, %v18, 0
    %v52 = vsel %vm29, %v19, 0
    %v55 = vsel %vm29, %v20, 0
    %v58 = vsel %vm29, %v21, 0
    %v61 = vsel %vm29, %v22, 0
    %v64 = vsel %vm29, %v23, 0
    %v67 = vsel %vm29, %v24, 0
    %v70 = vsel %vm29, %v25, 0
    %v73 = vsel %vm29, %v26, 0
    %v76 = vsel %vm29, %v27, 0
    %78 = vmatprep.subr.mxu0 0.0
    %79 = vmatpush1.msra.mxu0 0.0
    %80 = vmatprep.subr.mxu0 0.0
    %81 = vmatpush1.msra.mxu0 0.0
    %82 = vmatprep.subr.mxu0 0.0
    %83 = vmatpush1.msra.mxu0 0.0
    %84 = vmatprep.subr.mxu0 0.0
    %85 = vmatpush1.msra.mxu0 0.0
    %86 = vmatprep.subr.mxu0 0.0
    %87 = vmatpush1.msra.mxu0 0.0
    %88 = vmatprep.subr.mxu0 0.0
    %89 = vmatpush1.msra.mxu0 0.0
    %90 = vmatprep.subr.mxu0 0.0
    %91 = vmatpush1.msra.mxu0 0.0
    %92 = vmatprep.subr.mxu0 0.0
    %93 = vmatpush1.msra.mxu0 0.0
    %94 = vmatprep.subr.mxu0 0.0
    %95 = vmatpush1.msra.mxu0 0.0
    %96 = vmatprep.subr.mxu0 0.0
    %97 = vmatpush1.msra.mxu0 0.0
    %98 = vmatprep.subr.mxu0 0.0
    %99 = vmatpush1.msra.mxu0 0.0
    %100 = vmatprep.subr.mxu0 0.0
    %101 = vmatpush1.msra.mxu0 0.0
    %102 = vmatprep.subr.mxu0 0.0
    %103 = vmatpush1.msra.mxu0 0.0
    %104 = vmatprep.subr.mxu0 0.0
    %105 = vmatpush1.msra.mxu0 0.0
    %106 = vmatprep.subr.mxu0 0.0
    %107 = vmatpush1.msra.mxu0 0.0
    %108 = vmatprep.subr.mxu0 0.0
    %109 = vmatpush1.msra.mxu0 %v28
    %110 = vmatprep.subr.mxu0 0.0
    %111 = vmatpush2.msra.mxu0 0.0
    %112 = vmatprep.subr.mxu0 0.0
    %113 = vmatpush2.msra.mxu0 0.0
    %114 = vmatprep.subr.mxu0 0.0
    %115 = vmatpush2.msra.mxu0 0.0
    %116 = vmatprep.subr.mxu0 0.0
    %117 = vmatpush2.msra.mxu0 0.0
    %118 = vmatprep.subr.mxu0 0.0
    %119 = vmatpush2.msra.mxu0 0.0
    %120 = vmatprep.subr.mxu0 0.0
    %121 = vmatpush2.msra.mxu0 0.0
    %122 = vmatprep.subr.mxu0 0.0
    %123 = vmatpush2.msra.mxu0 0.0
    %124 = vmatprep.subr.mxu0 0.0
    %125 = vmatpush2.msra.mxu0 0.0
    %126 = vmatprep.subr.mxu0 0.0
    %127 = vmatpush2.msra.mxu0 0.0
    %128 = vmatprep.subr.mxu0 0.0
    %129 = vmatpush2.msra.mxu0 0.0
    %130 = vmatprep.subr.mxu0 0.0
    %131 = vmatpush2.msra.mxu0 0.0
    %132 = vmatprep.subr.mxu0 0.0
    %133 = vmatpush2.msra.mxu0 0.0
    %134 = vmatprep.subr.mxu0 0.0
    %135 = vmatpush2.msra.mxu0 0.0
    %136 = vmatprep.subr.mxu0 0.0
    %137 = vmatpush2.msra.mxu0 0.0
    %138 = vmatprep.subr.mxu0 0.0
    %139 = vmatpush2.msra.mxu0 0.0
    %140 = vmatprep.subr.mxu0 0.0
    %141 = vmatpush2.msra.mxu0 0.0
    %142 = vmatprep.mubr.f32.mxu0 0.0
    %143 = vmatmul.mubr.f32.gmra.mxu0 %v31
    %v144 = vpop.f32.mrf.mxu0
    %v145 = vadd.f32 0.0, %v144
    %v146 = vpop.f32.mrf.mxu0
    %147 = vmatprep.mubr.f32.mxu0 0.0
    %148 = vmatmul.mubr.f32.gmra.mxu0 %v34
    %v149 = vpop.f32.mrf.mxu0
    %v150 = vadd.f32 0.0, %v149
    %v151 = vpop.f32.mrf.mxu0
    %152 = vmatprep.mubr.f32.mxu0 0.0
    %153 = vmatmul.mubr.f32.gmra.mxu0 %v37
    %v154 = vpop.f32.mrf.mxu0
    %v155 = vadd.f32 0.0, %v154
    %v156 = vpop.f32.mrf.mxu0
    %157 = vmatprep.mubr.f32.mxu0 0.0
    %158 = vmatmul.mubr.f32.gmra.mxu0 %v40
    %v159 = vpop.f32.mrf.mxu0
    %v160 = vadd.f32 0.0, %v159
    %v161 = vpop.f32.mrf.mxu0
    %162 = vmatprep.mubr.f32.mxu0 0.0
    %163 = vmatmul.mubr.f32.gmra.mxu0 %v43
    %v164 = vpop.f32.mrf.mxu0
    %v165 = vadd.f32 0.0, %v164
    %v166 = vpop.f32.mrf.mxu0
    %167 = vmatprep.mubr.f32.mxu0 0.0
    %168 = vmatmul.mubr.f32.gmra.mxu0 %v46
    %v169 = vpop.f32.mrf.mxu0
    %v170 = vadd.f32 0.0, %v169
    %v171 = vpop.f32.mrf.mxu0
    %172 = vmatprep.mubr.f32.mxu0 0.0
    %173 = vmatmul.mubr.f32.gmra.mxu0 %v49
    %v174 = vpop.f32.mrf.mxu0
    %v175 = vadd.f32 0.0, %v174
    %v176 = vpop.f32.mrf.mxu0
    %177 = vmatprep.mubr.f32.mxu0 0.0
    %178 = vmatmul.mubr.f32.gmra.mxu0 %v52
    %v179 = vpop.f32.mrf.mxu0
    %v180 = vadd.f32 0.0, %v179
    %v181 = vpop.f32.mrf.mxu0
    %182 = vmatprep.mubr.f32.mxu0 0.0
    %183 = vmatmul.mubr.f32.gmra.mxu0 %v55
    %v184 = vpop.f32.mrf.mxu0
    %v185 = vadd.f32 0.0, %v184
    %v186 = vpop.f32.mrf.mxu0
    %187 = vmatprep.mubr.f32.mxu0 0.0
    %188 = vmatmul.mubr.f32.gmra.mxu0 %v58
    %v189 = vpop.f32.mrf.mxu0
    %v190 = vadd.f32 0.0, %v189
    %v191 = vpop.f32.mrf.mxu0
    %192 = vmatprep.mubr.f32.mxu0 0.0
    %193 = vmatmul.mubr.f32.gmra.mxu0 %v61
    %v194 = vpop.f32.mrf.mxu0
    %v195 = vadd.f32 0.0, %v194
    %v196 = vpop.f32.mrf.mxu0
    %197 = vmatprep.mubr.f32.mxu0 0.0
    %198 = vmatmul.mubr.f32.gmra.mxu0 %v64
    %v199 = vpop.f32.mrf.mxu0
    %v200 = vadd.f32 0.0, %v199
    %v201 = vpop.f32.mrf.mxu0
    %202 = vmatprep.mubr.f32.mxu0 0.0
    %203 = vmatmul.mubr.f32.gmra.mxu0 %v67
    %v204 = vpop.f32.mrf.mxu0
    %v205 = vadd.f32 0.0, %v204
    %v206 = vpop.f32.mrf.mxu0
    %207 = vmatprep.mubr.f32.mxu0 0.0
    %208 = vmatmul.mubr.f32.gmra.mxu0 %v70
    %v209 = vpop.f32.mrf.mxu0
    %v210 = vadd.f32 0.0, %v209
    %v211 = vpop.f32.mrf.mxu0
    %212 = vmatprep.mubr.f32.mxu0 0.0
    %213 = vmatmul.mubr.f32.gmra.mxu0 %v73
    %v214 = vpop.f32.mrf.mxu0
    %v215 = vadd.f32 0.0, %v214
    %v216 = vpop.f32.mrf.mxu0
    %217 = vmatprep.mubr.f32.mxu0 0.0
    %218 = vmatmul.mubr.f32.gmra.mxu0 %v76
    %v219 = vpop.f32.mrf.mxu0
    %v220 = vadd.f32 0.0, %v219
    %v221 = vpop.f32.mrf.mxu0
    %222 = vdwg.mxu0
    %224 = vrot.lane.b32.xlu0 %v145, 120
    %v225 = vpop.permute.xlu0 %224
    %v226 = vsel %vm29, %v145, 0
    %v228 = vsel %vm29, %v225, 0
    %230 = vmatprep.subr.mxu0 0.0
    %231 = vmatpush1.xpose.msra.mxu0 0.0
    %232 = vmatprep.subr.mxu0 0.0
    %233 = vmatpush1.xpose.msra.mxu0 0.0
    %234 = vmatprep.subr.mxu0 0.0
    %235 = vmatpush1.xpose.msra.mxu0 0.0
    %236 = vmatprep.subr.mxu0 0.0
    %237 = vmatpush1.xpose.msra.mxu0 0.0
    %238 = vmatprep.subr.mxu0 0.0
    %239 = vmatpush1.xpose.msra.mxu0 0.0
    %240 = vmatprep.subr.mxu0 0.0
    %241 = vmatpush1.xpose.msra.mxu0 0.0
    %242 = vmatprep.subr.mxu0 0.0
    %243 = vmatpush1.xpose.msra.mxu0 0.0
    %244 = vmatprep.subr.mxu0 0.0
    %245 = vmatpush1.xpose.msra.mxu0 0.0
    %246 = vmatprep.subr.mxu0 0.0
    %247 = vmatpush1.xpose.msra.mxu0 0.0
    %248 = vmatprep.subr.mxu0 0.0
    %249 = vmatpush1.xpose.msra.mxu0 0.0
    %250 = vmatprep.subr.mxu0 0.0
    %251 = vmatpush1.xpose.msra.mxu0 0.0
    %252 = vmatprep.subr.mxu0 0.0
    %253 = vmatpush1.xpose.msra.mxu0 0.0
    %254 = vmatprep.subr.mxu0 0.0
    %255 = vmatpush1.xpose.msra.mxu0 0.0
    %256 = vmatprep.subr.mxu0 0.0
    %257 = vmatpush1.xpose.msra.mxu0 0.0
    %258 = vmatprep.subr.mxu0 0.0
    %259 = vmatpush1.xpose.msra.mxu0 0.0
    %260 = vmatprep.subr.mxu0 0.0
    %261 = vmatpush1.xpose.msra.mxu0 %v228
    %262 = vmatprep.subr.mxu0 0.0
    %263 = vmatpush2.xpose.msra.mxu0 0.0
    %264 = vmatprep.subr.mxu0 0.0
    %265 = vmatpush2.xpose.msra.mxu0 0.0
    %266 = vmatprep.subr.mxu0 0.0
    %267 = vmatpush2.xpose.msra.mxu0 0.0
    %268 = vmatprep.subr.mxu0 0.0
    %269 = vmatpush2.xpose.msra.mxu0 0.0
    %270 = vmatprep.subr.mxu0 0.0
    %271 = vmatpush2.xpose.msra.mxu0 0.0
    %272 = vmatprep.subr.mxu0 0.0
    %273 = vmatpush2.xpose.msra.mxu0 0.0
    %274 = vmatprep.subr.mxu0 0.0
    %275 = vmatpush2.xpose.msra.mxu0 0.0
    %276 = vmatprep.subr.mxu0 0.0
    %277 = vmatpush2.xpose.msra.mxu0 0.0
    %278 = vmatprep.subr.mxu0 0.0
    %279 = vmatpush2.xpose.msra.mxu0 0.0
    %280 = vmatprep.subr.mxu0 0.0
    %281 = vmatpush2.xpose.msra.mxu0 0.0
    %282 = vmatprep.subr.mxu0 0.0
    %283 = vmatpush2.xpose.msra.mxu0 0.0
    %284 = vmatprep.subr.mxu0 0.0
    %285 = vmatpush2.xpose.msra.mxu0 0.0
    %286 = vmatprep.subr.mxu0 0.0
    %287 = vmatpush2.xpose.msra.mxu0 0.0
    %288 = vmatprep.subr.mxu0 0.0
    %289 = vmatpush2.xpose.msra.mxu0 0.0
    %290 = vmatprep.subr.mxu0 0.0
    %291 = vmatpush2.xpose.msra.mxu0 0.0
    %292 = vmatprep.subr.mxu0 0.0
    %293 = vmatpush2.xpose.msra.mxu0 0.0
    %294 = vmatprep.mubr.f32.mxu0 0.0
    %295 = vmatmul.mubr.f32.gmra.mxu0 %v226
    %v296 = vpop.f32.mrf.mxu0
    %v297 = vadd.f32 0.0, %v296
    %v298 = vpop.f32.mrf.mxu0
    %299 = vdwg.mxu0
    %301 = vrot.lane.b32.xlu0 %v150, 120
    %v302 = vpop.permute.xlu0 %301
    %v303 = vsel %vm29, %v150, 0
    %v305 = vsel %vm29, %v302, 0
    %307 = vmatprep.subr.mxu0 0.0
    %308 = vmatpush1.xpose.msra.mxu0 0.0
    %309 = vmatprep.subr.mxu0 0.0
    %310 = vmatpush1.xpose.msra.mxu0 0.0
    %311 = vmatprep.subr.mxu0 0.0
    %312 = vmatpush1.xpose.msra.mxu0 0.0
    %313 = vmatprep.subr.mxu0 0.0
    %314 = vmatpush1.xpose.msra.mxu0 0.0
    %315 = vmatprep.subr.mxu0 0.0
    %316 = vmatpush1.xpose.msra.mxu0 0.0
    %317 = vmatprep.subr.mxu0 0.0
    %318 = vmatpush1.xpose.msra.mxu0 0.0
    %319 = vmatprep.subr.mxu0 0.0
    %320 = vmatpush1.xpose.msra.mxu0 0.0
    %321 = vmatprep.subr.mxu0 0.0
    %322 = vmatpush1.xpose.msra.mxu0 0.0
    %323 = vmatprep.subr.mxu0 0.0
    %324 = vmatpush1.xpose.msra.mxu0 0.0
    %325 = vmatprep.subr.mxu0 0.0
    %326 = vmatpush1.xpose.msra.mxu0 0.0
    %327 = vmatprep.subr.mxu0 0.0
    %328 = vmatpush1.xpose.msra.mxu0 0.0
    %329 = vmatprep.subr.mxu0 0.0
    %330 = vmatpush1.xpose.msra.mxu0 0.0
    %331 = vmatprep.subr.mxu0 0.0
    %332 = vmatpush1.xpose.msra.mxu0 0.0
    %333 = vmatprep.subr.mxu0 0.0
    %334 = vmatpush1.xpose.msra.mxu0 0.0
    %335 = vmatprep.subr.mxu0 0.0
    %336 = vmatpush1.xpose.msra.mxu0 0.0
    %337 = vmatprep.subr.mxu0 0.0
    %338 = vmatpush1.xpose.msra.mxu0 %v305
    %339 = vmatprep.subr.mxu0 0.0
    %340 = vmatpush2.xpose.msra.mxu0 0.0
    %341 = vmatprep.subr.mxu0 0.0
    %342 = vmatpush2.xpose.msra.mxu0 0.0
    %343 = vmatprep.subr.mxu0 0.0
    %344 = vmatpush2.xpose.msra.mxu0 0.0
    %345 = vmatprep.subr.mxu0 0.0
    %346 = vmatpush2.xpose.msra.mxu0 0.0
    %347 = vmatprep.subr.mxu0 0.0
    %348 = vmatpush2.xpose.msra.mxu0 0.0
    %349 = vmatprep.subr.mxu0 0.0
    %350 = vmatpush2.xpose.msra.mxu0 0.0
    %351 = vmatprep.subr.mxu0 0.0
    %352 = vmatpush2.xpose.msra.mxu0 0.0
    %353 = vmatprep.subr.mxu0 0.0
    %354 = vmatpush2.xpose.msra.mxu0 0.0
    %355 = vmatprep.subr.mxu0 0.0
    %356 = vmatpush2.xpose.msra.mxu0 0.0
    %357 = vmatprep.subr.mxu0 0.0
    %358 = vmatpush2.xpose.msra.mxu0 0.0
    %359 = vmatprep.subr.mxu0 0.0
    %360 = vmatpush2.xpose.msra.mxu0 0.0
    %361 = vmatprep.subr.mxu0 0.0
    %362 = vmatpush2.xpose.msra.mxu0 0.0
    %363 = vmatprep.subr.mxu0 0.0
    %364 = vmatpush2.xpose.msra.mxu0 0.0
    %365 = vmatprep.subr.mxu0 0.0
    %366 = vmatpush2.xpose.msra.mxu0 0.0
    %367 = vmatprep.subr.mxu0 0.0
    %368 = vmatpush2.xpose.msra.mxu0 0.0
    %369 = vmatprep.subr.mxu0 0.0
    %370 = vmatpush2.xpose.msra.mxu0 0.0
    %371 = vmatprep.mubr.f32.mxu0 0.0
    %372 = vmatmul.mubr.f32.gmra.mxu0 %v303
    %v373 = vpop.f32.mrf.mxu0
    %v374 = vadd.f32 0.0, %v373
    %v375 = vpop.f32.mrf.mxu0
    %376 = vdwg.mxu0
    %378 = vrot.lane.b32.xlu0 %v155, 120
    %v379 = vpop.permute.xlu0 %378
    %v380 = vsel %vm29, %v155, 0
    %v382 = vsel %vm29, %v379, 0
    %384 = vmatprep.subr.mxu0 0.0
    %385 = vmatpush1.xpose.msra.mxu0 0.0
    %386 = vmatprep.subr.mxu0 0.0
    %387 = vmatpush1.xpose.msra.mxu0 0.0
    %388 = vmatprep.subr.mxu0 0.0
    %389 = vmatpush1.xpose.msra.mxu0 0.0
    %390 = vmatprep.subr.mxu0 0.0
    %391 = vmatpush1.xpose.msra.mxu0 0.0
    %392 = vmatprep.subr.mxu0 0.0
    %393 = vmatpush1.xpose.msra.mxu0 0.0
    %394 = vmatprep.subr.mxu0 0.0
    %395 = vmatpush1.xpose.msra.mxu0 0.0
    %396 = vmatprep.subr.mxu0 0.0
    %397 = vmatpush1.xpose.msra.mxu0 0.0
    %398 = vmatprep.subr.mxu0 0.0
    %399 = vmatpush1.xpose.msra.mxu0 0.0
    %400 = vmatprep.subr.mxu0 0.0
    %401 = vmatpush1.xpose.msra.mxu0 0.0
    %402 = vmatprep.subr.mxu0 0.0
    %403 = vmatpush1.xpose.msra.mxu0 0.0
    %404 = vmatprep.subr.mxu0 0.0
    %405 = vmatpush1.xpose.msra.mxu0 0.0
    %406 = vmatprep.subr.mxu0 0.0
    %407 = vmatpush1.xpose.msra.mxu0 0.0
    %408 = vmatprep.subr.mxu0 0.0
    %409 = vmatpush1.xpose.msra.mxu0 0.0
    %410 = vmatprep.subr.mxu0 0.0
    %411 = vmatpush1.xpose.msra.mxu0 0.0
    %412 = vmatprep.subr.mxu0 0.0
    %413 = vmatpush1.xpose.msra.mxu0 0.0
    %414 = vmatprep.subr.mxu0 0.0
    %415 = vmatpush1.xpose.msra.mxu0 %v382
    %416 = vmatprep.subr.mxu0 0.0
    %417 = vmatpush2.xpose.msra.mxu0 0.0
    %418 = vmatprep.subr.mxu0 0.0
    %419 = vmatpush2.xpose.msra.mxu0 0.0
    %420 = vmatprep.subr.mxu0 0.0
    %421 = vmatpush2.xpose.msra.mxu0 0.0
    %422 = vmatprep.subr.mxu0 0.0
    %423 = vmatpush2.xpose.msra.mxu0 0.0
    %424 = vmatprep.subr.mxu0 0.0
    %425 = vmatpush2.xpose.msra.mxu0 0.0
    %426 = vmatprep.subr.mxu0 0.0
    %427 = vmatpush2.xpose.msra.mxu0 0.0
    %428 = vmatprep.subr.mxu0 0.0
    %429 = vmatpush2.xpose.msra.mxu0 0.0
    %430 = vmatprep.subr.mxu0 0.0
    %431 = vmatpush2.xpose.msra.mxu0 0.0
    %432 = vmatprep.subr.mxu0 0.0
    %433 = vmatpush2.xpose.msra.mxu0 0.0
    %434 = vmatprep.subr.mxu0 0.0
    %435 = vmatpush2.xpose.msra.mxu0 0.0
    %436 = vmatprep.subr.mxu0 0.0
    %437 = vmatpush2.xpose.msra.mxu0 0.0
    %438 = vmatprep.subr.mxu0 0.0
    %439 = vmatpush2.xpose.msra.mxu0 0.0
    %440 = vmatprep.subr.mxu0 0.0
    %441 = vmatpush2.xpose.msra.mxu0 0.0
    %442 = vmatprep.subr.mxu0 0.0
    %443 = vmatpush2.xpose.msra.mxu0 0.0
    %444 = vmatprep.subr.mxu0 0.0
    %445 = vmatpush2.xpose.msra.mxu0 0.0
    %446 = vmatprep.subr.mxu0 0.0
    %447 = vmatpush2.xpose.msra.mxu0 0.0
    %448 = vmatprep.mubr.f32.mxu0 0.0
    %449 = vmatmul.mubr.f32.gmra.mxu0 %v380
    %v450 = vpop.f32.mrf.mxu0
    %v451 = vadd.f32 0.0, %v450
    %v452 = vpop.f32.mrf.mxu0
    %453 = vdwg.mxu0
    %455 = vrot.lane.b32.xlu0 %v160, 120
    %v456 = vpop.permute.xlu0 %455
    %v457 = vsel %vm29, %v160, 0
    %v459 = vsel %vm29, %v456, 0
    %461 = vmatprep.subr.mxu0 0.0
    %462 = vmatpush1.xpose.msra.mxu0 0.0
    %463 = vmatprep.subr.mxu0 0.0
    %464 = vmatpush1.xpose.msra.mxu0 0.0
    %465 = vmatprep.subr.mxu0 0.0
    %466 = vmatpush1.xpose.msra.mxu0 0.0
    %467 = vmatprep.subr.mxu0 0.0
    %468 = vmatpush1.xpose.msra.mxu0 0.0
    %469 = vmatprep.subr.mxu0 0.0
    %470 = vmatpush1.xpose.msra.mxu0 0.0
    %471 = vmatprep.subr.mxu0 0.0
    %472 = vmatpush1.xpose.msra.mxu0 0.0
    %473 = vmatprep.subr.mxu0 0.0
    %474 = vmatpush1.xpose.msra.mxu0 0.0
    %475 = vmatprep.subr.mxu0 0.0
    %476 = vmatpush1.xpose.msra.mxu0 0.0
    %477 = vmatprep.subr.mxu0 0.0
    %478 = vmatpush1.xpose.msra.mxu0 0.0
    %479 = vmatprep.subr.mxu0 0.0
    %480 = vmatpush1.xpose.msra.mxu0 0.0
    %481 = vmatprep.subr.mxu0 0.0
    %482 = vmatpush1.xpose.msra.mxu0 0.0
    %483 = vmatprep.subr.mxu0 0.0
    %484 = vmatpush1.xpose.msra.mxu0 0.0
    %485 = vmatprep.subr.mxu0 0.0
    %486 = vmatpush1.xpose.msra.mxu0 0.0
    %487 = vmatprep.subr.mxu0 0.0
    %488 = vmatpush1.xpose.msra.mxu0 0.0
    %489 = vmatprep.subr.mxu0 0.0
    %490 = vmatpush1.xpose.msra.mxu0 0.0
    %491 = vmatprep.subr.mxu0 0.0
    %492 = vmatpush1.xpose.msra.mxu0 %v459
    %493 = vmatprep.subr.mxu0 0.0
    %494 = vmatpush2.xpose.msra.mxu0 0.0
    %495 = vmatprep.subr.mxu0 0.0
    %496 = vmatpush2.xpose.msra.mxu0 0.0
    %497 = vmatprep.subr.mxu0 0.0
    %498 = vmatpush2.xpose.msra.mxu0 0.0
    %499 = vmatprep.subr.mxu0 0.0
    %500 = vmatpush2.xpose.msra.mxu0 0.0
    %501 = vmatprep.subr.mxu0 0.0
    %502 = vmatpush2.xpose.msra.mxu0 0.0
    %503 = vmatprep.subr.mxu0 0.0
    %504 = vmatpush2.xpose.msra.mxu0 0.0
    %505 = vmatprep.subr.mxu0 0.0
    %506 = vmatpush2.xpose.msra.mxu0 0.0
    %507 = vmatprep.subr.mxu0 0.0
    %508 = vmatpush2.xpose.msra.mxu0 0.0
    %509 = vmatprep.subr.mxu0 0.0
    %510 = vmatpush2.xpose.msra.mxu0 0.0
    %511 = vmatprep.subr.mxu0 0.0
    %512 = vmatpush2.xpose.msra.mxu0 0.0
    %513 = vmatprep.subr.mxu0 0.0
    %514 = vmatpush2.xpose.msra.mxu0 0.0
    %515 = vmatprep.subr.mxu0 0.0
    %516 = vmatpush2.xpose.msra.mxu0 0.0
    %517 = vmatprep.subr.mxu0 0.0
    %518 = vmatpush2.xpose.msra.mxu0 0.0
    %519 = vmatprep.subr.mxu0 0.0
    %520 = vmatpush2.xpose.msra.mxu0 0.0
    %521 = vmatprep.subr.mxu0 0.0
    %522 = vmatpush2.xpose.msra.mxu0 0.0
    %523 = vmatprep.subr.mxu0 0.0
    %524 = vmatpush2.xpose.msra.mxu0 0.0
    %525 = vmatprep.mubr.f32.mxu0 0.0
    %526 = vmatmul.mubr.f32.gmra.mxu0 %v457
    %v527 = vpop.f32.mrf.mxu0
    %v528 = vadd.f32 0.0, %v527
    %v529 = vpop.f32.mrf.mxu0
    %530 = vdwg.mxu0
    %532 = vrot.lane.b32.xlu0 %v165, 120
    %v533 = vpop.permute.xlu0 %532
    %v534 = vsel %vm29, %v165, 0
    %v536 = vsel %vm29, %v533, 0
    %538 = vmatprep.subr.mxu0 0.0
    %539 = vmatpush1.xpose.msra.mxu0 0.0
    %540 = vmatprep.subr.mxu0 0.0
    %541 = vmatpush1.xpose.msra.mxu0 0.0
    %542 = vmatprep.subr.mxu0 0.0
    %543 = vmatpush1.xpose.msra.mxu0 0.0
    %544 = vmatprep.subr.mxu0 0.0
    %545 = vmatpush1.xpose.msra.mxu0 0.0
    %546 = vmatprep.subr.mxu0 0.0
    %547 = vmatpush1.xpose.msra.mxu0 0.0
    %548 = vmatprep.subr.mxu0 0.0
    %549 = vmatpush1.xpose.msra.mxu0 0.0
    %550 = vmatprep.subr.mxu0 0.0
    %551 = vmatpush1.xpose.msra.mxu0 0.0
    %552 = vmatprep.subr.mxu0 0.0
    %553 = vmatpush1.xpose.msra.mxu0 0.0
    %554 = vmatprep.subr.mxu0 0.0
    %555 = vmatpush1.xpose.msra.mxu0 0.0
    %556 = vmatprep.subr.mxu0 0.0
    %557 = vmatpush1.xpose.msra.mxu0 0.0
    %558 = vmatprep.subr.mxu0 0.0
    %559 = vmatpush1.xpose.msra.mxu0 0.0
    %560 = vmatprep.subr.mxu0 0.0
    %561 = vmatpush1.xpose.msra.mxu0 0.0
    %562 = vmatprep.subr.mxu0 0.0
    %563 = vmatpush1.xpose.msra.mxu0 0.0
    %564 = vmatprep.subr.mxu0 0.0
    %565 = vmatpush1.xpose.msra.mxu0 0.0
    %566 = vmatprep.subr.mxu0 0.0
    %567 = vmatpush1.xpose.msra.mxu0 0.0
    %568 = vmatprep.subr.mxu0 0.0
    %569 = vmatpush1.xpose.msra.mxu0 %v536
    %570 = vmatprep.subr.mxu0 0.0
    %571 = vmatpush2.xpose.msra.mxu0 0.0
    %572 = vmatprep.subr.mxu0 0.0
    %573 = vmatpush2.xpose.msra.mxu0 0.0
    %574 = vmatprep.subr.mxu0 0.0
    %575 = vmatpush2.xpose.msra.mxu0 0.0
    %576 = vmatprep.subr.mxu0 0.0
    %577 = vmatpush2.xpose.msra.mxu0 0.0
    %578 = vmatprep.subr.mxu0 0.0
    %579 = vmatpush2.xpose.msra.mxu0 0.0
    %580 = vmatprep.subr.mxu0 0.0
    %581 = vmatpush2.xpose.msra.mxu0 0.0
    %582 = vmatprep.subr.mxu0 0.0
    %583 = vmatpush2.xpose.msra.mxu0 0.0
    %584 = vmatprep.subr.mxu0 0.0
    %585 = vmatpush2.xpose.msra.mxu0 0.0
    %586 = vmatprep.subr.mxu0 0.0
    %587 = vmatpush2.xpose.msra.mxu0 0.0
    %588 = vmatprep.subr.mxu0 0.0
    %589 = vmatpush2.xpose.msra.mxu0 0.0
    %590 = vmatprep.subr.mxu0 0.0
    %591 = vmatpush2.xpose.msra.mxu0 0.0
    %592 = vmatprep.subr.mxu0 0.0
    %593 = vmatpush2.xpose.msra.mxu0 0.0
    %594 = vmatprep.subr.mxu0 0.0
    %595 = vmatpush2.xpose.msra.mxu0 0.0
    %596 = vmatprep.subr.mxu0 0.0
    %597 = vmatpush2.xpose.msra.mxu0 0.0
    %598 = vmatprep.subr.mxu0 0.0
    %599 = vmatpush2.xpose.msra.mxu0 0.0
    %600 = vmatprep.subr.mxu0 0.0
    %601 = vmatpush2.xpose.msra.mxu0 0.0
    %602 = vmatprep.mubr.f32.mxu0 0.0
    %603 = vmatmul.mubr.f32.gmra.mxu0 %v534
    %v604 = vpop.f32.mrf.mxu0
    %v605 = vadd.f32 0.0, %v604
    %v606 = vpop.f32.mrf.mxu0
    %607 = vdwg.mxu0
    %609 = vrot.lane.b32.xlu0 %v170, 120
    %v610 = vpop.permute.xlu0 %609
    %v611 = vsel %vm29, %v170, 0
    %v613 = vsel %vm29, %v610, 0
    %615 = vmatprep.subr.mxu0 0.0
    %616 = vmatpush1.xpose.msra.mxu0 0.0
    %617 = vmatprep.subr.mxu0 0.0
    %618 = vmatpush1.xpose.msra.mxu0 0.0
    %619 = vmatprep.subr.mxu0 0.0
    %620 = vmatpush1.xpose.msra.mxu0 0.0
    %621 = vmatprep.subr.mxu0 0.0
    %622 = vmatpush1.xpose.msra.mxu0 0.0
    %623 = vmatprep.subr.mxu0 0.0
    %624 = vmatpush1.xpose.msra.mxu0 0.0
    %625 = vmatprep.subr.mxu0 0.0
    %626 = vmatpush1.xpose.msra.mxu0 0.0
    %627 = vmatprep.subr.mxu0 0.0
    %628 = vmatpush1.xpose.msra.mxu0 0.0
    %629 = vmatprep.subr.mxu0 0.0
    %630 = vmatpush1.xpose.msra.mxu0 0.0
    %631 = vmatprep.subr.mxu0 0.0
    %632 = vmatpush1.xpose.msra.mxu0 0.0
    %633 = vmatprep.subr.mxu0 0.0
    %634 = vmatpush1.xpose.msra.mxu0 0.0
    %635 = vmatprep.subr.mxu0 0.0
    %636 = vmatpush1.xpose.msra.mxu0 0.0
    %637 = vmatprep.subr.mxu0 0.0
    %638 = vmatpush1.xpose.msra.mxu0 0.0
    %639 = vmatprep.subr.mxu0 0.0
    %640 = vmatpush1.xpose.msra.mxu0 0.0
    %641 = vmatprep.subr.mxu0 0.0
    %642 = vmatpush1.xpose.msra.mxu0 0.0
    %643 = vmatprep.subr.mxu0 0.0
    %644 = vmatpush1.xpose.msra.mxu0 0.0
    %645 = vmatprep.subr.mxu0 0.0
    %646 = vmatpush1.xpose.msra.mxu0 %v613
    %647 = vmatprep.subr.mxu0 0.0
    %648 = vmatpush2.xpose.msra.mxu0 0.0
    %649 = vmatprep.subr.mxu0 0.0
    %650 = vmatpush2.xpose.msra.mxu0 0.0
    %651 = vmatprep.subr.mxu0 0.0
    %652 = vmatpush2.xpose.msra.mxu0 0.0
    %653 = vmatprep.subr.mxu0 0.0
    %654 = vmatpush2.xpose.msra.mxu0 0.0
    %655 = vmatprep.subr.mxu0 0.0
    %656 = vmatpush2.xpose.msra.mxu0 0.0
    %657 = vmatprep.subr.mxu0 0.0
    %658 = vmatpush2.xpose.msra.mxu0 0.0
    %659 = vmatprep.subr.mxu0 0.0
    %660 = vmatpush2.xpose.msra.mxu0 0.0
    %661 = vmatprep.subr.mxu0 0.0
    %662 = vmatpush2.xpose.msra.mxu0 0.0
    %663 = vmatprep.subr.mxu0 0.0
    %664 = vmatpush2.xpose.msra.mxu0 0.0
    %665 = vmatprep.subr.mxu0 0.0
    %666 = vmatpush2.xpose.msra.mxu0 0.0
    %667 = vmatprep.subr.mxu0 0.0
    %668 = vmatpush2.xpose.msra.mxu0 0.0
    %669 = vmatprep.subr.mxu0 0.0
    %670 = vmatpush2.xpose.msra.mxu0 0.0
    %671 = vmatprep.subr.mxu0 0.0
    %672 = vmatpush2.xpose.msra.mxu0 0.0
    %673 = vmatprep.subr.mxu0 0.0
    %674 = vmatpush2.xpose.msra.mxu0 0.0
    %675 = vmatprep.subr.mxu0 0.0
    %676 = vmatpush2.xpose.msra.mxu0 0.0
    %677 = vmatprep.subr.mxu0 0.0
    %678 = vmatpush2.xpose.msra.mxu0 0.0
    %679 = vmatprep.mubr.f32.mxu0 0.0
    %680 = vmatmul.mubr.f32.gmra.mxu0 %v611
    %v681 = vpop.f32.mrf.mxu0
    %v682 = vadd.f32 0.0, %v681
    %v683 = vpop.f32.mrf.mxu0
    %684 = vdwg.mxu0
    %686 = vrot.lane.b32.xlu0 %v175, 120
    %v687 = vpop.permute.xlu0 %686
    %v688 = vsel %vm29, %v175, 0
    %v690 = vsel %vm29, %v687, 0
    %692 = vmatprep.subr.mxu0 0.0
    %693 = vmatpush1.xpose.msra.mxu0 0.0
    %694 = vmatprep.subr.mxu0 0.0
    %695 = vmatpush1.xpose.msra.mxu0 0.0
    %696 = vmatprep.subr.mxu0 0.0
    %697 = vmatpush1.xpose.msra.mxu0 0.0
    %698 = vmatprep.subr.mxu0 0.0
    %699 = vmatpush1.xpose.msra.mxu0 0.0
    %700 = vmatprep.subr.mxu0 0.0
    %701 = vmatpush1.xpose.msra.mxu0 0.0
    %702 = vmatprep.subr.mxu0 0.0
    %703 = vmatpush1.xpose.msra.mxu0 0.0
    %704 = vmatprep.subr.mxu0 0.0
    %705 = vmatpush1.xpose.msra.mxu0 0.0
    %706 = vmatprep.subr.mxu0 0.0
    %707 = vmatpush1.xpose.msra.mxu0 0.0
    %708 = vmatprep.subr.mxu0 0.0
    %709 = vmatpush1.xpose.msra.mxu0 0.0
    %710 = vmatprep.subr.mxu0 0.0
    %711 = vmatpush1.xpose.msra.mxu0 0.0
    %712 = vmatprep.subr.mxu0 0.0
    %713 = vmatpush1.xpose.msra.mxu0 0.0
    %714 = vmatprep.subr.mxu0 0.0
    %715 = vmatpush1.xpose.msra.mxu0 0.0
    %716 = vmatprep.subr.mxu0 0.0
    %717 = vmatpush1.xpose.msra.mxu0 0.0
    %718 = vmatprep.subr.mxu0 0.0
    %719 = vmatpush1.xpose.msra.mxu0 0.0
    %720 = vmatprep.subr.mxu0 0.0
    %721 = vmatpush1.xpose.msra.mxu0 0.0
    %722 = vmatprep.subr.mxu0 0.0
    %723 = vmatpush1.xpose.msra.mxu0 %v690
    %724 = vmatprep.subr.mxu0 0.0
    %725 = vmatpush2.xpose.msra.mxu0 0.0
    %726 = vmatprep.subr.mxu0 0.0
    %727 = vmatpush2.xpose.msra.mxu0 0.0
    %728 = vmatprep.subr.mxu0 0.0
    %729 = vmatpush2.xpose.msra.mxu0 0.0
    %730 = vmatprep.subr.mxu0 0.0
    %731 = vmatpush2.xpose.msra.mxu0 0.0
    %732 = vmatprep.subr.mxu0 0.0
    %733 = vmatpush2.xpose.msra.mxu0 0.0
    %734 = vmatprep.subr.mxu0 0.0
    %735 = vmatpush2.xpose.msra.mxu0 0.0
    %736 = vmatprep.subr.mxu0 0.0
    %737 = vmatpush2.xpose.msra.mxu0 0.0
    %738 = vmatprep.subr.mxu0 0.0
    %739 = vmatpush2.xpose.msra.mxu0 0.0
    %740 = vmatprep.subr.mxu0 0.0
    %741 = vmatpush2.xpose.msra.mxu0 0.0
    %742 = vmatprep.subr.mxu0 0.0
    %743 = vmatpush2.xpose.msra.mxu0 0.0
    %744 = vmatprep.subr.mxu0 0.0
    %745 = vmatpush2.xpose.msra.mxu0 0.0
    %746 = vmatprep.subr.mxu0 0.0
    %747 = vmatpush2.xpose.msra.mxu0 0.0
    %748 = vmatprep.subr.mxu0 0.0
    %749 = vmatpush2.xpose.msra.mxu0 0.0
    %750 = vmatprep.subr.mxu0 0.0
    %751 = vmatpush2.xpose.msra.mxu0 0.0
    %752 = vmatprep.subr.mxu0 0.0
    %753 = vmatpush2.xpose.msra.mxu0 0.0
    %754 = vmatprep.subr.mxu0 0.0
    %755 = vmatpush2.xpose.msra.mxu0 0.0
    %756 = vmatprep.mubr.f32.mxu0 0.0
    %757 = vmatmul.mubr.f32.gmra.mxu0 %v688
    %v758 = vpop.f32.mrf.mxu0
    %v759 = vadd.f32 0.0, %v758
    %v760 = vpop.f32.mrf.mxu0
    %761 = vdwg.mxu0
    %763 = vrot.lane.b32.xlu0 %v180, 120
    %v764 = vpop.permute.xlu0 %763
    %v765 = vsel %vm29, %v180, 0
    %v767 = vsel %vm29, %v764, 0
    %769 = vmatprep.subr.mxu0 0.0
    %770 = vmatpush1.xpose.msra.mxu0 0.0
    %771 = vmatprep.subr.mxu0 0.0
    %772 = vmatpush1.xpose.msra.mxu0 0.0
    %773 = vmatprep.subr.mxu0 0.0
    %774 = vmatpush1.xpose.msra.mxu0 0.0
    %775 = vmatprep.subr.mxu0 0.0
    %776 = vmatpush1.xpose.msra.mxu0 0.0
    %777 = vmatprep.subr.mxu0 0.0
    %778 = vmatpush1.xpose.msra.mxu0 0.0
    %779 = vmatprep.subr.mxu0 0.0
    %780 = vmatpush1.xpose.msra.mxu0 0.0
    %781 = vmatprep.subr.mxu0 0.0
    %782 = vmatpush1.xpose.msra.mxu0 0.0
    %783 = vmatprep.subr.mxu0 0.0
    %784 = vmatpush1.xpose.msra.mxu0 0.0
    %785 = vmatprep.subr.mxu0 0.0
    %786 = vmatpush1.xpose.msra.mxu0 0.0
    %787 = vmatprep.subr.mxu0 0.0
    %788 = vmatpush1.xpose.msra.mxu0 0.0
    %789 = vmatprep.subr.mxu0 0.0
    %790 = vmatpush1.xpose.msra.mxu0 0.0
    %791 = vmatprep.subr.mxu0 0.0
    %792 = vmatpush1.xpose.msra.mxu0 0.0
    %793 = vmatprep.subr.mxu0 0.0
    %794 = vmatpush1.xpose.msra.mxu0 0.0
    %795 = vmatprep.subr.mxu0 0.0
    %796 = vmatpush1.xpose.msra.mxu0 0.0
    %797 = vmatprep.subr.mxu0 0.0
    %798 = vmatpush1.xpose.msra.mxu0 0.0
    %799 = vmatprep.subr.mxu0 0.0
    %800 = vmatpush1.xpose.msra.mxu0 %v767
    %801 = vmatprep.subr.mxu0 0.0
    %802 = vmatpush2.xpose.msra.mxu0 0.0
    %803 = vmatprep.subr.mxu0 0.0
    %804 = vmatpush2.xpose.msra.mxu0 0.0
    %805 = vmatprep.subr.mxu0 0.0
    %806 = vmatpush2.xpose.msra.mxu0 0.0
    %807 = vmatprep.subr.mxu0 0.0
    %808 = vmatpush2.xpose.msra.mxu0 0.0
    %809 = vmatprep.subr.mxu0 0.0
    %810 = vmatpush2.xpose.msra.mxu0 0.0
    %811 = vmatprep.subr.mxu0 0.0
    %812 = vmatpush2.xpose.msra.mxu0 0.0
    %813 = vmatprep.subr.mxu0 0.0
    %814 = vmatpush2.xpose.msra.mxu0 0.0
    %815 = vmatprep.subr.mxu0 0.0
    %816 = vmatpush2.xpose.msra.mxu0 0.0
    %817 = vmatprep.subr.mxu0 0.0
    %818 = vmatpush2.xpose.msra.mxu0 0.0
    %819 = vmatprep.subr.mxu0 0.0
    %820 = vmatpush2.xpose.msra.mxu0 0.0
    %821 = vmatprep.subr.mxu0 0.0
    %822 = vmatpush2.xpose.msra.mxu0 0.0
    %823 = vmatprep.subr.mxu0 0.0
    %824 = vmatpush2.xpose.msra.mxu0 0.0
    %825 = vmatprep.subr.mxu0 0.0
    %826 = vmatpush2.xpose.msra.mxu0 0.0
    %827 = vmatprep.subr.mxu0 0.0
    %828 = vmatpush2.xpose.msra.mxu0 0.0
    %829 = vmatprep.subr.mxu0 0.0
    %830 = vmatpush2.xpose.msra.mxu0 0.0
    %831 = vmatprep.subr.mxu0 0.0
    %832 = vmatpush2.xpose.msra.mxu0 0.0
    %833 = vmatprep.mubr.f32.mxu0 0.0
    %834 = vmatmul.mubr.f32.gmra.mxu0 %v765
    %v835 = vpop.f32.mrf.mxu0
    %v836 = vadd.f32 0.0, %v835
    %v837 = vpop.f32.mrf.mxu0
    %838 = vdwg.mxu0
    %840 = vrot.lane.b32.xlu0 %v185, 120
    %v841 = vpop.permute.xlu0 %840
    %v842 = vsel %vm29, %v185, 0
    %v844 = vsel %vm29, %v841, 0
    %846 = vmatprep.subr.mxu0 0.0
    %847 = vmatpush1.xpose.msra.mxu0 0.0
    %848 = vmatprep.subr.mxu0 0.0
    %849 = vmatpush1.xpose.msra.mxu0 0.0
    %850 = vmatprep.subr.mxu0 0.0
    %851 = vmatpush1.xpose.msra.mxu0 0.0
    %852 = vmatprep.subr.mxu0 0.0
    %853 = vmatpush1.xpose.msra.mxu0 0.0
    %854 = vmatprep.subr.mxu0 0.0
    %855 = vmatpush1.xpose.msra.mxu0 0.0
    %856 = vmatprep.subr.mxu0 0.0
    %857 = vmatpush1.xpose.msra.mxu0 0.0
    %858 = vmatprep.subr.mxu0 0.0
    %859 = vmatpush1.xpose.msra.mxu0 0.0
    %860 = vmatprep.subr.mxu0 0.0
    %861 = vmatpush1.xpose.msra.mxu0 0.0
    %862 = vmatprep.subr.mxu0 0.0
    %863 = vmatpush1.xpose.msra.mxu0 0.0
    %864 = vmatprep.subr.mxu0 0.0
    %865 = vmatpush1.xpose.msra.mxu0 0.0
    %866 = vmatprep.subr.mxu0 0.0
    %867 = vmatpush1.xpose.msra.mxu0 0.0
    %868 = vmatprep.subr.mxu0 0.0
    %869 = vmatpush1.xpose.msra.mxu0 0.0
    %870 = vmatprep.subr.mxu0 0.0
    %871 = vmatpush1.xpose.msra.mxu0 0.0
    %872 = vmatprep.subr.mxu0 0.0
    %873 = vmatpush1.xpose.msra.mxu0 0.0
    %874 = vmatprep.subr.mxu0 0.0
    %875 = vmatpush1.xpose.msra.mxu0 0.0
    %876 = vmatprep.subr.mxu0 0.0
    %877 = vmatpush1.xpose.msra.mxu0 %v844
    %878 = vmatprep.subr.mxu0 0.0
    %879 = vmatpush2.xpose.msra.mxu0 0.0
    %880 = vmatprep.subr.mxu0 0.0
    %881 = vmatpush2.xpose.msra.mxu0 0.0
    %882 = vmatprep.subr.mxu0 0.0
    %883 = vmatpush2.xpose.msra.mxu0 0.0
    %884 = vmatprep.subr.mxu0 0.0
    %885 = vmatpush2.xpose.msra.mxu0 0.0
    %886 = vmatprep.subr.mxu0 0.0
    %887 = vmatpush2.xpose.msra.mxu0 0.0
    %888 = vmatprep.subr.mxu0 0.0
    %889 = vmatpush2.xpose.msra.mxu0 0.0
    %890 = vmatprep.subr.mxu0 0.0
    %891 = vmatpush2.xpose.msra.mxu0 0.0
    %892 = vmatprep.subr.mxu0 0.0
    %893 = vmatpush2.xpose.msra.mxu0 0.0
    %894 = vmatprep.subr.mxu0 0.0
    %895 = vmatpush2.xpose.msra.mxu0 0.0
    %896 = vmatprep.subr.mxu0 0.0
    %897 = vmatpush2.xpose.msra.mxu0 0.0
    %898 = vmatprep.subr.mxu0 0.0
    %899 = vmatpush2.xpose.msra.mxu0 0.0
    %900 = vmatprep.subr.mxu0 0.0
    %901 = vmatpush2.xpose.msra.mxu0 0.0
    %902 = vmatprep.subr.mxu0 0.0
    %903 = vmatpush2.xpose.msra.mxu0 0.0
    %904 = vmatprep.subr.mxu0 0.0
    %905 = vmatpush2.xpose.msra.mxu0 0.0
    %906 = vmatprep.subr.mxu0 0.0
    %907 = vmatpush2.xpose.msra.mxu0 0.0
    %908 = vmatprep.subr.mxu0 0.0
    %909 = vmatpush2.xpose.msra.mxu0 0.0
    %910 = vmatprep.mubr.f32.mxu0 0.0
    %911 = vmatmul.mubr.f32.gmra.mxu0 %v842
    %v912 = vpop.f32.mrf.mxu0
    %v913 = vadd.f32 0.0, %v912
    %v914 = vpop.f32.mrf.mxu0
    %915 = vdwg.mxu0
    %917 = vrot.lane.b32.xlu0 %v190, 120
    %v918 = vpop.permute.xlu0 %917
    %v919 = vsel %vm29, %v190, 0
    %v921 = vsel %vm29, %v918, 0
    %923 = vmatprep.subr.mxu0 0.0
    %924 = vmatpush1.xpose.msra.mxu0 0.0
    %925 = vmatprep.subr.mxu0 0.0
    %926 = vmatpush1.xpose.msra.mxu0 0.0
    %927 = vmatprep.subr.mxu0 0.0
    %928 = vmatpush1.xpose.msra.mxu0 0.0
    %929 = vmatprep.subr.mxu0 0.0
    %930 = vmatpush1.xpose.msra.mxu0 0.0
    %931 = vmatprep.subr.mxu0 0.0
    %932 = vmatpush1.xpose.msra.mxu0 0.0
    %933 = vmatprep.subr.mxu0 0.0
    %934 = vmatpush1.xpose.msra.mxu0 0.0
    %935 = vmatprep.subr.mxu0 0.0
    %936 = vmatpush1.xpose.msra.mxu0 0.0
    %937 = vmatprep.subr.mxu0 0.0
    %938 = vmatpush1.xpose.msra.mxu0 0.0
    %939 = vmatprep.subr.mxu0 0.0
    %940 = vmatpush1.xpose.msra.mxu0 0.0
    %941 = vmatprep.subr.mxu0 0.0
    %942 = vmatpush1.xpose.msra.mxu0 0.0
    %943 = vmatprep.subr.mxu0 0.0
    %944 = vmatpush1.xpose.msra.mxu0 0.0
    %945 = vmatprep.subr.mxu0 0.0
    %946 = vmatpush1.xpose.msra.mxu0 0.0
    %947 = vmatprep.subr.mxu0 0.0
    %948 = vmatpush1.xpose.msra.mxu0 0.0
    %949 = vmatprep.subr.mxu0 0.0
    %950 = vmatpush1.xpose.msra.mxu0 0.0
    %951 = vmatprep.subr.mxu0 0.0
    %952 = vmatpush1.xpose.msra.mxu0 0.0
    %953 = vmatprep.subr.mxu0 0.0
    %954 = vmatpush1.xpose.msra.mxu0 %v921
    %955 = vmatprep.subr.mxu0 0.0
    %956 = vmatpush2.xpose.msra.mxu0 0.0
    %957 = vmatprep.subr.mxu0 0.0
    %958 = vmatpush2.xpose.msra.mxu0 0.0
    %959 = vmatprep.subr.mxu0 0.0
    %960 = vmatpush2.xpose.msra.mxu0 0.0
    %961 = vmatprep.subr.mxu0 0.0
    %962 = vmatpush2.xpose.msra.mxu0 0.0
    %963 = vmatprep.subr.mxu0 0.0
    %964 = vmatpush2.xpose.msra.mxu0 0.0
    %965 = vmatprep.subr.mxu0 0.0
    %966 = vmatpush2.xpose.msra.mxu0 0.0
    %967 = vmatprep.subr.mxu0 0.0
    %968 = vmatpush2.xpose.msra.mxu0 0.0
    %969 = vmatprep.subr.mxu0 0.0
    %970 = vmatpush2.xpose.msra.mxu0 0.0
    %971 = vmatprep.subr.mxu0 0.0
    %972 = vmatpush2.xpose.msra.mxu0 0.0
    %973 = vmatprep.subr.mxu0 0.0
    %974 = vmatpush2.xpose.msra.mxu0 0.0
    %975 = vmatprep.subr.mxu0 0.0
    %976 = vmatpush2.xpose.msra.mxu0 0.0
    %977 = vmatprep.subr.mxu0 0.0
    %978 = vmatpush2.xpose.msra.mxu0 0.0
    %979 = vmatprep.subr.mxu0 0.0
    %980 = vmatpush2.xpose.msra.mxu0 0.0
    %981 = vmatprep.subr.mxu0 0.0
    %982 = vmatpush2.xpose.msra.mxu0 0.0
    %983 = vmatprep.subr.mxu0 0.0
    %984 = vmatpush2.xpose.msra.mxu0 0.0
    %985 = vmatprep.subr.mxu0 0.0
    %986 = vmatpush2.xpose.msra.mxu0 0.0
    %987 = vmatprep.mubr.f32.mxu0 0.0
    %988 = vmatmul.mubr.f32.gmra.mxu0 %v919
    %v989 = vpop.f32.mrf.mxu0
    %v990 = vadd.f32 0.0, %v989
    %v991 = vpop.f32.mrf.mxu0
    %992 = vdwg.mxu0
    %994 = vrot.lane.b32.xlu0 %v195, 120
    %v995 = vpop.permute.xlu0 %994
    %v996 = vsel %vm29, %v195, 0
    %v998 = vsel %vm29, %v995, 0
    %1000 = vmatprep.subr.mxu0 0.0
    %1001 = vmatpush1.xpose.msra.mxu0 0.0
    %1002 = vmatprep.subr.mxu0 0.0
    %1003 = vmatpush1.xpose.msra.mxu0 0.0
    %1004 = vmatprep.subr.mxu0 0.0
    %1005 = vmatpush1.xpose.msra.mxu0 0.0
    %1006 = vmatprep.subr.mxu0 0.0
    %1007 = vmatpush1.xpose.msra.mxu0 0.0
    %1008 = vmatprep.subr.mxu0 0.0
    %1009 = vmatpush1.xpose.msra.mxu0 0.0
    %1010 = vmatprep.subr.mxu0 0.0
    %1011 = vmatpush1.xpose.msra.mxu0 0.0
    %1012 = vmatprep.subr.mxu0 0.0
    %1013 = vmatpush1.xpose.msra.mxu0 0.0
    %1014 = vmatprep.subr.mxu0 0.0
    %1015 = vmatpush1.xpose.msra.mxu0 0.0
    %1016 = vmatprep.subr.mxu0 0.0
    %1017 = vmatpush1.xpose.msra.mxu0 0.0
    %1018 = vmatprep.subr.mxu0 0.0
    %1019 = vmatpush1.xpose.msra.mxu0 0.0
    %1020 = vmatprep.subr.mxu0 0.0
    %1021 = vmatpush1.xpose.msra.mxu0 0.0
    %1022 = vmatprep.subr.mxu0 0.0
    %1023 = vmatpush1.xpose.msra.mxu0 0.0
    %1024 = vmatprep.subr.mxu0 0.0
    %1025 = vmatpush1.xpose.msra.mxu0 0.0
    %1026 = vmatprep.subr.mxu0 0.0
    %1027 = vmatpush1.xpose.msra.mxu0 0.0
    %1028 = vmatprep.subr.mxu0 0.0
    %1029 = vmatpush1.xpose.msra.mxu0 0.0
    %1030 = vmatprep.subr.mxu0 0.0
    %1031 = vmatpush1.xpose.msra.mxu0 %v998
    %1032 = vmatprep.subr.mxu0 0.0
    %1033 = vmatpush2.xpose.msra.mxu0 0.0
    %1034 = vmatprep.subr.mxu0 0.0
    %1035 = vmatpush2.xpose.msra.mxu0 0.0
    %1036 = vmatprep.subr.mxu0 0.0
    %1037 = vmatpush2.xpose.msra.mxu0 0.0
    %1038 = vmatprep.subr.mxu0 0.0
    %1039 = vmatpush2.xpose.msra.mxu0 0.0
    %1040 = vmatprep.subr.mxu0 0.0
    %1041 = vmatpush2.xpose.msra.mxu0 0.0
    %1042 = vmatprep.subr.mxu0 0.0
    %1043 = vmatpush2.xpose.msra.mxu0 0.0
    %1044 = vmatprep.subr.mxu0 0.0
    %1045 = vmatpush2.xpose.msra.mxu0 0.0
    %1046 = vmatprep.subr.mxu0 0.0
    %1047 = vmatpush2.xpose.msra.mxu0 0.0
    %1048 = vmatprep.subr.mxu0 0.0
    %1049 = vmatpush2.xpose.msra.mxu0 0.0
    %1050 = vmatprep.subr.mxu0 0.0
    %1051 = vmatpush2.xpose.msra.mxu0 0.0
    %1052 = vmatprep.subr.mxu0 0.0
    %1053 = vmatpush2.xpose.msra.mxu0 0.0
    %1054 = vmatprep.subr.mxu0 0.0
    %1055 = vmatpush2.xpose.msra.mxu0 0.0
    %1056 = vmatprep.subr.mxu0 0.0
    %1057 = vmatpush2.xpose.msra.mxu0 0.0
    %1058 = vmatprep.subr.mxu0 0.0
    %1059 = vmatpush2.xpose.msra.mxu0 0.0
    %1060 = vmatprep.subr.mxu0 0.0
    %1061 = vmatpush2.xpose.msra.mxu0 0.0
    %1062 = vmatprep.subr.mxu0 0.0
    %1063 = vmatpush2.xpose.msra.mxu0 0.0
    %1064 = vmatprep.mubr.f32.mxu0 0.0
    %1065 = vmatmul.mubr.f32.gmra.mxu0 %v996
    %v1066 = vpop.f32.mrf.mxu0
    %v1067 = vadd.f32 0.0, %v1066
    %v1068 = vpop.f32.mrf.mxu0
    %1069 = vdwg.mxu0
    %1071 = vrot.lane.b32.xlu0 %v200, 120
    %v1072 = vpop.permute.xlu0 %1071
    %v1073 = vsel %vm29, %v200, 0
    %v1075 = vsel %vm29, %v1072, 0
    %1077 = vmatprep.subr.mxu0 0.0
    %1078 = vmatpush1.xpose.msra.mxu0 0.0
    %1079 = vmatprep.subr.mxu0 0.0
    %1080 = vmatpush1.xpose.msra.mxu0 0.0
    %1081 = vmatprep.subr.mxu0 0.0
    %1082 = vmatpush1.xpose.msra.mxu0 0.0
    %1083 = vmatprep.subr.mxu0 0.0
    %1084 = vmatpush1.xpose.msra.mxu0 0.0
    %1085 = vmatprep.subr.mxu0 0.0
    %1086 = vmatpush1.xpose.msra.mxu0 0.0
    %1087 = vmatprep.subr.mxu0 0.0
    %1088 = vmatpush1.xpose.msra.mxu0 0.0
    %1089 = vmatprep.subr.mxu0 0.0
    %1090 = vmatpush1.xpose.msra.mxu0 0.0
    %1091 = vmatprep.subr.mxu0 0.0
    %1092 = vmatpush1.xpose.msra.mxu0 0.0
    %1093 = vmatprep.subr.mxu0 0.0
    %1094 = vmatpush1.xpose.msra.mxu0 0.0
    %1095 = vmatprep.subr.mxu0 0.0
    %1096 = vmatpush1.xpose.msra.mxu0 0.0
    %1097 = vmatprep.subr.mxu0 0.0
    %1098 = vmatpush1.xpose.msra.mxu0 0.0
    %1099 = vmatprep.subr.mxu0 0.0
    %1100 = vmatpush1.xpose.msra.mxu0 0.0
    %1101 = vmatprep.subr.mxu0 0.0
    %1102 = vmatpush1.xpose.msra.mxu0 0.0
    %1103 = vmatprep.subr.mxu0 0.0
    %1104 = vmatpush1.xpose.msra.mxu0 0.0
    %1105 = vmatprep.subr.mxu0 0.0
    %1106 = vmatpush1.xpose.msra.mxu0 0.0
    %1107 = vmatprep.subr.mxu0 0.0
    %1108 = vmatpush1.xpose.msra.mxu0 %v1075
    %1109 = vmatprep.subr.mxu0 0.0
    %1110 = vmatpush2.xpose.msra.mxu0 0.0
    %1111 = vmatprep.subr.mxu0 0.0
    %1112 = vmatpush2.xpose.msra.mxu0 0.0
    %1113 = vmatprep.subr.mxu0 0.0
    %1114 = vmatpush2.xpose.msra.mxu0 0.0
    %1115 = vmatprep.subr.mxu0 0.0
    %1116 = vmatpush2.xpose.msra.mxu0 0.0
    %1117 = vmatprep.subr.mxu0 0.0
    %1118 = vmatpush2.xpose.msra.mxu0 0.0
    %1119 = vmatprep.subr.mxu0 0.0
    %1120 = vmatpush2.xpose.msra.mxu0 0.0
    %1121 = vmatprep.subr.mxu0 0.0
    %1122 = vmatpush2.xpose.msra.mxu0 0.0
    %1123 = vmatprep.subr.mxu0 0.0
    %1124 = vmatpush2.xpose.msra.mxu0 0.0
    %1125 = vmatprep.subr.mxu0 0.0
    %1126 = vmatpush2.xpose.msra.mxu0 0.0
    %1127 = vmatprep.subr.mxu0 0.0
    %1128 = vmatpush2.xpose.msra.mxu0 0.0
    %1129 = vmatprep.subr.mxu0 0.0
    %1130 = vmatpush2.xpose.msra.mxu0 0.0
    %1131 = vmatprep.subr.mxu0 0.0
    %1132 = vmatpush2.xpose.msra.mxu0 0.0
    %1133 = vmatprep.subr.mxu0 0.0
    %1134 = vmatpush2.xpose.msra.mxu0 0.0
    %1135 = vmatprep.subr.mxu0 0.0
    %1136 = vmatpush2.xpose.msra.mxu0 0.0
    %1137 = vmatprep.subr.mxu0 0.0
    %1138 = vmatpush2.xpose.msra.mxu0 0.0
    %1139 = vmatprep.subr.mxu0 0.0
    %1140 = vmatpush2.xpose.msra.mxu0 0.0
    %1141 = vmatprep.mubr.f32.mxu0 0.0
    %1142 = vmatmul.mubr.f32.gmra.mxu0 %v1073
    %v1143 = vpop.f32.mrf.mxu0
    %v1144 = vadd.f32 0.0, %v1143
    %v1145 = vpop.f32.mrf.mxu0
    %1146 = vdwg.mxu0
    %1148 = vrot.lane.b32.xlu0 %v205, 120
    %v1149 = vpop.permute.xlu0 %1148
    %v1150 = vsel %vm29, %v205, 0
    %v1152 = vsel %vm29, %v1149, 0
    %1154 = vmatprep.subr.mxu0 0.0
    %1155 = vmatpush1.xpose.msra.mxu0 0.0
    %1156 = vmatprep.subr.mxu0 0.0
    %1157 = vmatpush1.xpose.msra.mxu0 0.0
    %1158 = vmatprep.subr.mxu0 0.0
    %1159 = vmatpush1.xpose.msra.mxu0 0.0
    %1160 = vmatprep.subr.mxu0 0.0
    %1161 = vmatpush1.xpose.msra.mxu0 0.0
    %1162 = vmatprep.subr.mxu0 0.0
    %1163 = vmatpush1.xpose.msra.mxu0 0.0
    %1164 = vmatprep.subr.mxu0 0.0
    %1165 = vmatpush1.xpose.msra.mxu0 0.0
    %1166 = vmatprep.subr.mxu0 0.0
    %1167 = vmatpush1.xpose.msra.mxu0 0.0
    %1168 = vmatprep.subr.mxu0 0.0
    %1169 = vmatpush1.xpose.msra.mxu0 0.0
    %1170 = vmatprep.subr.mxu0 0.0
    %1171 = vmatpush1.xpose.msra.mxu0 0.0
    %1172 = vmatprep.subr.mxu0 0.0
    %1173 = vmatpush1.xpose.msra.mxu0 0.0
    %1174 = vmatprep.subr.mxu0 0.0
    %1175 = vmatpush1.xpose.msra.mxu0 0.0
    %1176 = vmatprep.subr.mxu0 0.0
    %1177 = vmatpush1.xpose.msra.mxu0 0.0
    %1178 = vmatprep.subr.mxu0 0.0
    %1179 = vmatpush1.xpose.msra.mxu0 0.0
    %1180 = vmatprep.subr.mxu0 0.0
    %1181 = vmatpush1.xpose.msra.mxu0 0.0
    %1182 = vmatprep.subr.mxu0 0.0
    %1183 = vmatpush1.xpose.msra.mxu0 0.0
    %1184 = vmatprep.subr.mxu0 0.0
    %1185 = vmatpush1.xpose.msra.mxu0 %v1152
    %1186 = vmatprep.subr.mxu0 0.0
    %1187 = vmatpush2.xpose.msra.mxu0 0.0
    %1188 = vmatprep.subr.mxu0 0.0
    %1189 = vmatpush2.xpose.msra.mxu0 0.0
    %1190 = vmatprep.subr.mxu0 0.0
    %1191 = vmatpush2.xpose.msra.mxu0 0.0
    %1192 = vmatprep.subr.mxu0 0.0
    %1193 = vmatpush2.xpose.msra.mxu0 0.0
    %1194 = vmatprep.subr.mxu0 0.0
    %1195 = vmatpush2.xpose.msra.mxu0 0.0
    %1196 = vmatprep.subr.mxu0 0.0
    %1197 = vmatpush2.xpose.msra.mxu0 0.0
    %1198 = vmatprep.subr.mxu0 0.0
    %1199 = vmatpush2.xpose.msra.mxu0 0.0
    %1200 = vmatprep.subr.mxu0 0.0
    %1201 = vmatpush2.xpose.msra.mxu0 0.0
    %1202 = vmatprep.subr.mxu0 0.0
    %1203 = vmatpush2.xpose.msra.mxu0 0.0
    %1204 = vmatprep.subr.mxu0 0.0
    %1205 = vmatpush2.xpose.msra.mxu0 0.0
    %1206 = vmatprep.subr.mxu0 0.0
    %1207 = vmatpush2.xpose.msra.mxu0 0.0
    %1208 = vmatprep.subr.mxu0 0.0
    %1209 = vmatpush2.xpose.msra.mxu0 0.0
    %1210 = vmatprep.subr.mxu0 0.0
    %1211 = vmatpush2.xpose.msra.mxu0 0.0
    %1212 = vmatprep.subr.mxu0 0.0
    %1213 = vmatpush2.xpose.msra.mxu0 0.0
    %1214 = vmatprep.subr.mxu0 0.0
    %1215 = vmatpush2.xpose.msra.mxu0 0.0
    %1216 = vmatprep.subr.mxu0 0.0
    %1217 = vmatpush2.xpose.msra.mxu0 0.0
    %1218 = vmatprep.mubr.f32.mxu0 0.0
    %1219 = vmatmul.mubr.f32.gmra.mxu0 %v1150
    %v1220 = vpop.f32.mrf.mxu0
    %v1221 = vadd.f32 0.0, %v1220
    %v1222 = vpop.f32.mrf.mxu0
    %1223 = vdwg.mxu0
    %1225 = vrot.lane.b32.xlu0 %v210, 120
    %v1226 = vpop.permute.xlu0 %1225
    %v1227 = vsel %vm29, %v210, 0
    %v1229 = vsel %vm29, %v1226, 0
    %1231 = vmatprep.subr.mxu0 0.0
    %1232 = vmatpush1.xpose.msra.mxu0 0.0
    %1233 = vmatprep.subr.mxu0 0.0
    %1234 = vmatpush1.xpose.msra.mxu0 0.0
    %1235 = vmatprep.subr.mxu0 0.0
    %1236 = vmatpush1.xpose.msra.mxu0 0.0
    %1237 = vmatprep.subr.mxu0 0.0
    %1238 = vmatpush1.xpose.msra.mxu0 0.0
    %1239 = vmatprep.subr.mxu0 0.0
    %1240 = vmatpush1.xpose.msra.mxu0 0.0
    %1241 = vmatprep.subr.mxu0 0.0
    %1242 = vmatpush1.xpose.msra.mxu0 0.0
    %1243 = vmatprep.subr.mxu0 0.0
    %1244 = vmatpush1.xpose.msra.mxu0 0.0
    %1245 = vmatprep.subr.mxu0 0.0
    %1246 = vmatpush1.xpose.msra.mxu0 0.0
    %1247 = vmatprep.subr.mxu0 0.0
    %1248 = vmatpush1.xpose.msra.mxu0 0.0
    %1249 = vmatprep.subr.mxu0 0.0
    %1250 = vmatpush1.xpose.msra.mxu0 0.0
    %1251 = vmatprep.subr.mxu0 0.0
    %1252 = vmatpush1.xpose.msra.mxu0 0.0
    %1253 = vmatprep.subr.mxu0 0.0
    %1254 = vmatpush1.xpose.msra.mxu0 0.0
    %1255 = vmatprep.subr.mxu0 0.0
    %1256 = vmatpush1.xpose.msra.mxu0 0.0
    %1257 = vmatprep.subr.mxu0 0.0
    %1258 = vmatpush1.xpose.msra.mxu0 0.0
    %1259 = vmatprep.subr.mxu0 0.0
    %1260 = vmatpush1.xpose.msra.mxu0 0.0
    %1261 = vmatprep.subr.mxu0 0.0
    %1262 = vmatpush1.xpose.msra.mxu0 %v1229
    %1263 = vmatprep.subr.mxu0 0.0
    %1264 = vmatpush2.xpose.msra.mxu0 0.0
    %1265 = vmatprep.subr.mxu0 0.0
    %1266 = vmatpush2.xpose.msra.mxu0 0.0
    %1267 = vmatprep.subr.mxu0 0.0
    %1268 = vmatpush2.xpose.msra.mxu0 0.0
    %1269 = vmatprep.subr.mxu0 0.0
    %1270 = vmatpush2.xpose.msra.mxu0 0.0
    %1271 = vmatprep.subr.mxu0 0.0
    %1272 = vmatpush2.xpose.msra.mxu0 0.0
    %1273 = vmatprep.subr.mxu0 0.0
    %1274 = vmatpush2.xpose.msra.mxu0 0.0
    %1275 = vmatprep.subr.mxu0 0.0
    %1276 = vmatpush2.xpose.msra.mxu0 0.0
    %1277 = vmatprep.subr.mxu0 0.0
    %1278 = vmatpush2.xpose.msra.mxu0 0.0
    %1279 = vmatprep.subr.mxu0 0.0
    %1280 = vmatpush2.xpose.msra.mxu0 0.0
    %1281 = vmatprep.subr.mxu0 0.0
    %1282 = vmatpush2.xpose.msra.mxu0 0.0
    %1283 = vmatprep.subr.mxu0 0.0
    %1284 = vmatpush2.xpose.msra.mxu0 0.0
    %1285 = vmatprep.subr.mxu0 0.0
    %1286 = vmatpush2.xpose.msra.mxu0 0.0
    %1287 = vmatprep.subr.mxu0 0.0
    %1288 = vmatpush2.xpose.msra.mxu0 0.0
    %1289 = vmatprep.subr.mxu0 0.0
    %1290 = vmatpush2.xpose.msra.mxu0 0.0
    %1291 = vmatprep.subr.mxu0 0.0
    %1292 = vmatpush2.xpose.msra.mxu0 0.0
    %1293 = vmatprep.subr.mxu0 0.0
    %1294 = vmatpush2.xpose.msra.mxu0 0.0
    %1295 = vmatprep.mubr.f32.mxu0 0.0
    %1296 = vmatmul.mubr.f32.gmra.mxu0 %v1227
    %v1297 = vpop.f32.mrf.mxu0
    %v1298 = vadd.f32 0.0, %v1297
    %v1299 = vpop.f32.mrf.mxu0
    %1300 = vdwg.mxu0
    %1302 = vrot.lane.b32.xlu0 %v215, 120
    %v1303 = vpop.permute.xlu0 %1302
    %v1304 = vsel %vm29, %v215, 0
    %v1306 = vsel %vm29, %v1303, 0
    %1308 = vmatprep.subr.mxu0 0.0
    %1309 = vmatpush1.xpose.msra.mxu0 0.0
    %1310 = vmatprep.subr.mxu0 0.0
    %1311 = vmatpush1.xpose.msra.mxu0 0.0
    %1312 = vmatprep.subr.mxu0 0.0
    %1313 = vmatpush1.xpose.msra.mxu0 0.0
    %1314 = vmatprep.subr.mxu0 0.0
    %1315 = vmatpush1.xpose.msra.mxu0 0.0
    %1316 = vmatprep.subr.mxu0 0.0
    %1317 = vmatpush1.xpose.msra.mxu0 0.0
    %1318 = vmatprep.subr.mxu0 0.0
    %1319 = vmatpush1.xpose.msra.mxu0 0.0
    %1320 = vmatprep.subr.mxu0 0.0
    %1321 = vmatpush1.xpose.msra.mxu0 0.0
    %1322 = vmatprep.subr.mxu0 0.0
    %1323 = vmatpush1.xpose.msra.mxu0 0.0
    %1324 = vmatprep.subr.mxu0 0.0
    %1325 = vmatpush1.xpose.msra.mxu0 0.0
    %1326 = vmatprep.subr.mxu0 0.0
    %1327 = vmatpush1.xpose.msra.mxu0 0.0
    %1328 = vmatprep.subr.mxu0 0.0
    %1329 = vmatpush1.xpose.msra.mxu0 0.0
    %1330 = vmatprep.subr.mxu0 0.0
    %1331 = vmatpush1.xpose.msra.mxu0 0.0
    %1332 = vmatprep.subr.mxu0 0.0
    %1333 = vmatpush1.xpose.msra.mxu0 0.0
    %1334 = vmatprep.subr.mxu0 0.0
    %1335 = vmatpush1.xpose.msra.mxu0 0.0
    %1336 = vmatprep.subr.mxu0 0.0
    %1337 = vmatpush1.xpose.msra.mxu0 0.0
    %1338 = vmatprep.subr.mxu0 0.0
    %1339 = vmatpush1.xpose.msra.mxu0 %v1306
    %1340 = vmatprep.subr.mxu0 0.0
    %1341 = vmatpush2.xpose.msra.mxu0 0.0
    %1342 = vmatprep.subr.mxu0 0.0
    %1343 = vmatpush2.xpose.msra.mxu0 0.0
    %1344 = vmatprep.subr.mxu0 0.0
    %1345 = vmatpush2.xpose.msra.mxu0 0.0
    %1346 = vmatprep.subr.mxu0 0.0
    %1347 = vmatpush2.xpose.msra.mxu0 0.0
    %1348 = vmatprep.subr.mxu0 0.0
    %1349 = vmatpush2.xpose.msra.mxu0 0.0
    %1350 = vmatprep.subr.mxu0 0.0
    %1351 = vmatpush2.xpose.msra.mxu0 0.0
    %1352 = vmatprep.subr.mxu0 0.0
    %1353 = vmatpush2.xpose.msra.mxu0 0.0
    %1354 = vmatprep.subr.mxu0 0.0
    %1355 = vmatpush2.xpose.msra.mxu0 0.0
    %1356 = vmatprep.subr.mxu0 0.0
    %1357 = vmatpush2.xpose.msra.mxu0 0.0
    %1358 = vmatprep.subr.mxu0 0.0
    %1359 = vmatpush2.xpose.msra.mxu0 0.0
    %1360 = vmatprep.subr.mxu0 0.0
    %1361 = vmatpush2.xpose.msra.mxu0 0.0
    %1362 = vmatprep.subr.mxu0 0.0
    %1363 = vmatpush2.xpose.msra.mxu0 0.0
    %1364 = vmatprep.subr.mxu0 0.0
    %1365 = vmatpush2.xpose.msra.mxu0 0.0
    %1366 = vmatprep.subr.mxu0 0.0
    %1367 = vmatpush2.xpose.msra.mxu0 0.0
    %1368 = vmatprep.subr.mxu0 0.0
    %1369 = vmatpush2.xpose.msra.mxu0 0.0
    %1370 = vmatprep.subr.mxu0 0.0
    %1371 = vmatpush2.xpose.msra.mxu0 0.0
    %1372 = vmatprep.mubr.f32.mxu0 0.0
    %1373 = vmatmul.mubr.f32.gmra.mxu0 %v1304
    %v1374 = vpop.f32.mrf.mxu0
    %v1375 = vadd.f32 0.0, %v1374
    %v1376 = vpop.f32.mrf.mxu0
    %1377 = vdwg.mxu0
    %1379 = vrot.lane.b32.xlu0 %v220, 120
    %v1380 = vpop.permute.xlu0 %1379
    %v1381 = vsel %vm29, %v220, 0
    %v1383 = vsel %vm29, %v1380, 0
    %1385 = vmatprep.subr.mxu0 0.0
    %1386 = vmatpush1.xpose.msra.mxu0 0.0
    %1387 = vmatprep.subr.mxu0 0.0
    %1388 = vmatpush1.xpose.msra.mxu0 0.0
    %1389 = vmatprep.subr.mxu0 0.0
    %1390 = vmatpush1.xpose.msra.mxu0 0.0
    %1391 = vmatprep.subr.mxu0 0.0
    %1392 = vmatpush1.xpose.msra.mxu0 0.0
    %1393 = vmatprep.subr.mxu0 0.0
    %1394 = vmatpush1.xpose.msra.mxu0 0.0
    %1395 = vmatprep.subr.mxu0 0.0
    %1396 = vmatpush1.xpose.msra.mxu0 0.0
    %1397 = vmatprep.subr.mxu0 0.0
    %1398 = vmatpush1.xpose.msra.mxu0 0.0
    %1399 = vmatprep.subr.mxu0 0.0
    %1400 = vmatpush1.xpose.msra.mxu0 0.0
    %1401 = vmatprep.subr.mxu0 0.0
    %1402 = vmatpush1.xpose.msra.mxu0 0.0
    %1403 = vmatprep.subr.mxu0 0.0
    %1404 = vmatpush1.xpose.msra.mxu0 0.0
    %1405 = vmatprep.subr.mxu0 0.0
    %1406 = vmatpush1.xpose.msra.mxu0 0.0
    %1407 = vmatprep.subr.mxu0 0.0
    %1408 = vmatpush1.xpose.msra.mxu0 0.0
    %1409 = vmatprep.subr.mxu0 0.0
    %1410 = vmatpush1.xpose.msra.mxu0 0.0
    %1411 = vmatprep.subr.mxu0 0.0
    %1412 = vmatpush1.xpose.msra.mxu0 0.0
    %1413 = vmatprep.subr.mxu0 0.0
    %1414 = vmatpush1.xpose.msra.mxu0 0.0
    %1415 = vmatprep.subr.mxu0 0.0
    %1416 = vmatpush1.xpose.msra.mxu0 %v1383
    %1417 = vmatprep.subr.mxu0 0.0
    %1418 = vmatpush2.xpose.msra.mxu0 0.0
    %1419 = vmatprep.subr.mxu0 0.0
    %1420 = vmatpush2.xpose.msra.mxu0 0.0
    %1421 = vmatprep.subr.mxu0 0.0
    %1422 = vmatpush2.xpose.msra.mxu0 0.0
    %1423 = vmatprep.subr.mxu0 0.0
    %1424 = vmatpush2.xpose.msra.mxu0 0.0
    %1425 = vmatprep.subr.mxu0 0.0
    %1426 = vmatpush2.xpose.msra.mxu0 0.0
    %1427 = vmatprep.subr.mxu0 0.0
    %1428 = vmatpush2.xpose.msra.mxu0 0.0
    %1429 = vmatprep.subr.mxu0 0.0
    %1430 = vmatpush2.xpose.msra.mxu0 0.0
    %1431 = vmatprep.subr.mxu0 0.0
    %1432 = vmatpush2.xpose.msra.mxu0 0.0
    %1433 = vmatprep.subr.mxu0 0.0
    %1434 = vmatpush2.xpose.msra.mxu0 0.0
    %1435 = vmatprep.subr.mxu0 0.0
    %1436 = vmatpush2.xpose.msra.mxu0 0.0
    %1437 = vmatprep.subr.mxu0 0.0
    %1438 = vmatpush2.xpose.msra.mxu0 0.0
    %1439 = vmatprep.subr.mxu0 0.0
    %1440 = vmatpush2.xpose.msra.mxu0 0.0
    %1441 = vmatprep.subr.mxu0 0.0
    %1442 = vmatpush2.xpose.msra.mxu0 0.0
    %1443 = vmatprep.subr.mxu0 0.0
    %1444 = vmatpush2.xpose.msra.mxu0 0.0
    %1445 = vmatprep.subr.mxu0 0.0
    %1446 = vmatpush2.xpose.msra.mxu0 0.0
    %1447 = vmatprep.subr.mxu0 0.0
    %1448 = vmatpush2.xpose.msra.mxu0 0.0
    %1449 = vmatprep.mubr.f32.mxu0 0.0
    %1450 = vmatmul.mubr.f32.gmra.mxu0 %v1381
    %v1451 = vpop.f32.mrf.mxu0
    %v1452 = vadd.f32 0.0, %v1451
    %v1453 = vpop.f32.mrf.mxu0
    %1454 = vdwg.mxu0
    %v1455 = vsel %vm29, %v297, -inf
    %1456 = vmax.xlane.f32.xlu0 %v1455
    %v1457 = vpop.xlane.xlu0 %1456
    %v1458 = vsel %vm29, %v374, -inf
    %1459 = vmax.xlane.f32.xlu0 %v1458
    %v1460 = vpop.xlane.xlu0 %1459
    %v1461 = vsel %vm29, %v451, -inf
    %1462 = vmax.xlane.f32.xlu0 %v1461
    %v1463 = vpop.xlane.xlu0 %1462
    %v1464 = vsel %vm29, %v528, -inf
    %1465 = vmax.xlane.f32.xlu0 %v1464
    %v1466 = vpop.xlane.xlu0 %1465
    %v1467 = vsel %vm29, %v605, -inf
    %1468 = vmax.xlane.f32.xlu0 %v1467
    %v1469 = vpop.xlane.xlu0 %1468
    %v1470 = vsel %vm29, %v682, -inf
    %1471 = vmax.xlane.f32.xlu0 %v1470
    %v1472 = vpop.xlane.xlu0 %1471
    %v1473 = vsel %vm29, %v759, -inf
    %1474 = vmax.xlane.f32.xlu0 %v1473
    %v1475 = vpop.xlane.xlu0 %1474
    %v1476 = vsel %vm29, %v836, -inf
    %1477 = vmax.xlane.f32.xlu0 %v1476
    %v1478 = vpop.xlane.xlu0 %1477
    %v1479 = vsel %vm29, %v913, -inf
    %1480 = vmax.xlane.f32.xlu0 %v1479
    %v1481 = vpop.xlane.xlu0 %1480
    %v1482 = vsel %vm29, %v990, -inf
    %1483 = vmax.xlane.f32.xlu0 %v1482
    %v1484 = vpop.xlane.xlu0 %1483
    %v1485 = vsel %vm29, %v1067, -inf
    %1486 = vmax.xlane.f32.xlu0 %v1485
    %v1487 = vpop.xlane.xlu0 %1486
    %v1488 = vsel %vm29, %v1144, -inf
    %1489 = vmax.xlane.f32.xlu0 %v1488
    %v1490 = vpop.xlane.xlu0 %1489
    %v1491 = vsel %vm29, %v1221, -inf
    %1492 = vmax.xlane.f32.xlu0 %v1491
    %v1493 = vpop.xlane.xlu0 %1492
    %v1494 = vsel %vm29, %v1298, -inf
    %1495 = vmax.xlane.f32.xlu0 %v1494
    %v1496 = vpop.xlane.xlu0 %1495
    %v1497 = vsel %vm29, %v1375, -inf
    %1498 = vmax.xlane.f32.xlu0 %v1497
    %v1499 = vpop.xlane.xlu0 %1498
    %v1500 = vsel %vm29, %v1452, -inf
    %1501 = vmax.xlane.f32.xlu0 %v1500
    %v1502 = vpop.xlane.xlu0 %1501
    %v1503 = vsub.f32 %v297, %v1457
    %v1504 = vsub.f32 %v374, %v1460
    %v1505 = vsub.f32 %v451, %v1463
    %v1506 = vsub.f32 %v528, %v1466
    %v1507 = vsub.f32 %v605, %v1469
    %v1508 = vsub.f32 %v682, %v1472
    %v1509 = vsub.f32 %v759, %v1475
    %v1510 = vsub.f32 %v836, %v1478
    %v1511 = vsub.f32 %v913, %v1481
    %v1512 = vsub.f32 %v990, %v1484
    %v1513 = vsub.f32 %v1067, %v1487
    %v1514 = vsub.f32 %v1144, %v1490
    %v1515 = vsub.f32 %v1221, %v1493
    %v1516 = vsub.f32 %v1298, %v1496
    %v1517 = vsub.f32 %v1375, %v1499
    %v1518 = vsub.f32 %v1452, %v1502
    %v1519 = vmul.f32 %v1503, 1.442695
    %v1520 = vpow.pop %v1519
    %v1521 = vmul.f32 %v1504, 1.442695
    %v1522 = vpow.pop %v1521
    %v1523 = vmul.f32 %v1505, 1.442695
    %v1524 = vpow.pop %v1523
    %v1525 = vmul.f32 %v1506, 1.442695
    %v1526 = vpow.pop %v1525
    %v1527 = vmul.f32 %v1507, 1.442695
    %v1528 = vpow.pop %v1527
    %v1529 = vmul.f32 %v1508, 1.442695
    %v1530 = vpow.pop %v1529
    %v1531 = vmul.f32 %v1509, 1.442695
    %v1532 = vpow.pop %v1531
    %v1533 = vmul.f32 %v1510, 1.442695
    %v1534 = vpow.pop %v1533
    %v1535 = vmul.f32 %v1511, 1.442695
    %v1536 = vpow.pop %v1535
    %v1537 = vmul.f32 %v1512, 1.442695
    %v1538 = vpow.pop %v1537
    %v1539 = vmul.f32 %v1513, 1.442695
    %v1540 = vpow.pop %v1539
    %v1541 = vmul.f32 %v1514, 1.442695
    %v1542 = vpow.pop %v1541
    %v1543 = vmul.f32 %v1515, 1.442695
    %v1544 = vpow.pop %v1543
    %v1545 = vmul.f32 %v1516, 1.442695
    %v1546 = vpow.pop %v1545
    %v1547 = vmul.f32 %v1517, 1.442695
    %v1548 = vpow.pop %v1547
    %v1549 = vmul.f32 %v1518, 1.442695
    %v1550 = vpow.pop %v1549
    %v1551 = vsel %vm29, %v1520, 0.0
    %1552 = vadd.xlane.f32.xlu0 %v1551
    %v1553 = vpop.xlane.xlu0 %1552
    %v1554 = vsel %vm29, %v1522, 0.0
    %1555 = vadd.xlane.f32.xlu0 %v1554
    %v1556 = vpop.xlane.xlu0 %1555
    %v1557 = vsel %vm29, %v1524, 0.0
    %1558 = vadd.xlane.f32.xlu0 %v1557
    %v1559 = vpop.xlane.xlu0 %1558
    %v1560 = vsel %vm29, %v1526, 0.0
    %1561 = vadd.xlane.f32.xlu0 %v1560
    %v1562 = vpop.xlane.xlu0 %1561
    %v1563 = vsel %vm29, %v1528, 0.0
    %1564 = vadd.xlane.f32.xlu0 %v1563
    %v1565 = vpop.xlane.xlu0 %1564
    %v1566 = vsel %vm29, %v1530, 0.0
    %1567 = vadd.xlane.f32.xlu0 %v1566
    %v1568 = vpop.xlane.xlu0 %1567
    %v1569 = vsel %vm29, %v1532, 0.0
    %1570 = vadd.xlane.f32.xlu0 %v1569
    %v1571 = vpop.xlane.xlu0 %1570
    %v1572 = vsel %vm29, %v1534, 0.0
    %1573 = vadd.xlane.f32.xlu0 %v1572
    %v1574 = vpop.xlane.xlu0 %1573
    %v1575 = vsel %vm29, %v1536, 0.0
    %1576 = vadd.xlane.f32.xlu0 %v1575
    %v1577 = vpop.xlane.xlu0 %1576
    %v1578 = vsel %vm29, %v1538, 0.0
    %1579 = vadd.xlane.f32.xlu0 %v1578
    %v1580 = vpop.xlane.xlu0 %1579
    %v1581 = vsel %vm29, %v1540, 0.0
    %1582 = vadd.xlane.f32.xlu0 %v1581
    %v1583 = vpop.xlane.xlu0 %1582
    %v1584 = vsel %vm29, %v1542, 0.0
    %1585 = vadd.xlane.f32.xlu0 %v1584
    %v1586 = vpop.xlane.xlu0 %1585
    %v1587 = vsel %vm29, %v1544, 0.0
    %1588 = vadd.xlane.f32.xlu0 %v1587
    %v1589 = vpop.xlane.xlu0 %1588
    %v1590 = vsel %vm29, %v1546, 0.0
    %1591 = vadd.xlane.f32.xlu0 %v1590
    %v1592 = vpop.xlane.xlu0 %1591
    %v1593 = vsel %vm29, %v1548, 0.0
    %1594 = vadd.xlane.f32.xlu0 %v1593
    %v1595 = vpop.xlane.xlu0 %1594
    %v1596 = vsel %vm29, %v1550, 0.0
    %1597 = vadd.xlane.f32.xlu0 %v1596
    %v1598 = vpop.xlane.xlu0 %1597
    %1599 = vrot.lane.b32.xlu0 %v145, 112
    %v1600 = vpop.permute.xlu0 %1599
    %v1603 = vsel %vm29, %v1520, 0
    %1605 = vmatprep.subr.mxu0 0.0
    %1606 = vmatpush1.msra.mxu0 0.0
    %1607 = vmatprep.subr.mxu0 0.0
    %1608 = vmatpush1.msra.mxu0 0.0
    %1609 = vmatprep.subr.mxu0 0.0
    %1610 = vmatpush1.msra.mxu0 0.0
    %1611 = vmatprep.subr.mxu0 0.0
    %1612 = vmatpush1.msra.mxu0 0.0
    %1613 = vmatprep.subr.mxu0 0.0
    %1614 = vmatpush1.msra.mxu0 0.0
    %1615 = vmatprep.subr.mxu0 0.0
    %1616 = vmatpush1.msra.mxu0 0.0
    %1617 = vmatprep.subr.mxu0 0.0
    %1618 = vmatpush1.msra.mxu0 0.0
    %1619 = vmatprep.subr.mxu0 0.0
    %1620 = vmatpush1.msra.mxu0 0.0
    %1621 = vmatprep.subr.mxu0 0.0
    %1622 = vmatpush1.msra.mxu0 0.0
    %1623 = vmatprep.subr.mxu0 0.0
    %1624 = vmatpush1.msra.mxu0 0.0
    %1625 = vmatprep.subr.mxu0 0.0
    %1626 = vmatpush1.msra.mxu0 0.0
    %1627 = vmatprep.subr.mxu0 0.0
    %1628 = vmatpush1.msra.mxu0 0.0
    %1629 = vmatprep.subr.mxu0 0.0
    %1630 = vmatpush1.msra.mxu0 0.0
    %1631 = vmatprep.subr.mxu0 0.0
    %1632 = vmatpush1.msra.mxu0 0.0
    %1633 = vmatprep.subr.mxu0 0.0
    %1634 = vmatpush1.msra.mxu0 0.0
    %1635 = vmatprep.subr.mxu0 0.0
    %1636 = vmatpush1.msra.mxu0 %v1600
    %1637 = vmatprep.subr.mxu0 0.0
    %1638 = vmatpush2.msra.mxu0 0.0
    %1639 = vmatprep.subr.mxu0 0.0
    %1640 = vmatpush2.msra.mxu0 0.0
    %1641 = vmatprep.subr.mxu0 0.0
    %1642 = vmatpush2.msra.mxu0 0.0
    %1643 = vmatprep.subr.mxu0 0.0
    %1644 = vmatpush2.msra.mxu0 0.0
    %1645 = vmatprep.subr.mxu0 0.0
    %1646 = vmatpush2.msra.mxu0 0.0
    %1647 = vmatprep.subr.mxu0 0.0
    %1648 = vmatpush2.msra.mxu0 0.0
    %1649 = vmatprep.subr.mxu0 0.0
    %1650 = vmatpush2.msra.mxu0 0.0
    %1651 = vmatprep.subr.mxu0 0.0
    %1652 = vmatpush2.msra.mxu0 0.0
    %1653 = vmatprep.subr.mxu0 0.0
    %1654 = vmatpush2.msra.mxu0 0.0
    %1655 = vmatprep.subr.mxu0 0.0
    %1656 = vmatpush2.msra.mxu0 0.0
    %1657 = vmatprep.subr.mxu0 0.0
    %1658 = vmatpush2.msra.mxu0 0.0
    %1659 = vmatprep.subr.mxu0 0.0
    %1660 = vmatpush2.msra.mxu0 0.0
    %1661 = vmatprep.subr.mxu0 0.0
    %1662 = vmatpush2.msra.mxu0 0.0
    %1663 = vmatprep.subr.mxu0 0.0
    %1664 = vmatpush2.msra.mxu0 0.0
    %1665 = vmatprep.subr.mxu0 0.0
    %1666 = vmatpush2.msra.mxu0 0.0
    %1667 = vmatprep.subr.mxu0 0.0
    %1668 = vmatpush2.msra.mxu0 0.0
    %1669 = vmatprep.mubr.f32.mxu0 0.0
    %1670 = vmatmul.mubr.f32.gmra.mxu0 %v1603
    %v1671 = vpop.f32.mrf.mxu0
    %v1672 = vadd.f32 0.0, %v1671
    %v1673 = vpop.f32.mrf.mxu0
    %1674 = vdwg.mxu0
    %1675 = vrot.lane.b32.xlu0 %v150, 112
    %v1676 = vpop.permute.xlu0 %1675
    %v1679 = vsel %vm29, %v1522, 0
    %1681 = vmatprep.subr.mxu0 0.0
    %1682 = vmatpush1.msra.mxu0 0.0
    %1683 = vmatprep.subr.mxu0 0.0
    %1684 = vmatpush1.msra.mxu0 0.0
    %1685 = vmatprep.subr.mxu0 0.0
    %1686 = vmatpush1.msra.mxu0 0.0
    %1687 = vmatprep.subr.mxu0 0.0
    %1688 = vmatpush1.msra.mxu0 0.0
    %1689 = vmatprep.subr.mxu0 0.0
    %1690 = vmatpush1.msra.mxu0 0.0
    %1691 = vmatprep.subr.mxu0 0.0
    %1692 = vmatpush1.msra.mxu0 0.0
    %1693 = vmatprep.subr.mxu0 0.0
    %1694 = vmatpush1.msra.mxu0 0.0
    %1695 = vmatprep.subr.mxu0 0.0
    %1696 = vmatpush1.msra.mxu0 0.0
    %1697 = vmatprep.subr.mxu0 0.0
    %1698 = vmatpush1.msra.mxu0 0.0
    %1699 = vmatprep.subr.mxu0 0.0
    %1700 = vmatpush1.msra.mxu0 0.0
    %1701 = vmatprep.subr.mxu0 0.0
    %1702 = vmatpush1.msra.mxu0 0.0
    %1703 = vmatprep.subr.mxu0 0.0
    %1704 = vmatpush1.msra.mxu0 0.0
    %1705 = vmatprep.subr.mxu0 0.0
    %1706 = vmatpush1.msra.mxu0 0.0
    %1707 = vmatprep.subr.mxu0 0.0
    %1708 = vmatpush1.msra.mxu0 0.0
    %1709 = vmatprep.subr.mxu0 0.0
    %1710 = vmatpush1.msra.mxu0 0.0
    %1711 = vmatprep.subr.mxu0 0.0
    %1712 = vmatpush1.msra.mxu0 %v1676
    %1713 = vmatprep.subr.mxu0 0.0
    %1714 = vmatpush2.msra.mxu0 0.0
    %1715 = vmatprep.subr.mxu0 0.0
    %1716 = vmatpush2.msra.mxu0 0.0
    %1717 = vmatprep.subr.mxu0 0.0
    %1718 = vmatpush2.msra.mxu0 0.0
    %1719 = vmatprep.subr.mxu0 0.0
    %1720 = vmatpush2.msra.mxu0 0.0
    %1721 = vmatprep.subr.mxu0 0.0
    %1722 = vmatpush2.msra.mxu0 0.0
    %1723 = vmatprep.subr.mxu0 0.0
    %1724 = vmatpush2.msra.mxu0 0.0
    %1725 = vmatprep.subr.mxu0 0.0
    %1726 = vmatpush2.msra.mxu0 0.0
    %1727 = vmatprep.subr.mxu0 0.0
    %1728 = vmatpush2.msra.mxu0 0.0
    %1729 = vmatprep.subr.mxu0 0.0
    %1730 = vmatpush2.msra.mxu0 0.0
    %1731 = vmatprep.subr.mxu0 0.0
    %1732 = vmatpush2.msra.mxu0 0.0
    %1733 = vmatprep.subr.mxu0 0.0
    %1734 = vmatpush2.msra.mxu0 0.0
    %1735 = vmatprep.subr.mxu0 0.0
    %1736 = vmatpush2.msra.mxu0 0.0
    %1737 = vmatprep.subr.mxu0 0.0
    %1738 = vmatpush2.msra.mxu0 0.0
    %1739 = vmatprep.subr.mxu0 0.0
    %1740 = vmatpush2.msra.mxu0 0.0
    %1741 = vmatprep.subr.mxu0 0.0
    %1742 = vmatpush2.msra.mxu0 0.0
    %1743 = vmatprep.subr.mxu0 0.0
    %1744 = vmatpush2.msra.mxu0 0.0
    %1745 = vmatprep.mubr.f32.mxu0 0.0
    %1746 = vmatmul.mubr.f32.gmra.mxu0 %v1679
    %v1747 = vpop.f32.mrf.mxu0
    %v1748 = vadd.f32 0.0, %v1747
    %v1749 = vpop.f32.mrf.mxu0
    %1750 = vdwg.mxu0
    %1751 = vrot.lane.b32.xlu0 %v155, 112
    %v1752 = vpop.permute.xlu0 %1751
    %v1755 = vsel %vm29, %v1524, 0
    %1757 = vmatprep.subr.mxu0 0.0
    %1758 = vmatpush1.msra.mxu0 0.0
    %1759 = vmatprep.subr.mxu0 0.0
    %1760 = vmatpush1.msra.mxu0 0.0
    %1761 = vmatprep.subr.mxu0 0.0
    %1762 = vmatpush1.msra.mxu0 0.0
    %1763 = vmatprep.subr.mxu0 0.0
    %1764 = vmatpush1.msra.mxu0 0.0
    %1765 = vmatprep.subr.mxu0 0.0
    %1766 = vmatpush1.msra.mxu0 0.0
    %1767 = vmatprep.subr.mxu0 0.0
    %1768 = vmatpush1.msra.mxu0 0.0
    %1769 = vmatprep.subr.mxu0 0.0
    %1770 = vmatpush1.msra.mxu0 0.0
    %1771 = vmatprep.subr.mxu0 0.0
    %1772 = vmatpush1.msra.mxu0 0.0
    %1773 = vmatprep.subr.mxu0 0.0
    %1774 = vmatpush1.msra.mxu0 0.0
    %1775 = vmatprep.subr.mxu0 0.0
    %1776 = vmatpush1.msra.mxu0 0.0
    %1777 = vmatprep.subr.mxu0 0.0
    %1778 = vmatpush1.msra.mxu0 0.0
    %1779 = vmatprep.subr.mxu0 0.0
    %1780 = vmatpush1.msra.mxu0 0.0
    %1781 = vmatprep.subr.mxu0 0.0
    %1782 = vmatpush1.msra.mxu0 0.0
    %1783 = vmatprep.subr.mxu0 0.0
    %1784 = vmatpush1.msra.mxu0 0.0
    %1785 = vmatprep.subr.mxu0 0.0
    %1786 = vmatpush1.msra.mxu0 0.0
    %1787 = vmatprep.subr.mxu0 0.0
    %1788 = vmatpush1.msra.mxu0 %v1752
    %1789 = vmatprep.subr.mxu0 0.0
    %1790 = vmatpush2.msra.mxu0 0.0
    %1791 = vmatprep.subr.mxu0 0.0
    %1792 = vmatpush2.msra.mxu0 0.0
    %1793 = vmatprep.subr.mxu0 0.0
    %1794 = vmatpush2.msra.mxu0 0.0
    %1795 = vmatprep.subr.mxu0 0.0
    %1796 = vmatpush2.msra.mxu0 0.0
    %1797 = vmatprep.subr.mxu0 0.0
    %1798 = vmatpush2.msra.mxu0 0.0
    %1799 = vmatprep.subr.mxu0 0.0
    %1800 = vmatpush2.msra.mxu0 0.0
    %1801 = vmatprep.subr.mxu0 0.0
    %1802 = vmatpush2.msra.mxu0 0.0
    %1803 = vmatprep.subr.mxu0 0.0
    %1804 = vmatpush2.msra.mxu0 0.0
    %1805 = vmatprep.subr.mxu0 0.0
    %1806 = vmatpush2.msra.mxu0 0.0
    %1807 = vmatprep.subr.mxu0 0.0
    %1808 = vmatpush2.msra.mxu0 0.0
    %1809 = vmatprep.subr.mxu0 0.0
    %1810 = vmatpush2.msra.mxu0 0.0
    %1811 = vmatprep.subr.mxu0 0.0
    %1812 = vmatpush2.msra.mxu0 0.0
    %1813 = vmatprep.subr.mxu0 0.0
    %1814 = vmatpush2.msra.mxu0 0.0
    %1815 = vmatprep.subr.mxu0 0.0
    %1816 = vmatpush2.msra.mxu0 0.0
    %1817 = vmatprep.subr.mxu0 0.0
    %1818 = vmatpush2.msra.mxu0 0.0
    %1819 = vmatprep.subr.mxu0 0.0
    %1820 = vmatpush2.msra.mxu0 0.0
    %1821 = vmatprep.mubr.f32.mxu0 0.0
    %1822 = vmatmul.mubr.f32.gmra.mxu0 %v1755
    %v1823 = vpop.f32.mrf.mxu0
    %v1824 = vadd.f32 0.0, %v1823
    %v1825 = vpop.f32.mrf.mxu0
    %1826 = vdwg.mxu0
    %1827 = vrot.lane.b32.xlu0 %v160, 112
    %v1828 = vpop.permute.xlu0 %1827
    %v1831 = vsel %vm29, %v1526, 0
    %1833 = vmatprep.subr.mxu0 0.0
    %1834 = vmatpush1.msra.mxu0 0.0
    %1835 = vmatprep.subr.mxu0 0.0
    %1836 = vmatpush1.msra.mxu0 0.0
    %1837 = vmatprep.subr.mxu0 0.0
    %1838 = vmatpush1.msra.mxu0 0.0
    %1839 = vmatprep.subr.mxu0 0.0
    %1840 = vmatpush1.msra.mxu0 0.0
    %1841 = vmatprep.subr.mxu0 0.0
    %1842 = vmatpush1.msra.mxu0 0.0
    %1843 = vmatprep.subr.mxu0 0.0
    %1844 = vmatpush1.msra.mxu0 0.0
    %1845 = vmatprep.subr.mxu0 0.0
    %1846 = vmatpush1.msra.mxu0 0.0
    %1847 = vmatprep.subr.mxu0 0.0
    %1848 = vmatpush1.msra.mxu0 0.0
    %1849 = vmatprep.subr.mxu0 0.0
    %1850 = vmatpush1.msra.mxu0 0.0
    %1851 = vmatprep.subr.mxu0 0.0
    %1852 = vmatpush1.msra.mxu0 0.0
    %1853 = vmatprep.subr.mxu0 0.0
    %1854 = vmatpush1.msra.mxu0 0.0
    %1855 = vmatprep.subr.mxu0 0.0
    %1856 = vmatpush1.msra.mxu0 0.0
    %1857 = vmatprep.subr.mxu0 0.0
    %1858 = vmatpush1.msra.mxu0 0.0
    %1859 = vmatprep.subr.mxu0 0.0
    %1860 = vmatpush1.msra.mxu0 0.0
    %1861 = vmatprep.subr.mxu0 0.0
    %1862 = vmatpush1.msra.mxu0 0.0
    %1863 = vmatprep.subr.mxu0 0.0
    %1864 = vmatpush1.msra.mxu0 %v1828
    %1865 = vmatprep.subr.mxu0 0.0
    %1866 = vmatpush2.msra.mxu0 0.0
    %1867 = vmatprep.subr.mxu0 0.0
    %1868 = vmatpush2.msra.mxu0 0.0
    %1869 = vmatprep.subr.mxu0 0.0
    %1870 = vmatpush2.msra.mxu0 0.0
    %1871 = vmatprep.subr.mxu0 0.0
    %1872 = vmatpush2.msra.mxu0 0.0
    %1873 = vmatprep.subr.mxu0 0.0
    %1874 = vmatpush2.msra.mxu0 0.0
    %1875 = vmatprep.subr.mxu0 0.0
    %1876 = vmatpush2.msra.mxu0 0.0
    %1877 = vmatprep.subr.mxu0 0.0
    %1878 = vmatpush2.msra.mxu0 0.0
    %1879 = vmatprep.subr.mxu0 0.0
    %1880 = vmatpush2.msra.mxu0 0.0
    %1881 = vmatprep.subr.mxu0 0.0
    %1882 = vmatpush2.msra.mxu0 0.0
    %1883 = vmatprep.subr.mxu0 0.0
    %1884 = vmatpush2.msra.mxu0 0.0
    %1885 = vmatprep.subr.mxu0 0.0
    %1886 = vmatpush2.msra.mxu0 0.0
    %1887 = vmatprep.subr.mxu0 0.0
    %1888 = vmatpush2.msra.mxu0 0.0
    %1889 = vmatprep.subr.mxu0 0.0
    %1890 = vmatpush2.msra.mxu0 0.0
    %1891 = vmatprep.subr.mxu0 0.0
    %1892 = vmatpush2.msra.mxu0 0.0
    %1893 = vmatprep.subr.mxu0 0.0
    %1894 = vmatpush2.msra.mxu0 0.0
    %1895 = vmatprep.subr.mxu0 0.0
    %1896 = vmatpush2.msra.mxu0 0.0
    %1897 = vmatprep.mubr.f32.mxu0 0.0
    %1898 = vmatmul.mubr.f32.gmra.mxu0 %v1831
    %v1899 = vpop.f32.mrf.mxu0
    %v1900 = vadd.f32 0.0, %v1899
    %v1901 = vpop.f32.mrf.mxu0
    %1902 = vdwg.mxu0
    %1903 = vrot.lane.b32.xlu0 %v165, 112
    %v1904 = vpop.permute.xlu0 %1903
    %v1907 = vsel %vm29, %v1528, 0
    %1909 = vmatprep.subr.mxu0 0.0
    %1910 = vmatpush1.msra.mxu0 0.0
    %1911 = vmatprep.subr.mxu0 0.0
    %1912 = vmatpush1.msra.mxu0 0.0
    %1913 = vmatprep.subr.mxu0 0.0
    %1914 = vmatpush1.msra.mxu0 0.0
    %1915 = vmatprep.subr.mxu0 0.0
    %1916 = vmatpush1.msra.mxu0 0.0
    %1917 = vmatprep.subr.mxu0 0.0
    %1918 = vmatpush1.msra.mxu0 0.0
    %1919 = vmatprep.subr.mxu0 0.0
    %1920 = vmatpush1.msra.mxu0 0.0
    %1921 = vmatprep.subr.mxu0 0.0
    %1922 = vmatpush1.msra.mxu0 0.0
    %1923 = vmatprep.subr.mxu0 0.0
    %1924 = vmatpush1.msra.mxu0 0.0
    %1925 = vmatprep.subr.mxu0 0.0
    %1926 = vmatpush1.msra.mxu0 0.0
    %1927 = vmatprep.subr.mxu0 0.0
    %1928 = vmatpush1.msra.mxu0 0.0
    %1929 = vmatprep.subr.mxu0 0.0
    %1930 = vmatpush1.msra.mxu0 0.0
    %1931 = vmatprep.subr.mxu0 0.0
    %1932 = vmatpush1.msra.mxu0 0.0
    %1933 = vmatprep.subr.mxu0 0.0
    %1934 = vmatpush1.msra.mxu0 0.0
    %1935 = vmatprep.subr.mxu0 0.0
    %1936 = vmatpush1.msra.mxu0 0.0
    %1937 = vmatprep.subr.mxu0 0.0
    %1938 = vmatpush1.msra.mxu0 0.0
    %1939 = vmatprep.subr.mxu0 0.0
    %1940 = vmatpush1.msra.mxu0 %v1904
    %1941 = vmatprep.subr.mxu0 0.0
    %1942 = vmatpush2.msra.mxu0 0.0
    %1943 = vmatprep.subr.mxu0 0.0
    %1944 = vmatpush2.msra.mxu0 0.0
    %1945 = vmatprep.subr.mxu0 0.0
    %1946 = vmatpush2.msra.mxu0 0.0
    %1947 = vmatprep.subr.mxu0 0.0
    %1948 = vmatpush2.msra.mxu0 0.0
    %1949 = vmatprep.subr.mxu0 0.0
    %1950 = vmatpush2.msra.mxu0 0.0
    %1951 = vmatprep.subr.mxu0 0.0
    %1952 = vmatpush2.msra.mxu0 0.0
    %1953 = vmatprep.subr.mxu0 0.0
    %1954 = vmatpush2.msra.mxu0 0.0
    %1955 = vmatprep.subr.mxu0 0.0
    %1956 = vmatpush2.msra.mxu0 0.0
    %1957 = vmatprep.subr.mxu0 0.0
    %1958 = vmatpush2.msra.mxu0 0.0
    %1959 = vmatprep.subr.mxu0 0.0
    %1960 = vmatpush2.msra.mxu0 0.0
    %1961 = vmatprep.subr.mxu0 0.0
    %1962 = vmatpush2.msra.mxu0 0.0
    %1963 = vmatprep.subr.mxu0 0.0
    %1964 = vmatpush2.msra.mxu0 0.0
    %1965 = vmatprep.subr.mxu0 0.0
    %1966 = vmatpush2.msra.mxu0 0.0
    %1967 = vmatprep.subr.mxu0 0.0
    %1968 = vmatpush2.msra.mxu0 0.0
    %1969 = vmatprep.subr.mxu0 0.0
    %1970 = vmatpush2.msra.mxu0 0.0
    %1971 = vmatprep.subr.mxu0 0.0
    %1972 = vmatpush2.msra.mxu0 0.0
    %1973 = vmatprep.mubr.f32.mxu0 0.0
    %1974 = vmatmul.mubr.f32.gmra.mxu0 %v1907
    %v1975 = vpop.f32.mrf.mxu0
    %v1976 = vadd.f32 0.0, %v1975
    %v1977 = vpop.f32.mrf.mxu0
    %1978 = vdwg.mxu0
    %1979 = vrot.lane.b32.xlu0 %v170, 112
    %v1980 = vpop.permute.xlu0 %1979
    %v1983 = vsel %vm29, %v1530, 0
    %1985 = vmatprep.subr.mxu0 0.0
    %1986 = vmatpush1.msra.mxu0 0.0
    %1987 = vmatprep.subr.mxu0 0.0
    %1988 = vmatpush1.msra.mxu0 0.0
    %1989 = vmatprep.subr.mxu0 0.0
    %1990 = vmatpush1.msra.mxu0 0.0
    %1991 = vmatprep.subr.mxu0 0.0
    %1992 = vmatpush1.msra.mxu0 0.0
    %1993 = vmatprep.subr.mxu0 0.0
    %1994 = vmatpush1.msra.mxu0 0.0
    %1995 = vmatprep.subr.mxu0 0.0
    %1996 = vmatpush1.msra.mxu0 0.0
    %1997 = vmatprep.subr.mxu0 0.0
    %1998 = vmatpush1.msra.mxu0 0.0
    %1999 = vmatprep.subr.mxu0 0.0
    %2000 = vmatpush1.msra.mxu0 0.0
    %2001 = vmatprep.subr.mxu0 0.0
    %2002 = vmatpush1.msra.mxu0 0.0
    %2003 = vmatprep.subr.mxu0 0.0
    %2004 = vmatpush1.msra.mxu0 0.0
    %2005 = vmatprep.subr.mxu0 0.0
    %2006 = vmatpush1.msra.mxu0 0.0
    %2007 = vmatprep.subr.mxu0 0.0
    %2008 = vmatpush1.msra.mxu0 0.0
    %2009 = vmatprep.subr.mxu0 0.0
    %2010 = vmatpush1.msra.mxu0 0.0
    %2011 = vmatprep.subr.mxu0 0.0
    %2012 = vmatpush1.msra.mxu0 0.0
    %2013 = vmatprep.subr.mxu0 0.0
    %2014 = vmatpush1.msra.mxu0 0.0
    %2015 = vmatprep.subr.mxu0 0.0
    %2016 = vmatpush1.msra.mxu0 %v1980
    %2017 = vmatprep.subr.mxu0 0.0
    %2018 = vmatpush2.msra.mxu0 0.0
    %2019 = vmatprep.subr.mxu0 0.0
    %2020 = vmatpush2.msra.mxu0 0.0
    %2021 = vmatprep.subr.mxu0 0.0
    %2022 = vmatpush2.msra.mxu0 0.0
    %2023 = vmatprep.subr.mxu0 0.0
    %2024 = vmatpush2.msra.mxu0 0.0
    %2025 = vmatprep.subr.mxu0 0.0
    %2026 = vmatpush2.msra.mxu0 0.0
    %2027 = vmatprep.subr.mxu0 0.0
    %2028 = vmatpush2.msra.mxu0 0.0
    %2029 = vmatprep.subr.mxu0 0.0
    %2030 = vmatpush2.msra.mxu0 0.0
    %2031 = vmatprep.subr.mxu0 0.0
    %2032 = vmatpush2.msra.mxu0 0.0
    %2033 = vmatprep.subr.mxu0 0.0
    %2034 = vmatpush2.msra.mxu0 0.0
    %2035 = vmatprep.subr.mxu0 0.0
    %2036 = vmatpush2.msra.mxu0 0.0
    %2037 = vmatprep.subr.mxu0 0.0
    %2038 = vmatpush2.msra.mxu0 0.0
    %2039 = vmatprep.subr.mxu0 0.0
    %2040 = vmatpush2.msra.mxu0 0.0
    %2041 = vmatprep.subr.mxu0 0.0
    %2042 = vmatpush2.msra.mxu0 0.0
    %2043 = vmatprep.subr.mxu0 0.0
    %2044 = vmatpush2.msra.mxu0 0.0
    %2045 = vmatprep.subr.mxu0 0.0
    %2046 = vmatpush2.msra.mxu0 0.0
    %2047 = vmatprep.subr.mxu0 0.0
    %2048 = vmatpush2.msra.mxu0 0.0
    %2049 = vmatprep.mubr.f32.mxu0 0.0
    %2050 = vmatmul.mubr.f32.gmra.mxu0 %v1983
    %v2051 = vpop.f32.mrf.mxu0
    %v2052 = vadd.f32 0.0, %v2051
    %v2053 = vpop.f32.mrf.mxu0
    %2054 = vdwg.mxu0
    %2055 = vrot.lane.b32.xlu0 %v175, 112
    %v2056 = vpop.permute.xlu0 %2055
    %v2059 = vsel %vm29, %v1532, 0
    %2061 = vmatprep.subr.mxu0 0.0
    %2062 = vmatpush1.msra.mxu0 0.0
    %2063 = vmatprep.subr.mxu0 0.0
    %2064 = vmatpush1.msra.mxu0 0.0
    %2065 = vmatprep.subr.mxu0 0.0
    %2066 = vmatpush1.msra.mxu0 0.0
    %2067 = vmatprep.subr.mxu0 0.0
    %2068 = vmatpush1.msra.mxu0 0.0
    %2069 = vmatprep.subr.mxu0 0.0
    %2070 = vmatpush1.msra.mxu0 0.0
    %2071 = vmatprep.subr.mxu0 0.0
    %2072 = vmatpush1.msra.mxu0 0.0
    %2073 = vmatprep.subr.mxu0 0.0
    %2074 = vmatpush1.msra.mxu0 0.0
    %2075 = vmatprep.subr.mxu0 0.0
    %2076 = vmatpush1.msra.mxu0 0.0
    %2077 = vmatprep.subr.mxu0 0.0
    %2078 = vmatpush1.msra.mxu0 0.0
    %2079 = vmatprep.subr.mxu0 0.0
    %2080 = vmatpush1.msra.mxu0 0.0
    %2081 = vmatprep.subr.mxu0 0.0
    %2082 = vmatpush1.msra.mxu0 0.0
    %2083 = vmatprep.subr.mxu0 0.0
    %2084 = vmatpush1.msra.mxu0 0.0
    %2085 = vmatprep.subr.mxu0 0.0
    %2086 = vmatpush1.msra.mxu0 0.0
    %2087 = vmatprep.subr.mxu0 0.0
    %2088 = vmatpush1.msra.mxu0 0.0
    %2089 = vmatprep.subr.mxu0 0.0
    %2090 = vmatpush1.msra.mxu0 0.0
    %2091 = vmatprep.subr.mxu0 0.0
    %2092 = vmatpush1.msra.mxu0 %v2056
    %2093 = vmatprep.subr.mxu0 0.0
    %2094 = vmatpush2.msra.mxu0 0.0
    %2095 = vmatprep.subr.mxu0 0.0
    %2096 = vmatpush2.msra.mxu0 0.0
    %2097 = vmatprep.subr.mxu0 0.0
    %2098 = vmatpush2.msra.mxu0 0.0
    %2099 = vmatprep.subr.mxu0 0.0
    %2100 = vmatpush2.msra.mxu0 0.0
    %2101 = vmatprep.subr.mxu0 0.0
    %2102 = vmatpush2.msra.mxu0 0.0
    %2103 = vmatprep.subr.mxu0 0.0
    %2104 = vmatpush2.msra.mxu0 0.0
    %2105 = vmatprep.subr.mxu0 0.0
    %2106 = vmatpush2.msra.mxu0 0.0
    %2107 = vmatprep.subr.mxu0 0.0
    %2108 = vmatpush2.msra.mxu0 0.0
    %2109 = vmatprep.subr.mxu0 0.0
    %2110 = vmatpush2.msra.mxu0 0.0
    %2111 = vmatprep.subr.mxu0 0.0
    %2112 = vmatpush2.msra.mxu0 0.0
    %2113 = vmatprep.subr.mxu0 0.0
    %2114 = vmatpush2.msra.mxu0 0.0
    %2115 = vmatprep.subr.mxu0 0.0
    %2116 = vmatpush2.msra.mxu0 0.0
    %2117 = vmatprep.subr.mxu0 0.0
    %2118 = vmatpush2.msra.mxu0 0.0
    %2119 = vmatprep.subr.mxu0 0.0
    %2120 = vmatpush2.msra.mxu0 0.0
    %2121 = vmatprep.subr.mxu0 0.0
    %2122 = vmatpush2.msra.mxu0 0.0
    %2123 = vmatprep.subr.mxu0 0.0
    %2124 = vmatpush2.msra.mxu0 0.0
    %2125 = vmatprep.mubr.f32.mxu0 0.0
    %2126 = vmatmul.mubr.f32.gmra.mxu0 %v2059
    %v2127 = vpop.f32.mrf.mxu0
    %v2128 = vadd.f32 0.0, %v2127
    %v2129 = vpop.f32.mrf.mxu0
    %2130 = vdwg.mxu0
    %2131 = vrot.lane.b32.xlu0 %v180, 112
    %v2132 = vpop.permute.xlu0 %2131
    %v2135 = vsel %vm29, %v1534, 0
    %2137 = vmatprep.subr.mxu0 0.0
    %2138 = vmatpush1.msra.mxu0 0.0
    %2139 = vmatprep.subr.mxu0 0.0
    %2140 = vmatpush1.msra.mxu0 0.0
    %2141 = vmatprep.subr.mxu0 0.0
    %2142 = vmatpush1.msra.mxu0 0.0
    %2143 = vmatprep.subr.mxu0 0.0
    %2144 = vmatpush1.msra.mxu0 0.0
    %2145 = vmatprep.subr.mxu0 0.0
    %2146 = vmatpush1.msra.mxu0 0.0
    %2147 = vmatprep.subr.mxu0 0.0
    %2148 = vmatpush1.msra.mxu0 0.0
    %2149 = vmatprep.subr.mxu0 0.0
    %2150 = vmatpush1.msra.mxu0 0.0
    %2151 = vmatprep.subr.mxu0 0.0
    %2152 = vmatpush1.msra.mxu0 0.0
    %2153 = vmatprep.subr.mxu0 0.0
    %2154 = vmatpush1.msra.mxu0 0.0
    %2155 = vmatprep.subr.mxu0 0.0
    %2156 = vmatpush1.msra.mxu0 0.0
    %2157 = vmatprep.subr.mxu0 0.0
    %2158 = vmatpush1.msra.mxu0 0.0
    %2159 = vmatprep.subr.mxu0 0.0
    %2160 = vmatpush1.msra.mxu0 0.0
    %2161 = vmatprep.subr.mxu0 0.0
    %2162 = vmatpush1.msra.mxu0 0.0
    %2163 = vmatprep.subr.mxu0 0.0
    %2164 = vmatpush1.msra.mxu0 0.0
    %2165 = vmatprep.subr.mxu0 0.0
    %2166 = vmatpush1.msra.mxu0 0.0
    %2167 = vmatprep.subr.mxu0 0.0
    %2168 = vmatpush1.msra.mxu0 %v2132
    %2169 = vmatprep.subr.mxu0 0.0
    %2170 = vmatpush2.msra.mxu0 0.0
    %2171 = vmatprep.subr.mxu0 0.0
    %2172 = vmatpush2.msra.mxu0 0.0
    %2173 = vmatprep.subr.mxu0 0.0
    %2174 = vmatpush2.msra.mxu0 0.0
    %2175 = vmatprep.subr.mxu0 0.0
    %2176 = vmatpush2.msra.mxu0 0.0
    %2177 = vmatprep.subr.mxu0 0.0
    %2178 = vmatpush2.msra.mxu0 0.0
    %2179 = vmatprep.subr.mxu0 0.0
    %2180 = vmatpush2.msra.mxu0 0.0
    %2181 = vmatprep.subr.mxu0 0.0
    %2182 = vmatpush2.msra.mxu0 0.0
    %2183 = vmatprep.subr.mxu0 0.0
    %2184 = vmatpush2.msra.mxu0 0.0
    %2185 = vmatprep.subr.mxu0 0.0
    %2186 = vmatpush2.msra.mxu0 0.0
    %2187 = vmatprep.subr.mxu0 0.0
    %2188 = vmatpush2.msra.mxu0 0.0
    %2189 = vmatprep.subr.mxu0 0.0
    %2190 = vmatpush2.msra.mxu0 0.0
    %2191 = vmatprep.subr.mxu0 0.0
    %2192 = vmatpush2.msra.mxu0 0.0
    %2193 = vmatprep.subr.mxu0 0.0
    %2194 = vmatpush2.msra.mxu0 0.0
    %2195 = vmatprep.subr.mxu0 0.0
    %2196 = vmatpush2.msra.mxu0 0.0
    %2197 = vmatprep.subr.mxu0 0.0
    %2198 = vmatpush2.msra.mxu0 0.0
    %2199 = vmatprep.subr.mxu0 0.0
    %2200 = vmatpush2.msra.mxu0 0.0
    %2201 = vmatprep.mubr.f32.mxu0 0.0
    %2202 = vmatmul.mubr.f32.gmra.mxu0 %v2135
    %v2203 = vpop.f32.mrf.mxu0
    %v2204 = vadd.f32 0.0, %v2203
    %v2205 = vpop.f32.mrf.mxu0
    %2206 = vdwg.mxu0
    %2207 = vrot.lane.b32.xlu0 %v185, 112
    %v2208 = vpop.permute.xlu0 %2207
    %v2211 = vsel %vm29, %v1536, 0
    %2213 = vmatprep.subr.mxu0 0.0
    %2214 = vmatpush1.msra.mxu0 0.0
    %2215 = vmatprep.subr.mxu0 0.0
    %2216 = vmatpush1.msra.mxu0 0.0
    %2217 = vmatprep.subr.mxu0 0.0
    %2218 = vmatpush1.msra.mxu0 0.0
    %2219 = vmatprep.subr.mxu0 0.0
    %2220 = vmatpush1.msra.mxu0 0.0
    %2221 = vmatprep.subr.mxu0 0.0
    %2222 = vmatpush1.msra.mxu0 0.0
    %2223 = vmatprep.subr.mxu0 0.0
    %2224 = vmatpush1.msra.mxu0 0.0
    %2225 = vmatprep.subr.mxu0 0.0
    %2226 = vmatpush1.msra.mxu0 0.0
    %2227 = vmatprep.subr.mxu0 0.0
    %2228 = vmatpush1.msra.mxu0 0.0
    %2229 = vmatprep.subr.mxu0 0.0
    %2230 = vmatpush1.msra.mxu0 0.0
    %2231 = vmatprep.subr.mxu0 0.0
    %2232 = vmatpush1.msra.mxu0 0.0
    %2233 = vmatprep.subr.mxu0 0.0
    %2234 = vmatpush1.msra.mxu0 0.0
    %2235 = vmatprep.subr.mxu0 0.0
    %2236 = vmatpush1.msra.mxu0 0.0
    %2237 = vmatprep.subr.mxu0 0.0
    %2238 = vmatpush1.msra.mxu0 0.0
    %2239 = vmatprep.subr.mxu0 0.0
    %2240 = vmatpush1.msra.mxu0 0.0
    %2241 = vmatprep.subr.mxu0 0.0
    %2242 = vmatpush1.msra.mxu0 0.0
    %2243 = vmatprep.subr.mxu0 0.0
    %2244 = vmatpush1.msra.mxu0 %v2208
    %2245 = vmatprep.subr.mxu0 0.0
    %2246 = vmatpush2.msra.mxu0 0.0
    %2247 = vmatprep.subr.mxu0 0.0
    %2248 = vmatpush2.msra.mxu0 0.0
    %2249 = vmatprep.subr.mxu0 0.0
    %2250 = vmatpush2.msra.mxu0 0.0
    %2251 = vmatprep.subr.mxu0 0.0
    %2252 = vmatpush2.msra.mxu0 0.0
    %2253 = vmatprep.subr.mxu0 0.0
    %2254 = vmatpush2.msra.mxu0 0.0
    %2255 = vmatprep.subr.mxu0 0.0
    %2256 = vmatpush2.msra.mxu0 0.0
    %2257 = vmatprep.subr.mxu0 0.0
    %2258 = vmatpush2.msra.mxu0 0.0
    %2259 = vmatprep.subr.mxu0 0.0
    %2260 = vmatpush2.msra.mxu0 0.0
    %2261 = vmatprep.subr.mxu0 0.0
    %2262 = vmatpush2.msra.mxu0 0.0
    %2263 = vmatprep.subr.mxu0 0.0
    %2264 = vmatpush2.msra.mxu0 0.0
    %2265 = vmatprep.subr.mxu0 0.0
    %2266 = vmatpush2.msra.mxu0 0.0
    %2267 = vmatprep.subr.mxu0 0.0
    %2268 = vmatpush2.msra.mxu0 0.0
    %2269 = vmatprep.subr.mxu0 0.0
    %2270 = vmatpush2.msra.mxu0 0.0
    %2271 = vmatprep.subr.mxu0 0.0
    %2272 = vmatpush2.msra.mxu0 0.0
    %2273 = vmatprep.subr.mxu0 0.0
    %2274 = vmatpush2.msra.mxu0 0.0
    %2275 = vmatprep.subr.mxu0 0.0
    %2276 = vmatpush2.msra.mxu0 0.0
    %2277 = vmatprep.mubr.f32.mxu0 0.0
    %2278 = vmatmul.mubr.f32.gmra.mxu0 %v2211
    %v2279 = vpop.f32.mrf.mxu0
    %v2280 = vadd.f32 0.0, %v2279
    %v2281 = vpop.f32.mrf.mxu0
    %2282 = vdwg.mxu0
    %2283 = vrot.lane.b32.xlu0 %v190, 112
    %v2284 = vpop.permute.xlu0 %2283
    %v2287 = vsel %vm29, %v1538, 0
    %2289 = vmatprep.subr.mxu0 0.0
    %2290 = vmatpush1.msra.mxu0 0.0
    %2291 = vmatprep.subr.mxu0 0.0
    %2292 = vmatpush1.msra.mxu0 0.0
    %2293 = vmatprep.subr.mxu0 0.0
    %2294 = vmatpush1.msra.mxu0 0.0
    %2295 = vmatprep.subr.mxu0 0.0
    %2296 = vmatpush1.msra.mxu0 0.0
    %2297 = vmatprep.subr.mxu0 0.0
    %2298 = vmatpush1.msra.mxu0 0.0
    %2299 = vmatprep.subr.mxu0 0.0
    %2300 = vmatpush1.msra.mxu0 0.0
    %2301 = vmatprep.subr.mxu0 0.0
    %2302 = vmatpush1.msra.mxu0 0.0
    %2303 = vmatprep.subr.mxu0 0.0
    %2304 = vmatpush1.msra.mxu0 0.0
    %2305 = vmatprep.subr.mxu0 0.0
    %2306 = vmatpush1.msra.mxu0 0.0
    %2307 = vmatprep.subr.mxu0 0.0
    %2308 = vmatpush1.msra.mxu0 0.0
    %2309 = vmatprep.subr.mxu0 0.0
    %2310 = vmatpush1.msra.mxu0 0.0
    %2311 = vmatprep.subr.mxu0 0.0
    %2312 = vmatpush1.msra.mxu0 0.0
    %2313 = vmatprep.subr.mxu0 0.0
    %2314 = vmatpush1.msra.mxu0 0.0
    %2315 = vmatprep.subr.mxu0 0.0
    %2316 = vmatpush1.msra.mxu0 0.0
    %2317 = vmatprep.subr.mxu0 0.0
    %2318 = vmatpush1.msra.mxu0 0.0
    %2319 = vmatprep.subr.mxu0 0.0
    %2320 = vmatpush1.msra.mxu0 %v2284
    %2321 = vmatprep.subr.mxu0 0.0
    %2322 = vmatpush2.msra.mxu0 0.0
    %2323 = vmatprep.subr.mxu0 0.0
    %2324 = vmatpush2.msra.mxu0 0.0
    %2325 = vmatprep.subr.mxu0 0.0
    %2326 = vmatpush2.msra.mxu0 0.0
    %2327 = vmatprep.subr.mxu0 0.0
    %2328 = vmatpush2.msra.mxu0 0.0
    %2329 = vmatprep.subr.mxu0 0.0
    %2330 = vmatpush2.msra.mxu0 0.0
    %2331 = vmatprep.subr.mxu0 0.0
    %2332 = vmatpush2.msra.mxu0 0.0
    %2333 = vmatprep.subr.mxu0 0.0
    %2334 = vmatpush2.msra.mxu0 0.0
    %2335 = vmatprep.subr.mxu0 0.0
    %2336 = vmatpush2.msra.mxu0 0.0
    %2337 = vmatprep.subr.mxu0 0.0
    %2338 = vmatpush2.msra.mxu0 0.0
    %2339 = vmatprep.subr.mxu0 0.0
    %2340 = vmatpush2.msra.mxu0 0.0
    %2341 = vmatprep.subr.mxu0 0.0
    %2342 = vmatpush2.msra.mxu0 0.0
    %2343 = vmatprep.subr.mxu0 0.0
    %2344 = vmatpush2.msra.mxu0 0.0
    %2345 = vmatprep.subr.mxu0 0.0
    %2346 = vmatpush2.msra.mxu0 0.0
    %2347 = vmatprep.subr.mxu0 0.0
    %2348 = vmatpush2.msra.mxu0 0.0
    %2349 = vmatprep.subr.mxu0 0.0
    %2350 = vmatpush2.msra.mxu0 0.0
    %2351 = vmatprep.subr.mxu0 0.0
    %2352 = vmatpush2.msra.mxu0 0.0
    %2353 = vmatprep.mubr.f32.mxu0 0.0
    %2354 = vmatmul.mubr.f32.gmra.mxu0 %v2287
    %v2355 = vpop.f32.mrf.mxu0
    %v2356 = vadd.f32 0.0, %v2355
    %v2357 = vpop.f32.mrf.mxu0
    %2358 = vdwg.mxu0
    %2359 = vrot.lane.b32.xlu0 %v195, 112
    %v2360 = vpop.permute.xlu0 %2359
    %v2363 = vsel %vm29, %v1540, 0
    %2365 = vmatprep.subr.mxu0 0.0
    %2366 = vmatpush1.msra.mxu0 0.0
    %2367 = vmatprep.subr.mxu0 0.0
    %2368 = vmatpush1.msra.mxu0 0.0
    %2369 = vmatprep.subr.mxu0 0.0
    %2370 = vmatpush1.msra.mxu0 0.0
    %2371 = vmatprep.subr.mxu0 0.0
    %2372 = vmatpush1.msra.mxu0 0.0
    %2373 = vmatprep.subr.mxu0 0.0
    %2374 = vmatpush1.msra.mxu0 0.0
    %2375 = vmatprep.subr.mxu0 0.0
    %2376 = vmatpush1.msra.mxu0 0.0
    %2377 = vmatprep.subr.mxu0 0.0
    %2378 = vmatpush1.msra.mxu0 0.0
    %2379 = vmatprep.subr.mxu0 0.0
    %2380 = vmatpush1.msra.mxu0 0.0
    %2381 = vmatprep.subr.mxu0 0.0
    %2382 = vmatpush1.msra.mxu0 0.0
    %2383 = vmatprep.subr.mxu0 0.0
    %2384 = vmatpush1.msra.mxu0 0.0
    %2385 = vmatprep.subr.mxu0 0.0
    %2386 = vmatpush1.msra.mxu0 0.0
    %2387 = vmatprep.subr.mxu0 0.0
    %2388 = vmatpush1.msra.mxu0 0.0
    %2389 = vmatprep.subr.mxu0 0.0
    %2390 = vmatpush1.msra.mxu0 0.0
    %2391 = vmatprep.subr.mxu0 0.0
    %2392 = vmatpush1.msra.mxu0 0.0
    %2393 = vmatprep.subr.mxu0 0.0
    %2394 = vmatpush1.msra.mxu0 0.0
    %2395 = vmatprep.subr.mxu0 0.0
    %2396 = vmatpush1.msra.mxu0 %v2360
    %2397 = vmatprep.subr.mxu0 0.0
    %2398 = vmatpush2.msra.mxu0 0.0
    %2399 = vmatprep.subr.mxu0 0.0
    %2400 = vmatpush2.msra.mxu0 0.0
    %2401 = vmatprep.subr.mxu0 0.0
    %2402 = vmatpush2.msra.mxu0 0.0
    %2403 = vmatprep.subr.mxu0 0.0
    %2404 = vmatpush2.msra.mxu0 0.0
    %2405 = vmatprep.subr.mxu0 0.0
    %2406 = vmatpush2.msra.mxu0 0.0
    %2407 = vmatprep.subr.mxu0 0.0
    %2408 = vmatpush2.msra.mxu0 0.0
    %2409 = vmatprep.subr.mxu0 0.0
    %2410 = vmatpush2.msra.mxu0 0.0
    %2411 = vmatprep.subr.mxu0 0.0
    %2412 = vmatpush2.msra.mxu0 0.0
    %2413 = vmatprep.subr.mxu0 0.0
    %2414 = vmatpush2.msra.mxu0 0.0
    %2415 = vmatprep.subr.mxu0 0.0
    %2416 = vmatpush2.msra.mxu0 0.0
    %2417 = vmatprep.subr.mxu0 0.0
    %2418 = vmatpush2.msra.mxu0 0.0
    %2419 = vmatprep.subr.mxu0 0.0
    %2420 = vmatpush2.msra.mxu0 0.0
    %2421 = vmatprep.subr.mxu0 0.0
    %2422 = vmatpush2.msra.mxu0 0.0
    %2423 = vmatprep.subr.mxu0 0.0
    %2424 = vmatpush2.msra.mxu0 0.0
    %2425 = vmatprep.subr.mxu0 0.0
    %2426 = vmatpush2.msra.mxu0 0.0
    %2427 = vmatprep.subr.mxu0 0.0
    %2428 = vmatpush2.msra.mxu0 0.0
    %2429 = vmatprep.mubr.f32.mxu0 0.0
    %2430 = vmatmul.mubr.f32.gmra.mxu0 %v2363
    %v2431 = vpop.f32.mrf.mxu0
    %v2432 = vadd.f32 0.0, %v2431
    %v2433 = vpop.f32.mrf.mxu0
    %2434 = vdwg.mxu0
    %2435 = vrot.lane.b32.xlu0 %v200, 112
    %v2436 = vpop.permute.xlu0 %2435
    %v2439 = vsel %vm29, %v1542, 0
    %2441 = vmatprep.subr.mxu0 0.0
    %2442 = vmatpush1.msra.mxu0 0.0
    %2443 = vmatprep.subr.mxu0 0.0
    %2444 = vmatpush1.msra.mxu0 0.0
    %2445 = vmatprep.subr.mxu0 0.0
    %2446 = vmatpush1.msra.mxu0 0.0
    %2447 = vmatprep.subr.mxu0 0.0
    %2448 = vmatpush1.msra.mxu0 0.0
    %2449 = vmatprep.subr.mxu0 0.0
    %2450 = vmatpush1.msra.mxu0 0.0
    %2451 = vmatprep.subr.mxu0 0.0
    %2452 = vmatpush1.msra.mxu0 0.0
    %2453 = vmatprep.subr.mxu0 0.0
    %2454 = vmatpush1.msra.mxu0 0.0
    %2455 = vmatprep.subr.mxu0 0.0
    %2456 = vmatpush1.msra.mxu0 0.0
    %2457 = vmatprep.subr.mxu0 0.0
    %2458 = vmatpush1.msra.mxu0 0.0
    %2459 = vmatprep.subr.mxu0 0.0
    %2460 = vmatpush1.msra.mxu0 0.0
    %2461 = vmatprep.subr.mxu0 0.0
    %2462 = vmatpush1.msra.mxu0 0.0
    %2463 = vmatprep.subr.mxu0 0.0
    %2464 = vmatpush1.msra.mxu0 0.0
    %2465 = vmatprep.subr.mxu0 0.0
    %2466 = vmatpush1.msra.mxu0 0.0
    %2467 = vmatprep.subr.mxu0 0.0
    %2468 = vmatpush1.msra.mxu0 0.0
    %2469 = vmatprep.subr.mxu0 0.0
    %2470 = vmatpush1.msra.mxu0 0.0
    %2471 = vmatprep.subr.mxu0 0.0
    %2472 = vmatpush1.msra.mxu0 %v2436
    %2473 = vmatprep.subr.mxu0 0.0
    %2474 = vmatpush2.msra.mxu0 0.0
    %2475 = vmatprep.subr.mxu0 0.0
    %2476 = vmatpush2.msra.mxu0 0.0
    %2477 = vmatprep.subr.mxu0 0.0
    %2478 = vmatpush2.msra.mxu0 0.0
    %2479 = vmatprep.subr.mxu0 0.0
    %2480 = vmatpush2.msra.mxu0 0.0
    %2481 = vmatprep.subr.mxu0 0.0
    %2482 = vmatpush2.msra.mxu0 0.0
    %2483 = vmatprep.subr.mxu0 0.0
    %2484 = vmatpush2.msra.mxu0 0.0
    %2485 = vmatprep.subr.mxu0 0.0
    %2486 = vmatpush2.msra.mxu0 0.0
    %2487 = vmatprep.subr.mxu0 0.0
    %2488 = vmatpush2.msra.mxu0 0.0
    %2489 = vmatprep.subr.mxu0 0.0
    %2490 = vmatpush2.msra.mxu0 0.0
    %2491 = vmatprep.subr.mxu0 0.0
    %2492 = vmatpush2.msra.mxu0 0.0
    %2493 = vmatprep.subr.mxu0 0.0
    %2494 = vmatpush2.msra.mxu0 0.0
    %2495 = vmatprep.subr.mxu0 0.0
    %2496 = vmatpush2.msra.mxu0 0.0
    %2497 = vmatprep.subr.mxu0 0.0
    %2498 = vmatpush2.msra.mxu0 0.0
    %2499 = vmatprep.subr.mxu0 0.0
    %2500 = vmatpush2.msra.mxu0 0.0
    %2501 = vmatprep.subr.mxu0 0.0
    %2502 = vmatpush2.msra.mxu0 0.0
    %2503 = vmatprep.subr.mxu0 0.0
    %2504 = vmatpush2.msra.mxu0 0.0
    %2505 = vmatprep.mubr.f32.mxu0 0.0
    %2506 = vmatmul.mubr.f32.gmra.mxu0 %v2439
    %v2507 = vpop.f32.mrf.mxu0
    %v2508 = vadd.f32 0.0, %v2507
    %v2509 = vpop.f32.mrf.mxu0
    %2510 = vdwg.mxu0
    %2511 = vrot.lane.b32.xlu0 %v205, 112
    %v2512 = vpop.permute.xlu0 %2511
    %v2515 = vsel %vm29, %v1544, 0
    %2517 = vmatprep.subr.mxu0 0.0
    %2518 = vmatpush1.msra.mxu0 0.0
    %2519 = vmatprep.subr.mxu0 0.0
    %2520 = vmatpush1.msra.mxu0 0.0
    %2521 = vmatprep.subr.mxu0 0.0
    %2522 = vmatpush1.msra.mxu0 0.0
    %2523 = vmatprep.subr.mxu0 0.0
    %2524 = vmatpush1.msra.mxu0 0.0
    %2525 = vmatprep.subr.mxu0 0.0
    %2526 = vmatpush1.msra.mxu0 0.0
    %2527 = vmatprep.subr.mxu0 0.0
    %2528 = vmatpush1.msra.mxu0 0.0
    %2529 = vmatprep.subr.mxu0 0.0
    %2530 = vmatpush1.msra.mxu0 0.0
    %2531 = vmatprep.subr.mxu0 0.0
    %2532 = vmatpush1.msra.mxu0 0.0
    %2533 = vmatprep.subr.mxu0 0.0
    %2534 = vmatpush1.msra.mxu0 0.0
    %2535 = vmatprep.subr.mxu0 0.0
    %2536 = vmatpush1.msra.mxu0 0.0
    %2537 = vmatprep.subr.mxu0 0.0
    %2538 = vmatpush1.msra.mxu0 0.0
    %2539 = vmatprep.subr.mxu0 0.0
    %2540 = vmatpush1.msra.mxu0 0.0
    %2541 = vmatprep.subr.mxu0 0.0
    %2542 = vmatpush1.msra.mxu0 0.0
    %2543 = vmatprep.subr.mxu0 0.0
    %2544 = vmatpush1.msra.mxu0 0.0
    %2545 = vmatprep.subr.mxu0 0.0
    %2546 = vmatpush1.msra.mxu0 0.0
    %2547 = vmatprep.subr.mxu0 0.0
    %2548 = vmatpush1.msra.mxu0 %v2512
    %2549 = vmatprep.subr.mxu0 0.0
    %2550 = vmatpush2.msra.mxu0 0.0
    %2551 = vmatprep.subr.mxu0 0.0
    %2552 = vmatpush2.msra.mxu0 0.0
    %2553 = vmatprep.subr.mxu0 0.0
    %2554 = vmatpush2.msra.mxu0 0.0
    %2555 = vmatprep.subr.mxu0 0.0
    %2556 = vmatpush2.msra.mxu0 0.0
    %2557 = vmatprep.subr.mxu0 0.0
    %2558 = vmatpush2.msra.mxu0 0.0
    %2559 = vmatprep.subr.mxu0 0.0
    %2560 = vmatpush2.msra.mxu0 0.0
    %2561 = vmatprep.subr.mxu0 0.0
    %2562 = vmatpush2.msra.mxu0 0.0
    %2563 = vmatprep.subr.mxu0 0.0
    %2564 = vmatpush2.msra.mxu0 0.0
    %2565 = vmatprep.subr.mxu0 0.0
    %2566 = vmatpush2.msra.mxu0 0.0
    %2567 = vmatprep.subr.mxu0 0.0
    %2568 = vmatpush2.msra.mxu0 0.0
    %2569 = vmatprep.subr.mxu0 0.0
    %2570 = vmatpush2.msra.mxu0 0.0
    %2571 = vmatprep.subr.mxu0 0.0
    %2572 = vmatpush2.msra.mxu0 0.0
    %2573 = vmatprep.subr.mxu0 0.0
    %2574 = vmatpush2.msra.mxu0 0.0
    %2575 = vmatprep.subr.mxu0 0.0
    %2576 = vmatpush2.msra.mxu0 0.0
    %2577 = vmatprep.subr.mxu0 0.0
    %2578 = vmatpush2.msra.mxu0 0.0
    %2579 = vmatprep.subr.mxu0 0.0
    %2580 = vmatpush2.msra.mxu0 0.0
    %2581 = vmatprep.mubr.f32.mxu0 0.0
    %2582 = vmatmul.mubr.f32.gmra.mxu0 %v2515
    %v2583 = vpop.f32.mrf.mxu0
    %v2584 = vadd.f32 0.0, %v2583
    %v2585 = vpop.f32.mrf.mxu0
    %2586 = vdwg.mxu0
    %2587 = vrot.lane.b32.xlu0 %v210, 112
    %v2588 = vpop.permute.xlu0 %2587
    %v2591 = vsel %vm29, %v1546, 0
    %2593 = vmatprep.subr.mxu0 0.0
    %2594 = vmatpush1.msra.mxu0 0.0
    %2595 = vmatprep.subr.mxu0 0.0
    %2596 = vmatpush1.msra.mxu0 0.0
    %2597 = vmatprep.subr.mxu0 0.0
    %2598 = vmatpush1.msra.mxu0 0.0
    %2599 = vmatprep.subr.mxu0 0.0
    %2600 = vmatpush1.msra.mxu0 0.0
    %2601 = vmatprep.subr.mxu0 0.0
    %2602 = vmatpush1.msra.mxu0 0.0
    %2603 = vmatprep.subr.mxu0 0.0
    %2604 = vmatpush1.msra.mxu0 0.0
    %2605 = vmatprep.subr.mxu0 0.0
    %2606 = vmatpush1.msra.mxu0 0.0
    %2607 = vmatprep.subr.mxu0 0.0
    %2608 = vmatpush1.msra.mxu0 0.0
    %2609 = vmatprep.subr.mxu0 0.0
    %2610 = vmatpush1.msra.mxu0 0.0
    %2611 = vmatprep.subr.mxu0 0.0
    %2612 = vmatpush1.msra.mxu0 0.0
    %2613 = vmatprep.subr.mxu0 0.0
    %2614 = vmatpush1.msra.mxu0 0.0
    %2615 = vmatprep.subr.mxu0 0.0
    %2616 = vmatpush1.msra.mxu0 0.0
    %2617 = vmatprep.subr.mxu0 0.0
    %2618 = vmatpush1.msra.mxu0 0.0
    %2619 = vmatprep.subr.mxu0 0.0
    %2620 = vmatpush1.msra.mxu0 0.0
    %2621 = vmatprep.subr.mxu0 0.0
    %2622 = vmatpush1.msra.mxu0 0.0
    %2623 = vmatprep.subr.mxu0 0.0
    %2624 = vmatpush1.msra.mxu0 %v2588
    %2625 = vmatprep.subr.mxu0 0.0
    %2626 = vmatpush2.msra.mxu0 0.0
    %2627 = vmatprep.subr.mxu0 0.0
    %2628 = vmatpush2.msra.mxu0 0.0
    %2629 = vmatprep.subr.mxu0 0.0
    %2630 = vmatpush2.msra.mxu0 0.0
    %2631 = vmatprep.subr.mxu0 0.0
    %2632 = vmatpush2.msra.mxu0 0.0
    %2633 = vmatprep.subr.mxu0 0.0
    %2634 = vmatpush2.msra.mxu0 0.0
    %2635 = vmatprep.subr.mxu0 0.0
    %2636 = vmatpush2.msra.mxu0 0.0
    %2637 = vmatprep.subr.mxu0 0.0
    %2638 = vmatpush2.msra.mxu0 0.0
    %2639 = vmatprep.subr.mxu0 0.0
    %2640 = vmatpush2.msra.mxu0 0.0
    %2641 = vmatprep.subr.mxu0 0.0
    %2642 = vmatpush2.msra.mxu0 0.0
    %2643 = vmatprep.subr.mxu0 0.0
    %2644 = vmatpush2.msra.mxu0 0.0
    %2645 = vmatprep.subr.mxu0 0.0
    %2646 = vmatpush2.msra.mxu0 0.0
    %2647 = vmatprep.subr.mxu0 0.0
    %2648 = vmatpush2.msra.mxu0 0.0
    %2649 = vmatprep.subr.mxu0 0.0
    %2650 = vmatpush2.msra.mxu0 0.0
    %2651 = vmatprep.subr.mxu0 0.0
    %2652 = vmatpush2.msra.mxu0 0.0
    %2653 = vmatprep.subr.mxu0 0.0
    %2654 = vmatpush2.msra.mxu0 0.0
    %2655 = vmatprep.subr.mxu0 0.0
    %2656 = vmatpush2.msra.mxu0 0.0
    %2657 = vmatprep.mubr.f32.mxu0 0.0
    %2658 = vmatmul.mubr.f32.gmra.mxu0 %v2591
    %v2659 = vpop.f32.mrf.mxu0
    %v2660 = vadd.f32 0.0, %v2659
    %v2661 = vpop.f32.mrf.mxu0
    %2662 = vdwg.mxu0
    %2663 = vrot.lane.b32.xlu0 %v215, 112
    %v2664 = vpop.permute.xlu0 %2663
    %v2667 = vsel %vm29, %v1548, 0
    %2669 = vmatprep.subr.mxu0 0.0
    %2670 = vmatpush1.msra.mxu0 0.0
    %2671 = vmatprep.subr.mxu0 0.0
    %2672 = vmatpush1.msra.mxu0 0.0
    %2673 = vmatprep.subr.mxu0 0.0
    %2674 = vmatpush1.msra.mxu0 0.0
    %2675 = vmatprep.subr.mxu0 0.0
    %2676 = vmatpush1.msra.mxu0 0.0
    %2677 = vmatprep.subr.mxu0 0.0
    %2678 = vmatpush1.msra.mxu0 0.0
    %2679 = vmatprep.subr.mxu0 0.0
    %2680 = vmatpush1.msra.mxu0 0.0
    %2681 = vmatprep.subr.mxu0 0.0
    %2682 = vmatpush1.msra.mxu0 0.0
    %2683 = vmatprep.subr.mxu0 0.0
    %2684 = vmatpush1.msra.mxu0 0.0
    %2685 = vmatprep.subr.mxu0 0.0
    %2686 = vmatpush1.msra.mxu0 0.0
    %2687 = vmatprep.subr.mxu0 0.0
    %2688 = vmatpush1.msra.mxu0 0.0
    %2689 = vmatprep.subr.mxu0 0.0
    %2690 = vmatpush1.msra.mxu0 0.0
    %2691 = vmatprep.subr.mxu0 0.0
    %2692 = vmatpush1.msra.mxu0 0.0
    %2693 = vmatprep.subr.mxu0 0.0
    %2694 = vmatpush1.msra.mxu0 0.0
    %2695 = vmatprep.subr.mxu0 0.0
    %2696 = vmatpush1.msra.mxu0 0.0
    %2697 = vmatprep.subr.mxu0 0.0
    %2698 = vmatpush1.msra.mxu0 0.0
    %2699 = vmatprep.subr.mxu0 0.0
    %2700 = vmatpush1.msra.mxu0 %v2664
    %2701 = vmatprep.subr.mxu0 0.0
    %2702 = vmatpush2.msra.mxu0 0.0
    %2703 = vmatprep.subr.mxu0 0.0
    %2704 = vmatpush2.msra.mxu0 0.0
    %2705 = vmatprep.subr.mxu0 0.0
    %2706 = vmatpush2.msra.mxu0 0.0
    %2707 = vmatprep.subr.mxu0 0.0
    %2708 = vmatpush2.msra.mxu0 0.0
    %2709 = vmatprep.subr.mxu0 0.0
    %2710 = vmatpush2.msra.mxu0 0.0
    %2711 = vmatprep.subr.mxu0 0.0
    %2712 = vmatpush2.msra.mxu0 0.0
    %2713 = vmatprep.subr.mxu0 0.0
    %2714 = vmatpush2.msra.mxu0 0.0
    %2715 = vmatprep.subr.mxu0 0.0
    %2716 = vmatpush2.msra.mxu0 0.0
    %2717 = vmatprep.subr.mxu0 0.0
    %2718 = vmatpush2.msra.mxu0 0.0
    %2719 = vmatprep.subr.mxu0 0.0
    %2720 = vmatpush2.msra.mxu0 0.0
    %2721 = vmatprep.subr.mxu0 0.0
    %2722 = vmatpush2.msra.mxu0 0.0
    %2723 = vmatprep.subr.mxu0 0.0
    %2724 = vmatpush2.msra.mxu0 0.0
    %2725 = vmatprep.subr.mxu0 0.0
    %2726 = vmatpush2.msra.mxu0 0.0
    %2727 = vmatprep.subr.mxu0 0.0
    %2728 = vmatpush2.msra.mxu0 0.0
    %2729 = vmatprep.subr.mxu0 0.0
    %2730 = vmatpush2.msra.mxu0 0.0
    %2731 = vmatprep.subr.mxu0 0.0
    %2732 = vmatpush2.msra.mxu0 0.0
    %2733 = vmatprep.mubr.f32.mxu0 0.0
    %2734 = vmatmul.mubr.f32.gmra.mxu0 %v2667
    %v2735 = vpop.f32.mrf.mxu0
    %v2736 = vadd.f32 0.0, %v2735
    %v2737 = vpop.f32.mrf.mxu0
    %2738 = vdwg.mxu0
    %2739 = vrot.lane.b32.xlu0 %v220, 112
    %v2740 = vpop.permute.xlu0 %2739
    %v2743 = vsel %vm29, %v1550, 0
    %2745 = vmatprep.subr.mxu0 0.0
    %2746 = vmatpush1.msra.mxu0 0.0
    %2747 = vmatprep.subr.mxu0 0.0
    %2748 = vmatpush1.msra.mxu0 0.0
    %2749 = vmatprep.subr.mxu0 0.0
    %2750 = vmatpush1.msra.mxu0 0.0
    %2751 = vmatprep.subr.mxu0 0.0
    %2752 = vmatpush1.msra.mxu0 0.0
    %2753 = vmatprep.subr.mxu0 0.0
    %2754 = vmatpush1.msra.mxu0 0.0
    %2755 = vmatprep.subr.mxu0 0.0
    %2756 = vmatpush1.msra.mxu0 0.0
    %2757 = vmatprep.subr.mxu0 0.0
    %2758 = vmatpush1.msra.mxu0 0.0
    %2759 = vmatprep.subr.mxu0 0.0
    %2760 = vmatpush1.msra.mxu0 0.0
    %2761 = vmatprep.subr.mxu0 0.0
    %2762 = vmatpush1.msra.mxu0 0.0
    %2763 = vmatprep.subr.mxu0 0.0
    %2764 = vmatpush1.msra.mxu0 0.0
    %2765 = vmatprep.subr.mxu0 0.0
    %2766 = vmatpush1.msra.mxu0 0.0
    %2767 = vmatprep.subr.mxu0 0.0
    %2768 = vmatpush1.msra.mxu0 0.0
    %2769 = vmatprep.subr.mxu0 0.0
    %2770 = vmatpush1.msra.mxu0 0.0
    %2771 = vmatprep.subr.mxu0 0.0
    %2772 = vmatpush1.msra.mxu0 0.0
    %2773 = vmatprep.subr.mxu0 0.0
    %2774 = vmatpush1.msra.mxu0 0.0
    %2775 = vmatprep.subr.mxu0 0.0
    %2776 = vmatpush1.msra.mxu0 %v2740
    %2777 = vmatprep.subr.mxu0 0.0
    %2778 = vmatpush2.msra.mxu0 0.0
    %2779 = vmatprep.subr.mxu0 0.0
    %2780 = vmatpush2.msra.mxu0 0.0
    %2781 = vmatprep.subr.mxu0 0.0
    %2782 = vmatpush2.msra.mxu0 0.0
    %2783 = vmatprep.subr.mxu0 0.0
    %2784 = vmatpush2.msra.mxu0 0.0
    %2785 = vmatprep.subr.mxu0 0.0
    %2786 = vmatpush2.msra.mxu0 0.0
    %2787 = vmatprep.subr.mxu0 0.0
    %2788 = vmatpush2.msra.mxu0 0.0
    %2789 = vmatprep.subr.mxu0 0.0
    %2790 = vmatpush2.msra.mxu0 0.0
    %2791 = vmatprep.subr.mxu0 0.0
    %2792 = vmatpush2.msra.mxu0 0.0
    %2793 = vmatprep.subr.mxu0 0.0
    %2794 = vmatpush2.msra.mxu0 0.0
    %2795 = vmatprep.subr.mxu0 0.0
    %2796 = vmatpush2.msra.mxu0 0.0
    %2797 = vmatprep.subr.mxu0 0.0
    %2798 = vmatpush2.msra.mxu0 0.0
    %2799 = vmatprep.subr.mxu0 0.0
    %2800 = vmatpush2.msra.mxu0 0.0
    %2801 = vmatprep.subr.mxu0 0.0
    %2802 = vmatpush2.msra.mxu0 0.0
    %2803 = vmatprep.subr.mxu0 0.0
    %2804 = vmatpush2.msra.mxu0 0.0
    %2805 = vmatprep.subr.mxu0 0.0
    %2806 = vmatpush2.msra.mxu0 0.0
    %2807 = vmatprep.subr.mxu0 0.0
    %2808 = vmatpush2.msra.mxu0 0.0
    %2809 = vmatprep.mubr.f32.mxu0 0.0
    %2810 = vmatmul.mubr.f32.gmra.mxu0 %v2743
    %v2811 = vpop.f32.mrf.mxu0
    %v2812 = vadd.f32 0.0, %v2811
    %v2813 = vpop.f32.mrf.mxu0
    %2814 = vdwg.mxu0
    %v2815 = vrcp.pop %v1553
    %v2816 = vrcp.pop %v1556
    %v2817 = vrcp.pop %v1559
    %v2818 = vrcp.pop %v1562
    %v2819 = vrcp.pop %v1565
    %v2820 = vrcp.pop %v1568
    %v2821 = vrcp.pop %v1571
    %v2822 = vrcp.pop %v1574
    %v2823 = vrcp.pop %v1577
    %v2824 = vrcp.pop %v1580
    %v2825 = vrcp.pop %v1583
    %v2826 = vrcp.pop %v1586
    %v2827 = vrcp.pop %v1589
    %v2828 = vrcp.pop %v1592
    %v2829 = vrcp.pop %v1595
    %v2830 = vrcp.pop %v1598
    %v2831 = vmul.f32 %v1672, %v2815
    %v2832 = vmul.f32 %v1748, %v2816
    %v2833 = vmul.f32 %v1824, %v2817
    %v2834 = vmul.f32 %v1900, %v2818
    %v2835 = vmul.f32 %v1976, %v2819
    %v2836 = vmul.f32 %v2052, %v2820
    %v2837 = vmul.f32 %v2128, %v2821
    %v2838 = vmul.f32 %v2204, %v2822
    %v2839 = vmul.f32 %v2280, %v2823
    %v2840 = vmul.f32 %v2356, %v2824
    %v2841 = vmul.f32 %v2432, %v2825
    %v2842 = vmul.f32 %v2508, %v2826
    %v2843 = vmul.f32 %v2584, %v2827
    %v2844 = vmul.f32 %v2660, %v2828
    %v2845 = vmul.f32 %v2736, %v2829
    %v2846 = vmul.f32 %v2812, %v2830
    %v2847 = vld [vmem:[%s1 + $0x8] sm:$0xff]
    %v2848 = vld [vmem:[%s1 + $0x10] sm:$0xff]
    %v2850 = vsel %vm29, %v2832, 0
    %v2853 = vsel %vm29, %v2836, 0
    %v2856 = vsel %vm29, %v2840, 0
    %v2859 = vsel %vm29, %v2844, 0
    %2861 = vmatprep.subr.mxu0 0.0
    %2862 = vmatpush1.msra.mxu0 0.0
    %2863 = vmatprep.subr.mxu0 0.0
    %2864 = vmatpush1.msra.mxu0 0.0
    %2865 = vmatprep.subr.mxu0 0.0
    %2866 = vmatpush1.msra.mxu0 0.0
    %2867 = vmatprep.subr.mxu0 0.0
    %2868 = vmatpush1.msra.mxu0 0.0
    %2869 = vmatprep.subr.mxu0 0.0
    %2870 = vmatpush1.msra.mxu0 0.0
    %2871 = vmatprep.subr.mxu0 0.0
    %2872 = vmatpush1.msra.mxu0 0.0
    %2873 = vmatprep.subr.mxu0 0.0
    %2874 = vmatpush1.msra.mxu0 0.0
    %2875 = vmatprep.subr.mxu0 0.0
    %2876 = vmatpush1.msra.mxu0 0.0
    %2877 = vmatprep.subr.mxu0 0.0
    %2878 = vmatpush1.msra.mxu0 0.0
    %2879 = vmatprep.subr.mxu0 0.0
    %2880 = vmatpush1.msra.mxu0 0.0
    %2881 = vmatprep.subr.mxu0 0.0
    %2882 = vmatpush1.msra.mxu0 0.0
    %2883 = vmatprep.subr.mxu0 0.0
    %2884 = vmatpush1.msra.mxu0 0.0
    %2885 = vmatprep.subr.mxu0 0.0
    %2886 = vmatpush1.msra.mxu0 0.0
    %2887 = vmatprep.subr.mxu0 0.0
    %2888 = vmatpush1.msra.mxu0 0.0
    %2889 = vmatprep.subr.mxu0 0.0
    %2890 = vmatpush1.msra.mxu0 0.0
    %2891 = vmatprep.subr.mxu0 0.0
    %2892 = vmatpush1.msra.mxu0 %v2848
    %2893 = vmatprep.subr.mxu0 0.0
    %2894 = vmatpush2.msra.mxu0 0.0
    %2895 = vmatprep.subr.mxu0 0.0
    %2896 = vmatpush2.msra.mxu0 0.0
    %2897 = vmatprep.subr.mxu0 0.0
    %2898 = vmatpush2.msra.mxu0 0.0
    %2899 = vmatprep.subr.mxu0 0.0
    %2900 = vmatpush2.msra.mxu0 0.0
    %2901 = vmatprep.subr.mxu0 0.0
    %2902 = vmatpush2.msra.mxu0 0.0
    %2903 = vmatprep.subr.mxu0 0.0
    %2904 = vmatpush2.msra.mxu0 0.0
    %2905 = vmatprep.subr.mxu0 0.0
    %2906 = vmatpush2.msra.mxu0 0.0
    %2907 = vmatprep.subr.mxu0 0.0
    %2908 = vmatpush2.msra.mxu0 0.0
    %2909 = vmatprep.subr.mxu0 0.0
    %2910 = vmatpush2.msra.mxu0 0.0
    %2911 = vmatprep.subr.mxu0 0.0
    %2912 = vmatpush2.msra.mxu0 0.0
    %2913 = vmatprep.subr.mxu0 0.0
    %2914 = vmatpush2.msra.mxu0 0.0
    %2915 = vmatprep.subr.mxu0 0.0
    %2916 = vmatpush2.msra.mxu0 0.0
    %2917 = vmatprep.subr.mxu0 0.0
    %2918 = vmatpush2.msra.mxu0 0.0
    %2919 = vmatprep.subr.mxu0 0.0
    %2920 = vmatpush2.msra.mxu0 0.0
    %2921 = vmatprep.subr.mxu0 0.0
    %2922 = vmatpush2.msra.mxu0 0.0
    %2923 = vmatprep.subr.mxu0 0.0
    %2924 = vmatpush2.msra.mxu0 0.0
    %2925 = vmatprep.mubr.f32.mxu0 0.0
    %2926 = vmatmul.mubr.f32.gmra.mxu0 %v2850
    %v2927 = vpop.f32.mrf.mxu0
    %v2928 = vadd.f32 0.0, %v2927
    %v2929 = vpop.f32.mrf.mxu0
    %2930 = vmatprep.mubr.f32.mxu0 0.0
    %2931 = vmatmul.mubr.f32.gmra.mxu0 %v2853
    %v2932 = vpop.f32.mrf.mxu0
    %v2933 = vadd.f32 0.0, %v2932
    %v2934 = vpop.f32.mrf.mxu0
    %2935 = vmatprep.mubr.f32.mxu0 0.0
    %2936 = vmatmul.mubr.f32.gmra.mxu0 %v2856
    %v2937 = vpop.f32.mrf.mxu0
    %v2938 = vadd.f32 0.0, %v2937
    %v2939 = vpop.f32.mrf.mxu0
    %2940 = vmatprep.mubr.f32.mxu0 0.0
    %2941 = vmatmul.mubr.f32.gmra.mxu0 %v2859
    %v2942 = vpop.f32.mrf.mxu0
    %v2943 = vadd.f32 0.0, %v2942
    %v2944 = vpop.f32.mrf.mxu0
    %2945 = vdwg.mxu0
    %v2947 = vsel %vm29, %v2831, 0
    %v2950 = vsel %vm29, %v2835, 0
    %v2953 = vsel %vm29, %v2839, 0
    %v2956 = vsel %vm29, %v2843, 0
    %2958 = vmatprep.subr.mxu0 0.0
    %2959 = vmatpush1.msra.mxu0 0.0
    %2960 = vmatprep.subr.mxu0 0.0
    %2961 = vmatpush1.msra.mxu0 0.0
    %2962 = vmatprep.subr.mxu0 0.0
    %2963 = vmatpush1.msra.mxu0 0.0
    %2964 = vmatprep.subr.mxu0 0.0
    %2965 = vmatpush1.msra.mxu0 0.0
    %2966 = vmatprep.subr.mxu0 0.0
    %2967 = vmatpush1.msra.mxu0 0.0
    %2968 = vmatprep.subr.mxu0 0.0
    %2969 = vmatpush1.msra.mxu0 0.0
    %2970 = vmatprep.subr.mxu0 0.0
    %2971 = vmatpush1.msra.mxu0 0.0
    %2972 = vmatprep.subr.mxu0 0.0
    %2973 = vmatpush1.msra.mxu0 0.0
    %2974 = vmatprep.subr.mxu0 0.0
    %2975 = vmatpush1.msra.mxu0 0.0
    %2976 = vmatprep.subr.mxu0 0.0
    %2977 = vmatpush1.msra.mxu0 0.0
    %2978 = vmatprep.subr.mxu0 0.0
    %2979 = vmatpush1.msra.mxu0 0.0
    %2980 = vmatprep.subr.mxu0 0.0
    %2981 = vmatpush1.msra.mxu0 0.0
    %2982 = vmatprep.subr.mxu0 0.0
    %2983 = vmatpush1.msra.mxu0 0.0
    %2984 = vmatprep.subr.mxu0 0.0
    %2985 = vmatpush1.msra.mxu0 0.0
    %2986 = vmatprep.subr.mxu0 0.0
    %2987 = vmatpush1.msra.mxu0 0.0
    %2988 = vmatprep.subr.mxu0 0.0
    %2989 = vmatpush1.msra.mxu0 %v2847
    %2990 = vmatprep.subr.mxu0 0.0
    %2991 = vmatpush2.msra.mxu0 0.0
    %2992 = vmatprep.subr.mxu0 0.0
    %2993 = vmatpush2.msra.mxu0 0.0
    %2994 = vmatprep.subr.mxu0 0.0
    %2995 = vmatpush2.msra.mxu0 0.0
    %2996 = vmatprep.subr.mxu0 0.0
    %2997 = vmatpush2.msra.mxu0 0.0
    %2998 = vmatprep.subr.mxu0 0.0
    %2999 = vmatpush2.msra.mxu0 0.0
    %3000 = vmatprep.subr.mxu0 0.0
    %3001 = vmatpush2.msra.mxu0 0.0
    %3002 = vmatprep.subr.mxu0 0.0
    %3003 = vmatpush2.msra.mxu0 0.0
    %3004 = vmatprep.subr.mxu0 0.0
    %3005 = vmatpush2.msra.mxu0 0.0
    %3006 = vmatprep.subr.mxu0 0.0
    %3007 = vmatpush2.msra.mxu0 0.0
    %3008 = vmatprep.subr.mxu0 0.0
    %3009 = vmatpush2.msra.mxu0 0.0
    %3010 = vmatprep.subr.mxu0 0.0
    %3011 = vmatpush2.msra.mxu0 0.0
    %3012 = vmatprep.subr.mxu0 0.0
    %3013 = vmatpush2.msra.mxu0 0.0
    %3014 = vmatprep.subr.mxu0 0.0
    %3015 = vmatpush2.msra.mxu0 0.0
    %3016 = vmatprep.subr.mxu0 0.0
    %3017 = vmatpush2.msra.mxu0 0.0
    %3018 = vmatprep.subr.mxu0 0.0
    %3019 = vmatpush2.msra.mxu0 0.0
    %3020 = vmatprep.subr.mxu0 0.0
    %3021 = vmatpush2.msra.mxu0 0.0
    %3022 = vmatprep.mubr.f32.mxu0 0.0
    %3023 = vmatmul.mubr.f32.gmra.mxu0 %v2947
    %v3024 = vpop.f32.mrf.mxu0
    %v3025 = vadd.f32 %v2928, %v3024
    %v3026 = vpop.f32.mrf.mxu0
    %3027 = vmatprep.mubr.f32.mxu0 0.0
    %3028 = vmatmul.mubr.f32.gmra.mxu0 %v2950
    %v3029 = vpop.f32.mrf.mxu0
    %v3030 = vadd.f32 %v2933, %v3029
    %v3031 = vpop.f32.mrf.mxu0
    %3032 = vmatprep.mubr.f32.mxu0 0.0
    %3033 = vmatmul.mubr.f32.gmra.mxu0 %v2953
    %v3034 = vpop.f32.mrf.mxu0
    %v3035 = vadd.f32 %v2938, %v3034
    %v3036 = vpop.f32.mrf.mxu0
    %3037 = vmatprep.mubr.f32.mxu0 0.0
    %3038 = vmatmul.mubr.f32.gmra.mxu0 %v2956
    %v3039 = vpop.f32.mrf.mxu0
    %v3040 = vadd.f32 %v2943, %v3039
    %v3041 = vpop.f32.mrf.mxu0
    %3042 = vdwg.mxu0
    %v3043 = vld [vmem:[%s1 + $0x18] sm:$0xff]
    %v3045 = vsel %vm29, %v2833, 0
    %v3048 = vsel %vm29, %v2837, 0
    %v3051 = vsel %vm29, %v2841, 0
    %v3054 = vsel %vm29, %v2845, 0
    %3056 = vmatprep.subr.mxu0 0.0
    %3057 = vmatpush1.msra.mxu0 0.0
    %3058 = vmatprep.subr.mxu0 0.0
    %3059 = vmatpush1.msra.mxu0 0.0
    %3060 = vmatprep.subr.mxu0 0.0
    %3061 = vmatpush1.msra.mxu0 0.0
    %3062 = vmatprep.subr.mxu0 0.0
    %3063 = vmatpush1.msra.mxu0 0.0
    %3064 = vmatprep.subr.mxu0 0.0
    %3065 = vmatpush1.msra.mxu0 0.0
    %3066 = vmatprep.subr.mxu0 0.0
    %3067 = vmatpush1.msra.mxu0 0.0
    %3068 = vmatprep.subr.mxu0 0.0
    %3069 = vmatpush1.msra.mxu0 0.0
    %3070 = vmatprep.subr.mxu0 0.0
    %3071 = vmatpush1.msra.mxu0 0.0
    %3072 = vmatprep.subr.mxu0 0.0
    %3073 = vmatpush1.msra.mxu0 0.0
    %3074 = vmatprep.subr.mxu0 0.0
    %3075 = vmatpush1.msra.mxu0 0.0
    %3076 = vmatprep.subr.mxu0 0.0
    %3077 = vmatpush1.msra.mxu0 0.0
    %3078 = vmatprep.subr.mxu0 0.0
    %3079 = vmatpush1.msra.mxu0 0.0
    %3080 = vmatprep.subr.mxu0 0.0
    %3081 = vmatpush1.msra.mxu0 0.0
    %3082 = vmatprep.subr.mxu0 0.0
    %3083 = vmatpush1.msra.mxu0 0.0
    %3084 = vmatprep.subr.mxu0 0.0
    %3085 = vmatpush1.msra.mxu0 0.0
    %3086 = vmatprep.subr.mxu0 0.0
    %3087 = vmatpush1.msra.mxu0 %v3043
    %3088 = vmatprep.subr.mxu0 0.0
    %3089 = vmatpush2.msra.mxu0 0.0
    %3090 = vmatprep.subr.mxu0 0.0
    %3091 = vmatpush2.msra.mxu0 0.0
    %3092 = vmatprep.subr.mxu0 0.0
    %3093 = vmatpush2.msra.mxu0 0.0
    %3094 = vmatprep.subr.mxu0 0.0
    %3095 = vmatpush2.msra.mxu0 0.0
    %3096 = vmatprep.subr.mxu0 0.0
    %3097 = vmatpush2.msra.mxu0 0.0
    %3098 = vmatprep.subr.mxu0 0.0
    %3099 = vmatpush2.msra.mxu0 0.0
    %3100 = vmatprep.subr.mxu0 0.0
    %3101 = vmatpush2.msra.mxu0 0.0
    %3102 = vmatprep.subr.mxu0 0.0
    %3103 = vmatpush2.msra.mxu0 0.0
    %3104 = vmatprep.subr.mxu0 0.0
    %3105 = vmatpush2.msra.mxu0 0.0
    %3106 = vmatprep.subr.mxu0 0.0
    %3107 = vmatpush2.msra.mxu0 0.0
    %3108 = vmatprep.subr.mxu0 0.0
    %3109 = vmatpush2.msra.mxu0 0.0
    %3110 = vmatprep.subr.mxu0 0.0
    %3111 = vmatpush2.msra.mxu0 0.0
    %3112 = vmatprep.subr.mxu0 0.0
    %3113 = vmatpush2.msra.mxu0 0.0
    %3114 = vmatprep.subr.mxu0 0.0
    %3115 = vmatpush2.msra.mxu0 0.0
    %3116 = vmatprep.subr.mxu0 0.0
    %3117 = vmatpush2.msra.mxu0 0.0
    %3118 = vmatprep.subr.mxu0 0.0
    %3119 = vmatpush2.msra.mxu0 0.0
    %3120 = vmatprep.mubr.f32.mxu0 0.0
    %3121 = vmatmul.mubr.f32.gmra.mxu0 %v3045
    %v3122 = vpop.f32.mrf.mxu0
    %v3123 = vadd.f32 0.0, %v3122
    %v3124 = vpop.f32.mrf.mxu0
    %3125 = vmatprep.mubr.f32.mxu0 0.0
    %3126 = vmatmul.mubr.f32.gmra.mxu0 %v3048
    %v3127 = vpop.f32.mrf.mxu0
    %v3128 = vadd.f32 0.0, %v3127
    %v3129 = vpop.f32.mrf.mxu0
    %3130 = vmatprep.mubr.f32.mxu0 0.0
    %3131 = vmatmul.mubr.f32.gmra.mxu0 %v3051
    %v3132 = vpop.f32.mrf.mxu0
    %v3133 = vadd.f32 0.0, %v3132
    %v3134 = vpop.f32.mrf.mxu0
    %3135 = vmatprep.mubr.f32.mxu0 0.0
    %3136 = vmatmul.mubr.f32.gmra.mxu0 %v3054
    %v3137 = vpop.f32.mrf.mxu0
    %v3138 = vadd.f32 0.0, %v3137
    %v3139 = vpop.f32.mrf.mxu0
    %3140 = vdwg.mxu0
    %v3141 = vadd.f32 %v3025, %v3123
    %v3142 = vadd.f32 %v3030, %v3128
    %v3143 = vadd.f32 %v3035, %v3133
    %v3144 = vadd.f32 %v3040, %v3138
    %v3145 = vld [vmem:[%s1 + $0x20] sm:$0xff]
    %v3147 = vsel %vm29, %v2834, 0
    %v3150 = vsel %vm29, %v2838, 0
    %v3153 = vsel %vm29, %v2842, 0
    %v3156 = vsel %vm29, %v2846, 0
    %3158 = vmatprep.subr.mxu0 0.0
    %3159 = vmatpush1.msra.mxu0 0.0
    %3160 = vmatprep.subr.mxu0 0.0
    %3161 = vmatpush1.msra.mxu0 0.0
    %3162 = vmatprep.subr.mxu0 0.0
    %3163 = vmatpush1.msra.mxu0 0.0
    %3164 = vmatprep.subr.mxu0 0.0
    %3165 = vmatpush1.msra.mxu0 0.0
    %3166 = vmatprep.subr.mxu0 0.0
    %3167 = vmatpush1.msra.mxu0 0.0
    %3168 = vmatprep.subr.mxu0 0.0
    %3169 = vmatpush1.msra.mxu0 0.0
    %3170 = vmatprep.subr.mxu0 0.0
    %3171 = vmatpush1.msra.mxu0 0.0
    %3172 = vmatprep.subr.mxu0 0.0
    %3173 = vmatpush1.msra.mxu0 0.0
    %3174 = vmatprep.subr.mxu0 0.0
    %3175 = vmatpush1.msra.mxu0 0.0
    %3176 = vmatprep.subr.mxu0 0.0
    %3177 = vmatpush1.msra.mxu0 0.0
    %3178 = vmatprep.subr.mxu0 0.0
    %3179 = vmatpush1.msra.mxu0 0.0
    %3180 = vmatprep.subr.mxu0 0.0
    %3181 = vmatpush1.msra.mxu0 0.0
    %3182 = vmatprep.subr.mxu0 0.0
    %3183 = vmatpush1.msra.mxu0 0.0
    %3184 = vmatprep.subr.mxu0 0.0
    %3185 = vmatpush1.msra.mxu0 0.0
    %3186 = vmatprep.subr.mxu0 0.0
    %3187 = vmatpush1.msra.mxu0 0.0
    %3188 = vmatprep.subr.mxu0 0.0
    %3189 = vmatpush1.msra.mxu0 %v3145
    %3190 = vmatprep.subr.mxu0 0.0
    %3191 = vmatpush2.msra.mxu0 0.0
    %3192 = vmatprep.subr.mxu0 0.0
    %3193 = vmatpush2.msra.mxu0 0.0
    %3194 = vmatprep.subr.mxu0 0.0
    %3195 = vmatpush2.msra.mxu0 0.0
    %3196 = vmatprep.subr.mxu0 0.0
    %3197 = vmatpush2.msra.mxu0 0.0
    %3198 = vmatprep.subr.mxu0 0.0
    %3199 = vmatpush2.msra.mxu0 0.0
    %3200 = vmatprep.subr.mxu0 0.0
    %3201 = vmatpush2.msra.mxu0 0.0
    %3202 = vmatprep.subr.mxu0 0.0
    %3203 = vmatpush2.msra.mxu0 0.0
    %3204 = vmatprep.subr.mxu0 0.0
    %3205 = vmatpush2.msra.mxu0 0.0
    %3206 = vmatprep.subr.mxu0 0.0
    %3207 = vmatpush2.msra.mxu0 0.0
    %3208 = vmatprep.subr.mxu0 0.0
    %3209 = vmatpush2.msra.mxu0 0.0
    %3210 = vmatprep.subr.mxu0 0.0
    %3211 = vmatpush2.msra.mxu0 0.0
    %3212 = vmatprep.subr.mxu0 0.0
    %3213 = vmatpush2.msra.mxu0 0.0
    %3214 = vmatprep.subr.mxu0 0.0
    %3215 = vmatpush2.msra.mxu0 0.0
    %3216 = vmatprep.subr.mxu0 0.0
    %3217 = vmatpush2.msra.mxu0 0.0
    %3218 = vmatprep.subr.mxu0 0.0
    %3219 = vmatpush2.msra.mxu0 0.0
    %3220 = vmatprep.subr.mxu0 0.0
    %3221 = vmatpush2.msra.mxu0 0.0
    %3222 = vmatprep.mubr.f32.mxu0 0.0
    %3223 = vmatmul.mubr.f32.gmra.mxu0 %v3147
    %v3224 = vpop.f32.mrf.mxu0
    %v3225 = vadd.f32 0.0, %v3224
    %v3226 = vpop.f32.mrf.mxu0
    %3227 = vmatprep.mubr.f32.mxu0 0.0
    %3228 = vmatmul.mubr.f32.gmra.mxu0 %v3150
    %v3229 = vpop.f32.mrf.mxu0
    %v3230 = vadd.f32 0.0, %v3229
    %v3231 = vpop.f32.mrf.mxu0
    %3232 = vmatprep.mubr.f32.mxu0 0.0
    %3233 = vmatmul.mubr.f32.gmra.mxu0 %v3153
    %v3234 = vpop.f32.mrf.mxu0
    %v3235 = vadd.f32 0.0, %v3234
    %v3236 = vpop.f32.mrf.mxu0
    %3237 = vmatprep.mubr.f32.mxu0 0.0
    %3238 = vmatmul.mubr.f32.gmra.mxu0 %v3156
    %v3239 = vpop.f32.mrf.mxu0
    %v3240 = vadd.f32 0.0, %v3239
    %v3241 = vpop.f32.mrf.mxu0
    %3242 = vdwg.mxu0
    %v3243 = vadd.f32 %v3141, %v3225
    %v3244 = vadd.f32 %v3142, %v3230
    %v3245 = vadd.f32 %v3143, %v3235
    %v3246 = vadd.f32 %v3144, %v3240
    %v3247 = vld [vmem:[%s1 + $0x28] sm:$0x1]
    %v3248 = vlaneseq
    %v3249 = vshrl.u32 %v3248, 7
    %v3250 = vsub.s32 0, %v3249
    %v3251 = vrot.slane %v3247, %v3250
    %v3252 = vadd.f32 %v3243, %v3251
    %v3253 = vadd.f32 %v3244, %v3251
    %v3254 = vadd.f32 %v3245, %v3251
    %v3255 = vadd.f32 %v3246, %v3251
    %vm3256 = vcmask 261120
    %3257 = vst.msk [vmem:[#allocation2] sm:$0xff] %vm3256, %v3252
    %3258 = vst.msk [vmem:[#allocation2 + $0x8] sm:$0xff] %vm3256, %v3253
    %3259 = vst.msk [vmem:[#allocation2 + $0x10] sm:$0xff] %vm3256, %v3254
    %3260 = vst.msk [vmem:[#allocation2 + $0x18] sm:$0xff] %vm3256, %v3255
    // Predicated region
    $region10: #{apply.1} parent=1 // pred_check
      _
    $region11: #{apply.1} parent=1 // pred_check_branch
      %3262 = sbr.rel (0) target = $region13
    $region12: #{apply.1} parent=1 // pred_region
      %s3264 = ssub.s32 512, 512
      %3265 = vsyncadd [#allocation3], %s3264
      %s3266 = sshll.u32 [#allocation2], 4
      %s3267 = int_to_ptr.vmem [resolvable:$true] %s3266
      %3272 = dma.vmem_to_hbm [thread:$0]  %s3267, 512, %s2, [#allocation3], 128, 128, 8
    $region13: #{apply.1} parent=1 // pred_fallthru
      _
    // Predicated region
    $region14: #{apply.1} parent=1 // pred_check
      _
    $region15: #{apply.1} parent=1 // pred_check_branch
      %3274 = sbr.rel (0) target = $region17
    $region16: #{apply.1} parent=1 // pred_region
      %3275 = dma.done [#allocation3], 512
    $region17: #{apply.1} parent=1 // pred_fallthru
      _
    %3276 = vsyncpa [#allocation3], 1

</llo_original>
